<compile_context>
chip_gen: v6e
topology: v6e:2x2x1
jax: 0.10.0
libtpu: 0.0.40
codegen_flags: <defaults>
</compile_context>

<pallas_src>
import functools

import jax
import jax.numpy as jnp
from jax.experimental import pallas as pl
from jax.experimental.pallas import tpu as pltpu

EPS = 1e-5          # PyTorch BatchNorm2d default eps
KH, KW = 3, 3       # kernel_size=3, stride=1, padding=1, dilation=1 (module defaults)
LANE = 128


def _conv_stats_kernel(x_ref, w_ref, conv_ref, sum_ref, ssq_ref):
    # x_ref:    (1, H+2, W+2, Cin)   zero-padded NHWC image for this grid step
    # w_ref:    (KH*KW, Cin, Coutp)  conv weight, one (Cin, Coutp) matrix per tap
    # conv_ref: (1, H*W, Coutp) f32  conv result (written back to HBM for pass 2)
    # sum_ref:  (1, Coutp) f32       per-channel running sum      (accumulated over grid)
    # ssq_ref:  (1, Coutp) f32       per-channel running sum(x^2) (accumulated over grid)
    _, hp2, wp2, cin = x_ref.shape
    H, W = hp2 - 2, wp2 - 2
    coutp = conv_ref.shape[-1]

    xp = x_ref[0]                                    # (H+2, W+2, Cin)

    # 3x3 conv as 9 accumulated MXU matmuls: M = H*W, N = Coutp (lane dense), K = Cin.
    acc = jnp.zeros((H * W, coutp), jnp.float32)
    for kh in range(KH):
        for kw in range(KW):
            patch = xp[kh:kh + H, kw:kw + W, :].reshape(H * W, cin)
            acc += jnp.dot(patch, w_ref[kh * KW + kw],
                           preferred_element_type=jnp.float32)
    conv_ref[0] = acc

    # one-pass BN statistics (biased var later via E[x^2] - E[x]^2)
    tile_sum = jnp.sum(acc, axis=0, keepdims=True)           # (1, Coutp)
    tile_ssq = jnp.sum(acc * acc, axis=0, keepdims=True)     # (1, Coutp)

    @pl.when(pl.program_id(0) == 0)
    def _():
        sum_ref[...] = jnp.zeros_like(sum_ref)
        ssq_ref[...] = jnp.zeros_like(ssq_ref)

    sum_ref[...] += tile_sum
    ssq_ref[...] += tile_ssq


def _bn_relu_kernel(conv_ref, sum_ref, ssq_ref, gamma_ref, beta_ref, o_ref, *,
                    inv_count):
    # Fold (mean, var, gamma, beta) into a single per-channel scale/shift, then ReLU.
    mean = sum_ref[...] * inv_count                               # (1, Coutp)
    var = jnp.maximum(ssq_ref[...] * inv_count - mean * mean, 0.0)
    inv_std = jax.lax.rsqrt(var + EPS)                            # per-channel, EUP
    scale = gamma_ref[...] * inv_std
    shift = beta_ref[...] - mean * scale
    y = conv_ref[0] * scale + shift                               # (H*W, Coutp)
    o_ref[0] = jnp.maximum(y, 0.0).astype(o_ref.dtype)


def conv2d_block(x_nchw, w_oihw, gamma, beta):
    """Forward of Conv2dBlock.  x_nchw: (N, Cin, H, W); w_oihw: (Cout, Cin, 3, 3)."""
    N, Cin, H, W = x_nchw.shape
    Cout = w_oihw.shape[0]
    Coutp = pl.cdiv(Cout, LANE) * LANE          # lane-dense padded output channels
    HW = H * W

    # glue (fused by XLA with the transpose): NCHW -> padded NHWC, weight -> (tap,Cin,Coutp)
    x_pad = jnp.pad(jnp.transpose(x_nchw, (0, 2, 3, 1)),
                    ((0, 0), (1, 1), (1, 1), (0, 0)))
    w = jnp.transpose(w_oihw, (2, 3, 1, 0)).reshape(KH * KW, Cin, Cout)
    w = jnp.pad(w, ((0, 0), (0, 0), (0, Coutp - Cout))).astype(x_nchw.dtype)
    gamma_p = jnp.pad(gamma.astype(jnp.float32).reshape(1, Cout),
                      ((0, 0), (0, Coutp - Cout)))
    beta_p = jnp.pad(beta.astype(jnp.float32).reshape(1, Cout),
                     ((0, 0), (0, Coutp - Cout)))

    # pass 1: conv + BN statistics (grid over batch; stats accumulate across steps)
    conv, csum, cssq = pl.pallas_call(
        _conv_stats_kernel,
        grid=(N,),
        in_specs=[
            pl.BlockSpec((1, H + 2, W + 2, Cin), lambda n: (n, 0, 0, 0)),
            pl.BlockSpec((KH * KW, Cin, Coutp), lambda n: (0, 0, 0)),
        ],
        out_specs=(
            pl.BlockSpec((1, HW, Coutp), lambda n: (n, 0, 0)),
            pl.BlockSpec((1, Coutp), lambda n: (0, 0)),
            pl.BlockSpec((1, Coutp), lambda n: (0, 0)),
        ),
        out_shape=(
            jax.ShapeDtypeStruct((N, HW, Coutp), jnp.float32),
            jax.ShapeDtypeStruct((1, Coutp), jnp.float32),
            jax.ShapeDtypeStruct((1, Coutp), jnp.float32),
        ),
        compiler_params=pltpu.CompilerParams(
            dimension_semantics=("arbitrary",),      # stats accumulate over the batch
            vmem_limit_bytes=32 * 1024 * 1024),
    )(x_pad, w)

    # pass 2: fused BN scale/shift + ReLU (independent per batch element)
    out = pl.pallas_call(
        functools.partial(_bn_relu_kernel, inv_count=1.0 / float(N * HW)),
        grid=(N,),
        in_specs=[
            pl.BlockSpec((1, HW, Coutp), lambda n: (n, 0, 0)),
            pl.BlockSpec((1, Coutp), lambda n: (0, 0)),
            pl.BlockSpec((1, Coutp), lambda n: (0, 0)),
            pl.BlockSpec((1, Coutp), lambda n: (0, 0)),
            pl.BlockSpec((1, Coutp), lambda n: (0, 0)),
        ],
        out_specs=pl.BlockSpec((1, HW, Coutp), lambda n: (n, 0, 0)),
        out_shape=jax.ShapeDtypeStruct((N, HW, Coutp), x_nchw.dtype),
        compiler_params=pltpu.CompilerParams(
            dimension_semantics=("parallel",),
            vmem_limit_bytes=32 * 1024 * 1024),
    )(conv, csum, cssq, gamma_p, beta_p)

    # drop channel padding, back to PyTorch's NCHW (fused slice+reshape+transpose)
    out = out[:, :, :Cout].reshape(N, H, W, Cout)
    return jnp.transpose(out, (0, 3, 1, 2))


def reference(x_nchw, w_oihw, gamma, beta):
    """Pure-JAX reference matching the PyTorch forward (training-mode BN)."""
    y = jax.lax.conv_general_dilated(
        x_nchw, w_oihw, window_strides=(1, 1), padding=((1, 1), (1, 1)),
        dimension_numbers=("NCHW", "OIHW", "NCHW"))
    mean = jnp.mean(y, axis=(0, 2, 3), keepdims=True)
    var = jnp.mean((y - mean) ** 2, axis=(0, 2, 3), keepdims=True)
    yn = (y - mean) * jax.lax.rsqrt(var + EPS)
    yn = yn * gamma.reshape(1, -1, 1, 1) + beta.reshape(1, -1, 1, 1)
    return jnp.maximum(yn, 0.0)


if __name__ == "__main__":
    key = jax.random.PRNGKey(0)
    k1, k2, k3, k4 = jax.random.split(key, 4)

    N, Cin, Cout, H, W = 2, 4, 8, 16, 16
    x = jax.random.normal(k1, (N, Cin, H, W), jnp.float32)

    # deterministic synthetic parameters (shapes from nn.Conv2d / nn.BatchNorm2d init)
    fan_in = Cin * KH * KW
    bound = (3.0 / fan_in) ** 0.5                      # kaiming-uniform-like bound
    w = jax.random.uniform(k2, (Cout, Cin, KH, KW), jnp.float32, -bound, bound)
    gamma = 1.0 + 0.1 * jax.random.normal(k3, (Cout,), jnp.float32)
    beta = 0.1 * jax.random.normal(k4, (Cout,), jnp.float32)

    out = jax.block_until_ready(conv2d_block(x, w, gamma, beta))
    assert out.shape == (N, Cout, H, W), out.shape

    ref = reference(x, w, gamma, beta)
    if not jnp.allclose(out, ref, rtol=2e-3, atol=2e-3):
        raise AssertionError(
            f"mismatch vs reference, max_err={jnp.max(jnp.abs(out - ref))}")

    print("KERNEL_OK")
</pallas_src>

<mosaic_0001>
module attributes {stable_mosaic.version = 11 : i64} {
  func.func @_conv_stats_kernel(%arg0: i32, %arg1: memref<1x18x18x4xf32, #tpu.memory_space<vmem>>, %arg2: memref<9x4x128xf32, #tpu.memory_space<vmem>>, %arg3: memref<1x256x128xf32, #tpu.memory_space<vmem>>, %arg4: memref<1x128xf32, #tpu.memory_space<vmem>>, %arg5: memref<1x128xf32, #tpu.memory_space<vmem>>) attributes {dimension_semantics = [#tpu.dimension_semantics<arbitrary>], iteration_bounds = array<i64: 2>, scalar_prefetch = 0 : i64, scratch_operands = 0 : i64, tpu.core_type = #tpu.core_type<tc>, window_params = [{transform_indices = @transform_0, window_bounds = array<i64: 1, 18, 18, 4>}, {pipeline_mode = #tpu.pipeline_mode<synchronous>, transform_indices = @transform_1, window_bounds = array<i64: 9, 4, 128>}, {transform_indices = @transform_2, window_bounds = array<i64: 1, 256, 128>}, {pipeline_mode = #tpu.pipeline_mode<synchronous>, transform_indices = @transform_3, window_bounds = array<i64: 1, 128>}, {pipeline_mode = #tpu.pipeline_mode<synchronous>, transform_indices = @transform_4, window_bounds = array<i64: 1, 128>}]} {
    %c0 = arith.constant 0 : index
    %c0_0 = arith.constant 0 : index
    %c0_1 = arith.constant 0 : index
    %c0_2 = arith.constant 0 : index
    %0 = vector.load %arg1[%c0, %c0_0, %c0_1, %c0_2] : memref<1x18x18x4xf32, #tpu.memory_space<vmem>>, vector<1x18x18x4xf32>
    %1 = vector.shape_cast %0 : vector<1x18x18x4xf32> to vector<18x18x4xf32>
    %cst = arith.constant 0.000000e+00 : f32
    %2 = vector.broadcast %cst : f32 to vector<256x128xf32>
    %3 = vector.extract_strided_slice %1 {offsets = [0, 0, 0], sizes = [16, 16, 4], strides = [1, 1, 1]} : vector<18x18x4xf32> to vector<16x16x4xf32>
    %4 = vector.shape_cast %3 : vector<16x16x4xf32> to vector<256x4xf32>
    %c0_3 = arith.constant 0 : index
    %c0_4 = arith.constant 0 : index
    %c0_5 = arith.constant 0 : index
    %5 = vector.load %arg2[%c0_3, %c0_4, %c0_5] : memref<9x4x128xf32, #tpu.memory_space<vmem>>, vector<1x4x128xf32>
    %6 = vector.shape_cast %5 : vector<1x4x128xf32> to vector<4x128xf32>
    %cst_6 = arith.constant dense<0.000000e+00> : vector<256x128xf32>
    %7 = tpu.matmul %4, %6, %cst_6 {dimension_numbers = #tpu.dot_dimension_numbers<[1], [0], [0], [1], [0, 0, 1, 1], [], []>} : vector<256x4xf32>, vector<4x128xf32>, vector<256x128xf32> -> vector<256x128xf32>
    %8 = arith.addf %2, %7 : vector<256x128xf32>
    %9 = vector.extract_strided_slice %1 {offsets = [0, 1, 0], sizes = [16, 16, 4], strides = [1, 1, 1]} : vector<18x18x4xf32> to vector<16x16x4xf32>
    %10 = vector.shape_cast %9 : vector<16x16x4xf32> to vector<256x4xf32>
    %c1 = arith.constant 1 : index
    %c0_7 = arith.constant 0 : index
    %c0_8 = arith.constant 0 : index
    %11 = vector.load %arg2[%c1, %c0_7, %c0_8] : memref<9x4x128xf32, #tpu.memory_space<vmem>>, vector<1x4x128xf32>
    %12 = vector.shape_cast %11 : vector<1x4x128xf32> to vector<4x128xf32>
    %cst_9 = arith.constant dense<0.000000e+00> : vector<256x128xf32>
    %13 = tpu.matmul %10, %12, %cst_9 {dimension_numbers = #tpu.dot_dimension_numbers<[1], [0], [0], [1], [0, 0, 1, 1], [], []>} : vector<256x4xf32>, vector<4x128xf32>, vector<256x128xf32> -> vector<256x128xf32>
    %14 = arith.addf %8, %13 : vector<256x128xf32>
    %15 = vector.extract_strided_slice %1 {offsets = [0, 2, 0], sizes = [16, 16, 4], strides = [1, 1, 1]} : vector<18x18x4xf32> to vector<16x16x4xf32>
    %16 = vector.shape_cast %15 : vector<16x16x4xf32> to vector<256x4xf32>
    %c2 = arith.constant 2 : index
    %c0_10 = arith.constant 0 : index
    %c0_11 = arith.constant 0 : index
    %17 = vector.load %arg2[%c2, %c0_10, %c0_11] : memref<9x4x128xf32, #tpu.memory_space<vmem>>, vector<1x4x128xf32>
    %18 = vector.shape_cast %17 : vector<1x4x128xf32> to vector<4x128xf32>
    %cst_12 = arith.constant dense<0.000000e+00> : vector<256x128xf32>
    %19 = tpu.matmul %16, %18, %cst_12 {dimension_numbers = #tpu.dot_dimension_numbers<[1], [0], [0], [1], [0, 0, 1, 1], [], []>} : vector<256x4xf32>, vector<4x128xf32>, vector<256x128xf32> -> vector<256x128xf32>
    %20 = arith.addf %14, %19 : vector<256x128xf32>
    %21 = vector.extract_strided_slice %1 {offsets = [1, 0, 0], sizes = [16, 16, 4], strides = [1, 1, 1]} : vector<18x18x4xf32> to vector<16x16x4xf32>
    %22 = vector.shape_cast %21 : vector<16x16x4xf32> to vector<256x4xf32>
    %c3 = arith.constant 3 : index
    %c0_13 = arith.constant 0 : index
    %c0_14 = arith.constant 0 : index
    %23 = vector.load %arg2[%c3, %c0_13, %c0_14] : memref<9x4x128xf32, #tpu.memory_space<vmem>>, vector<1x4x128xf32>
    %24 = vector.shape_cast %23 : vector<1x4x128xf32> to vector<4x128xf32>
    %cst_15 = arith.constant dense<0.000000e+00> : vector<256x128xf32>
    %25 = tpu.matmul %22, %24, %cst_15 {dimension_numbers = #tpu.dot_dimension_numbers<[1], [0], [0], [1], [0, 0, 1, 1], [], []>} : vector<256x4xf32>, vector<4x128xf32>, vector<256x128xf32> -> vector<256x128xf32>
    %26 = arith.addf %20, %25 : vector<256x128xf32>
    %27 = vector.extract_strided_slice %1 {offsets = [1, 1, 0], sizes = [16, 16, 4], strides = [1, 1, 1]} : vector<18x18x4xf32> to vector<16x16x4xf32>
    %28 = vector.shape_cast %27 : vector<16x16x4xf32> to vector<256x4xf32>
    %c4 = arith.constant 4 : index
    %c0_16 = arith.constant 0 : index
    %c0_17 = arith.constant 0 : index
    %29 = vector.load %arg2[%c4, %c0_16, %c0_17] : memref<9x4x128xf32, #tpu.memory_space<vmem>>, vector<1x4x128xf32>
    %30 = vector.shape_cast %29 : vector<1x4x128xf32> to vector<4x128xf32>
    %cst_18 = arith.constant dense<0.000000e+00> : vector<256x128xf32>
    %31 = tpu.matmul %28, %30, %cst_18 {dimension_numbers = #tpu.dot_dimension_numbers<[1], [0], [0], [1], [0, 0, 1, 1], [], []>} : vector<256x4xf32>, vector<4x128xf32>, vector<256x128xf32> -> vector<256x128xf32>
    %32 = arith.addf %26, %31 : vector<256x128xf32>
    %33 = vector.extract_strided_slice %1 {offsets = [1, 2, 0], sizes = [16, 16, 4], strides = [1, 1, 1]} : vector<18x18x4xf32> to vector<16x16x4xf32>
    %34 = vector.shape_cast %33 : vector<16x16x4xf32> to vector<256x4xf32>
    %c5 = arith.constant 5 : index
    %c0_19 = arith.constant 0 : index
    %c0_20 = arith.constant 0 : index
    %35 = vector.load %arg2[%c5, %c0_19, %c0_20] : memref<9x4x128xf32, #tpu.memory_space<vmem>>, vector<1x4x128xf32>
    %36 = vector.shape_cast %35 : vector<1x4x128xf32> to vector<4x128xf32>
    %cst_21 = arith.constant dense<0.000000e+00> : vector<256x128xf32>
    %37 = tpu.matmul %34, %36, %cst_21 {dimension_numbers = #tpu.dot_dimension_numbers<[1], [0], [0], [1], [0, 0, 1, 1], [], []>} : vector<256x4xf32>, vector<4x128xf32>, vector<256x128xf32> -> vector<256x128xf32>
    %38 = arith.addf %32, %37 : vector<256x128xf32>
    %39 = vector.extract_strided_slice %1 {offsets = [2, 0, 0], sizes = [16, 16, 4], strides = [1, 1, 1]} : vector<18x18x4xf32> to vector<16x16x4xf32>
    %40 = vector.shape_cast %39 : vector<16x16x4xf32> to vector<256x4xf32>
    %c6 = arith.constant 6 : index
    %c0_22 = arith.constant 0 : index
    %c0_23 = arith.constant 0 : index
    %41 = vector.load %arg2[%c6, %c0_22, %c0_23] : memref<9x4x128xf32, #tpu.memory_space<vmem>>, vector<1x4x128xf32>
    %42 = vector.shape_cast %41 : vector<1x4x128xf32> to vector<4x128xf32>
    %cst_24 = arith.constant dense<0.000000e+00> : vector<256x128xf32>
    %43 = tpu.matmul %40, %42, %cst_24 {dimension_numbers = #tpu.dot_dimension_numbers<[1], [0], [0], [1], [0, 0, 1, 1], [], []>} : vector<256x4xf32>, vector<4x128xf32>, vector<256x128xf32> -> vector<256x128xf32>
    %44 = arith.addf %38, %43 : vector<256x128xf32>
    %45 = vector.extract_strided_slice %1 {offsets = [2, 1, 0], sizes = [16, 16, 4], strides = [1, 1, 1]} : vector<18x18x4xf32> to vector<16x16x4xf32>
    %46 = vector.shape_cast %45 : vector<16x16x4xf32> to vector<256x4xf32>
    %c7 = arith.constant 7 : index
    %c0_25 = arith.constant 0 : index
    %c0_26 = arith.constant 0 : index
    %47 = vector.load %arg2[%c7, %c0_25, %c0_26] : memref<9x4x128xf32, #tpu.memory_space<vmem>>, vector<1x4x128xf32>
    %48 = vector.shape_cast %47 : vector<1x4x128xf32> to vector<4x128xf32>
    %cst_27 = arith.constant dense<0.000000e+00> : vector<256x128xf32>
    %49 = tpu.matmul %46, %48, %cst_27 {dimension_numbers = #tpu.dot_dimension_numbers<[1], [0], [0], [1], [0, 0, 1, 1], [], []>} : vector<256x4xf32>, vector<4x128xf32>, vector<256x128xf32> -> vector<256x128xf32>
    %50 = arith.addf %44, %49 : vector<256x128xf32>
    %51 = vector.extract_strided_slice %1 {offsets = [2, 2, 0], sizes = [16, 16, 4], strides = [1, 1, 1]} : vector<18x18x4xf32> to vector<16x16x4xf32>
    %52 = vector.shape_cast %51 : vector<16x16x4xf32> to vector<256x4xf32>
    %c8 = arith.constant 8 : index
    %c0_28 = arith.constant 0 : index
    %c0_29 = arith.constant 0 : index
    %53 = vector.load %arg2[%c8, %c0_28, %c0_29] : memref<9x4x128xf32, #tpu.memory_space<vmem>>, vector<1x4x128xf32>
    %54 = vector.shape_cast %53 : vector<1x4x128xf32> to vector<4x128xf32>
    %cst_30 = arith.constant dense<0.000000e+00> : vector<256x128xf32>
    %55 = tpu.matmul %52, %54, %cst_30 {dimension_numbers = #tpu.dot_dimension_numbers<[1], [0], [0], [1], [0, 0, 1, 1], [], []>} : vector<256x4xf32>, vector<4x128xf32>, vector<256x128xf32> -> vector<256x128xf32>
    %56 = arith.addf %50, %55 : vector<256x128xf32>
    %c0_31 = arith.constant 0 : index
    %c0_32 = arith.constant 0 : index
    %c0_33 = arith.constant 0 : index
    %57 = vector.load %arg3[%c0_31, %c0_32, %c0_33] : memref<1x256x128xf32, #tpu.memory_space<vmem>>, vector<1x256x128xf32>
    %58 = vector.shape_cast %57 : vector<1x256x128xf32> to vector<256x128xf32>
    %59 = vector.shape_cast %56 : vector<256x128xf32> to vector<1x256x128xf32>
    tpu.vector_store %arg3[%c0_31, %c0_32, %c0_33], %59 {strides = array<i32>} : memref<1x256x128xf32, #tpu.memory_space<vmem>>, vector<1x256x128xf32>,
    %cst_34 = arith.constant dense<0.000000e+00> : vector<128xf32>
    %60 = vector.multi_reduction <add>, %56, %cst_34 [0] : vector<256x128xf32> to vector<128xf32>
    %61 = vector.shape_cast %60 : vector<128xf32> to vector<1x128xf32>
    %62 = arith.mulf %56, %56 : vector<256x128xf32>
    %cst_35 = arith.constant dense<0.000000e+00> : vector<128xf32>
    %63 = vector.multi_reduction <add>, %62, %cst_35 [0] : vector<256x128xf32> to vector<128xf32>
    %64 = vector.shape_cast %63 : vector<128xf32> to vector<1x128xf32>
    %c0_i32 = arith.constant 0 : i32
    %65 = arith.cmpi eq, %arg0, %c0_i32 : i32
    %66 = arith.extui %65 : i1 to i32
    %c0_i32_36 = arith.constant 0 : i32
    %67 = arith.cmpi ne, %66, %c0_i32_36 : i32
    scf.if %67 {
      %cst_45 = arith.constant 0.000000e+00 : f32
      %74 = vector.broadcast %cst_45 : f32 to vector<1x128xf32>
      %c0_46 = arith.constant 0 : index
      %c0_47 = arith.constant 0 : index
      %75 = vector.load %arg4[%c0_46, %c0_47] : memref<1x128xf32, #tpu.memory_space<vmem>>, vector<1x128xf32>
      tpu.vector_store %arg4[%c0_46, %c0_47], %74 {strides = array<i32>} : memref<1x128xf32, #tpu.memory_space<vmem>>, vector<1x128xf32>,
      %cst_48 = arith.constant 0.000000e+00 : f32
      %76 = vector.broadcast %cst_48 : f32 to vector<1x128xf32>
      %c0_49 = arith.constant 0 : index
      %c0_50 = arith.constant 0 : index
      %77 = vector.load %arg5[%c0_49, %c0_50] : memref<1x128xf32, #tpu.memory_space<vmem>>, vector<1x128xf32>
      tpu.vector_store %arg5[%c0_49, %c0_50], %76 {strides = array<i32>} : memref<1x128xf32, #tpu.memory_space<vmem>>, vector<1x128xf32>,
    } else {
    }
    %c0_37 = arith.constant 0 : index
    %c0_38 = arith.constant 0 : index
    %68 = vector.load %arg4[%c0_37, %c0_38] : memref<1x128xf32, #tpu.memory_space<vmem>>, vector<1x128xf32>
    %69 = arith.addf %68, %61 : vector<1x128xf32>
    %c0_39 = arith.constant 0 : index
    %c0_40 = arith.constant 0 : index
    %70 = vector.load %arg4[%c0_39, %c0_40] : memref<1x128xf32, #tpu.memory_space<vmem>>, vector<1x128xf32>
    tpu.vector_store %arg4[%c0_39, %c0_40], %69 {strides = array<i32>} : memref<1x128xf32, #tpu.memory_space<vmem>>, vector<1x128xf32>,
    %c0_41 = arith.constant 0 : index
    %c0_42 = arith.constant 0 : index
    %71 = vector.load %arg5[%c0_41, %c0_42] : memref<1x128xf32, #tpu.memory_space<vmem>>, vector<1x128xf32>
    %72 = arith.addf %71, %64 : vector<1x128xf32>
    %c0_43 = arith.constant 0 : index
    %c0_44 = arith.constant 0 : index
    %73 = vector.load %arg5[%c0_43, %c0_44] : memref<1x128xf32, #tpu.memory_space<vmem>>, vector<1x128xf32>
    tpu.vector_store %arg5[%c0_43, %c0_44], %72 {strides = array<i32>} : memref<1x128xf32, #tpu.memory_space<vmem>>, vector<1x128xf32>,
    return
  }
  func.func @transform_0(%arg0: i32) -> (i32, i32, i32, i32) {
    %c0_i32 = arith.constant 0 : i32
    %c0_i32_0 = arith.constant 0 : i32
    %c0_i32_1 = arith.constant 0 : i32
    %c0_i32_2 = arith.constant 0 : i32
    return %arg0, %c0_i32, %c0_i32_0, %c0_i32_1 : i32, i32, i32, i32
  }
  func.func @transform_1(%arg0: i32) -> (i32, i32, i32) {
    %c0_i32 = arith.constant 0 : i32
    %c0_i32_0 = arith.constant 0 : i32
    %c0_i32_1 = arith.constant 0 : i32
    %c0_i32_2 = arith.constant 0 : i32
    return %c0_i32, %c0_i32_0, %c0_i32_1 : i32, i32, i32
  }
  func.func @transform_2(%arg0: i32) -> (i32, i32, i32) {
    %c0_i32 = arith.constant 0 : i32
    %c0_i32_0 = arith.constant 0 : i32
    %c0_i32_1 = arith.constant 0 : i32
    return %arg0, %c0_i32, %c0_i32_0 : i32, i32, i32
  }
  func.func @transform_3(%arg0: i32) -> (i32, i32) {
    %c0_i32 = arith.constant 0 : i32
    %c0_i32_0 = arith.constant 0 : i32
    %c0_i32_1 = arith.constant 0 : i32
    return %c0_i32, %c0_i32_0 : i32, i32
  }
  func.func @transform_4(%arg0: i32) -> (i32, i32) {
    %c0_i32 = arith.constant 0 : i32
    %c0_i32_0 = arith.constant 0 : i32
    %c0_i32_1 = arith.constant 0 : i32
    return %c0_i32, %c0_i32_0 : i32, i32
  }
}

</mosaic_0001>

<llo_original>
// kernel: tpu_custom_call.1
$region0: #{tpu_custom_call.1}
  #allocation0 [shape = 'u32[]', space=smem, size = 0x4, offset = 0x4, fixed_abs, tag = 'smem constant byte address 0x4 - core index']
  #allocation1 [shape = 'u32[144,128]{1,0:T(1,128)}', space=vmem, size = 0x12000, scoped, tag = 'internal scratch']
  %s0 = inlined_call_operand.vmem [shape: f32[2,18,18,4], index: 0, kind: input, shape index: {}]
  %s1 = inlined_call_operand.vmem [shape: f32[9,4,128], index: 1, kind: input, shape index: {}]
  %s2 = inlined_call_operand.hbm [shape: f32[2,256,128], index: 2, kind: output, shape index: {0}]
  %s3 = inlined_call_operand.hbm [shape: f32[1,128], index: 3, kind: output, shape index: {1}]
  %s4 = inlined_call_operand.hbm [shape: f32[1,128], index: 4, kind: output, shape index: {2}]
  %5 = xla_tuple %s2, %s3, %s4
  %s6 = sld [smem:[#allocation0]]
  $region61: #{tpu_custom_call.1} parent=0
    _
  %s8 = ssub.s32 1, %s6
  %s9 = scalar_select 0, %s8, %s6
  $region1: #{tpu_custom_call.1} parent=0
    #allocation2 [shape = 'u8[262144]{0}', space=vmem, size = 0x40000, scoped, tag = 'output window, operand 0']
    #allocation3 [shape = 's32[2]{0}', space=sflag, size = 0x8, scoped, tag = 'scoped memory for tpu_custom_call.1']
    #allocation4 [shape = 'u8[512]{0}', space=vmem, size = 0x400, scoped, tag = 'output window, operand 1, single buffered']
    #allocation5 [shape = 's32[1]{0}', space=sflag, size = 0x4, scoped, tag = 'scoped memory for tpu_custom_call.1']
    #allocation6 [shape = 'u8[512]{0}', space=vmem, size = 0x400, scoped, tag = 'output window, operand 2, single buffered']
    %10 = vsyncpa [#allocation3], 0
    %s11 = scalar_lea.sflag [#allocation3], 1
    %12 = vsyncpa %s11, 0
    %13 = vsyncpa [#allocation5], 0
    loop: start=0, step=1, limit=4
    $region2: #{tpu_custom_call.1} parent=1 // loop_pre_header
      _
    $region3: #{tpu_custom_call.1} parent=1 // loop_header
      %s15 = sphi 0, %s19
      %p16 = scmp.ge.s32.totalorder %s15, 4
      %s25 = sphi 0, %s27
      %s28 = sphi 0, %s25
      %s29 = sphi 0, %s28
      %s45 = sphi 0, %s29
      %s49 = sphi 0, %s49
      %s51 = sphi 0, %s49
      %s52 = sphi 0, %s51
      %s66 = sphi 0, %s52
      %s72 = sphi 0, %s74
      %s75 = sphi 0, %s72
      %s76 = sphi 0, %s75
      %s92 = sphi 0, %s76
      %s96 = sphi 0, %s96
      %s98 = sphi 0, %s96
      %s99 = sphi 0, %s98
      %s113 = sphi 0, %s99
      %s117 = sphi 0, %s117
      %s119 = sphi 0, %s117
      %s120 = sphi 0, %s119
      %s134 = sphi 0, %s120
    $region4: #{tpu_custom_call.1} parent=1 // loop_header_branch
      %18 = sbr.rel (%p16) target = $region8
    $region5: #{tpu_custom_call.1} parent=1 // loop_body
      %s20 = ssub.s32 %s15, 1
      %s21 = ssub.s32 %s15, 2
      %s22 = sadd.s32 %s15, 1
      %s23 = ssub.s32 %s15, %s22
      %p24 = scmp.eq.s32.totalorder %s23, 0
      %s26 = sadd.s32 %s25, 1
      %s27 = scalar_select %p24, %s25, %s26
      %p30 = pneg %p24
      %p31 = scmp.eq.s32.totalorder %s15, 1
      %p32 = por %p30, %p31
      %p33 = scmp.ne.s32.totalorder %s25, %s28
      %p34 = scmp.eq.s32.totalorder %s15, 0
      %p35 = por %p33, %p34
      %p36 = scmp.ne.s32.totalorder %s25, %s28
      %p37 = scmp.eq.s32.totalorder %s20, 1
      %p38 = por %p36, %p37
      %p39 = scmp.ne.s32.totalorder %s28, %s29
      %p40 = scmp.eq.s32.totalorder %s20, 0
      %p41 = por %p39, %p40
      %p42 = scmp.ne.s32.totalorder %s28, %s29
      %p43 = scmp.eq.s32.totalorder %s21, 1
      %p44 = por %p42, %p43
      %p46 = scmp.ne.s32.totalorder %s29, %s45
      %p47 = scmp.eq.s32.totalorder %s21, 0
      %p48 = por %p46, %p47
      %s50 = sadd.s32 %s49, 1
      %p53 = scmp.eq.s32.totalorder %s15, 1
      %p54 = scmp.ne.s32.totalorder %s49, %s51
      %p55 = scmp.eq.s32.totalorder %s15, 0
      %p56 = por %p54, %p55
      %p57 = scmp.ne.s32.totalorder %s49, %s51
      %p58 = scmp.eq.s32.totalorder %s20, 1
      %p59 = por %p57, %p58
      %p60 = scmp.ne.s32.totalorder %s51, %s52
      %p61 = scmp.eq.s32.totalorder %s20, 0
      %p62 = por %p60, %p61
      %p63 = scmp.ne.s32.totalorder %s51, %s52
      %p64 = scmp.eq.s32.totalorder %s21, 1
      %p65 = por %p63, %p64
      %p67 = scmp.ne.s32.totalorder %s52, %s66
      %p68 = scmp.eq.s32.totalorder %s21, 0
      %p69 = por %p67, %p68
      %s70 = ssub.s32 %s15, %s22
      %p71 = scmp.eq.s32.totalorder %s70, 0
      %s73 = sadd.s32 %s72, 1
      %s74 = scalar_select %p71, %s72, %s73
      %p77 = pneg %p71
      %p78 = scmp.eq.s32.totalorder %s15, 1
      %p79 = por %p77, %p78
      %p80 = scmp.ne.s32.totalorder %s72, %s75
      %p81 = scmp.eq.s32.totalorder %s15, 0
      %p82 = por %p80, %p81
      %p83 = scmp.ne.s32.totalorder %s72, %s75
      %p84 = scmp.eq.s32.totalorder %s20, 1
      %p85 = por %p83, %p84
      %p86 = scmp.ne.s32.totalorder %s75, %s76
      %p87 = scmp.eq.s32.totalorder %s20, 0
      %p88 = por %p86, %p87
      %p89 = scmp.ne.s32.totalorder %s75, %s76
      %p90 = scmp.eq.s32.totalorder %s21, 1
      %p91 = por %p89, %p90
      %p93 = scmp.ne.s32.totalorder %s76, %s92
      %p94 = scmp.eq.s32.totalorder %s21, 0
      %p95 = por %p93, %p94
      %s97 = sadd.s32 %s96, 1
      %p100 = scmp.eq.s32.totalorder %s15, 1
      %p101 = scmp.ne.s32.totalorder %s96, %s98
      %p102 = scmp.eq.s32.totalorder %s15, 0
      %p103 = por %p101, %p102
      %p104 = scmp.ne.s32.totalorder %s96, %s98
      %p105 = scmp.eq.s32.totalorder %s20, 1
      %p106 = por %p104, %p105
      %p107 = scmp.ne.s32.totalorder %s98, %s99
      %p108 = scmp.eq.s32.totalorder %s20, 0
      %p109 = por %p107, %p108
      %p110 = scmp.ne.s32.totalorder %s98, %s99
      %p111 = scmp.eq.s32.totalorder %s21, 1
      %p112 = por %p110, %p111
      %p114 = scmp.ne.s32.totalorder %s99, %s113
      %p115 = scmp.eq.s32.totalorder %s21, 0
      %p116 = por %p114, %p115
      %s118 = sadd.s32 %s117, 1
      %p121 = scmp.eq.s32.totalorder %s15, 1
      %p122 = scmp.ne.s32.totalorder %s117, %s119
      %p123 = scmp.eq.s32.totalorder %s15, 0
      %p124 = por %p122, %p123
      %p125 = scmp.ne.s32.totalorder %s117, %s119
      %p126 = scmp.eq.s32.totalorder %s20, 1
      %p127 = por %p125, %p126
      %p128 = scmp.ne.s32.totalorder %s119, %s120
      %p129 = scmp.eq.s32.totalorder %s20, 0
      %p130 = por %p128, %p129
      %p131 = scmp.ne.s32.totalorder %s119, %s120
      %p132 = scmp.eq.s32.totalorder %s21, 1
      %p133 = por %p131, %p132
      %p135 = scmp.ne.s32.totalorder %s120, %s134
      %p136 = scmp.eq.s32.totalorder %s21, 0
      %p137 = por %p135, %p136
      %p138 = scmp.le.s32.totalorder 1, %s15
      %p139 = scmp.lt.s32.totalorder %s15, 3
      %p140 = pnand %p138, %p139
      %p141 = pneg %p140
      // Predicated region
      $region9: #{tpu_custom_call.1} parent=5 // pred_check
        _
      $region10: #{tpu_custom_call.1} parent=5 // pred_check_branch
        %143 = sbr.rel (%p140) target = $region12
      $region11: #{tpu_custom_call.1} parent=5 // pred_region
        %s144 = ssub.s32 %s15, 1
        // Predicated region
        $region13: #{tpu_custom_call.1} parent=11 // pred_check
          %p145 = pneg %p62
        $region14: #{tpu_custom_call.1} parent=11 // pred_check_branch
          %147 = sbr.rel (%p145) target = $region16
        $region15: #{tpu_custom_call.1} parent=11 // pred_region
          _
        $region16: #{tpu_custom_call.1} parent=11 // pred_fallthru
          _
      $region12: #{tpu_custom_call.1} parent=5 // pred_fallthru
        _
      %p148 = scmp.lt.s32.totalorder %s15, 2
      // Predicated region
      $region17: #{tpu_custom_call.1} parent=5 // pred_check
        %p149 = pneg %p148
      $region18: #{tpu_custom_call.1} parent=5 // pred_check_branch
        %151 = sbr.rel (%p149) target = $region20
      $region19: #{tpu_custom_call.1} parent=5 // pred_region
        // Predicated region
        $region21: #{tpu_custom_call.1} parent=19 // pred_check
          %p152 = pneg %p35
        $region22: #{tpu_custom_call.1} parent=19 // pred_check_branch
          %154 = sbr.rel (%p152) target = $region24
        $region23: #{tpu_custom_call.1} parent=19 // pred_region
          %p155 = scmp.lt.s32.totalorder %s15, 1
          %s156 = scalar_select %p155, %s15, 1
          %s157 = smul.addr %s156, 54
          %s158 = smul.addr %s157, 8
          %s159 = scalar_lea.vmem %s0, %s158
        $region24: #{tpu_custom_call.1} parent=19 // pred_fallthru
          _
      $region20: #{tpu_custom_call.1} parent=5 // pred_fallthru
        _
      %p160 = scmp.le.s32.totalorder 1, %s15
      %p161 = scmp.lt.s32.totalorder %s15, 3
      %p162 = pnand %p160, %p161
      %p163 = pneg %p162
      // Predicated region
      $region25: #{tpu_custom_call.1} parent=5 // pred_check
        _
      $region26: #{tpu_custom_call.1} parent=5 // pred_check_branch
        %165 = sbr.rel (%p162) target = $region28
      $region27: #{tpu_custom_call.1} parent=5 // pred_region
        %s166 = ssub.s32 %s15, 1
        %p167 = scmp.lt.s32.totalorder %s20, 1
        %s168 = scalar_select %p167, %s20, 1
        %s169 = smul.addr %s168, 54
        %s170 = smul.addr %s169, 8
        %s171 = scalar_lea.vmem %s0, %s170
        %p172 = pneg %p41
        %p173 = pneg %p38
        %p174 = pneg %p62
        %p175 = pneg %p59
        %p176 = pneg %p88
        %p177 = pneg %p85
        %s178 = sand.u32 %s75, 1
        %s179 = scalar_lea.sflag [#allocation3], %s178
        %s180 = sand.u32 %s75, 1
        %s181 = smul.addr %s180, 256
        %s182 = scalar_lea.vmem [#allocation2], %s181
        %p183 = pneg %p109
        %p184 = pneg %p106
        %p185 = pneg %p130
        %p186 = pneg %p127
        %p187 = scmp.lt.s32.totalorder %s20, 1
        %s188 = scalar_select %p187, %s20, 1
        %s189 = smul.addr %s188, 54
        %s190 = smul.addr %s189, 8
        %s191 = scalar_lea.vmem %s0, %s190
        %v192 = vld [vmem:[%s191] sm:$0xff]
        %v193 = vld [vmem:[%s191 + $0x8] sm:$0xff]
        %v194 = vld [vmem:[%s191 + $0x10] sm:$0x3]
        %v195 = vld [vmem:[%s191 + $0x18] sm:$0xff]
        %v196 = vld [vmem:[%s191 + $0x20] sm:$0xff]
        %v197 = vld [vmem:[%s191 + $0x28] sm:$0x3]
        %v198 = vld [vmem:[%s191 + $0x30] sm:$0xff]
        %v199 = vld [vmem:[%s191 + $0x38] sm:$0xff]
        %v200 = vld [vmem:[%s191 + $0x40] sm:$0x3]
        %v201 = vld [vmem:[%s191 + $0x48] sm:$0xff]
        %v202 = vld [vmem:[%s191 + $0x50] sm:$0xff]
        %v203 = vld [vmem:[%s191 + $0x58] sm:$0x3]
        %v204 = vld [vmem:[%s191 + $0x60] sm:$0xff]
        %v205 = vld [vmem:[%s191 + $0x68] sm:$0xff]
        %v206 = vld [vmem:[%s191 + $0x70] sm:$0x3]
        %v207 = vld [vmem:[%s191 + $0x78] sm:$0xff]
        %v208 = vld [vmem:[%s191 + $0x80] sm:$0xff]
        %v209 = vld [vmem:[%s191 + $0x88] sm:$0x3]
        %v210 = vld [vmem:[%s191 + $0x90] sm:$0xff]
        %v211 = vld [vmem:[%s191 + $0x98] sm:$0xff]
        %v212 = vld [vmem:[%s191 + $0xa0] sm:$0x3]
        %v213 = vld [vmem:[%s191 + $0xa8] sm:$0xff]
        %v214 = vld [vmem:[%s191 + $0xb0] sm:$0xff]
        %v215 = vld [vmem:[%s191 + $0xb8] sm:$0x3]
        %v216 = vld [vmem:[%s191 + $0xc0] sm:$0xff]
        %v217 = vld [vmem:[%s191 + $0xc8] sm:$0xff]
        %v218 = vld [vmem:[%s191 + $0xd0] sm:$0x3]
        %v219 = vld [vmem:[%s191 + $0xd8] sm:$0xff]
        %v220 = vld [vmem:[%s191 + $0xe0] sm:$0xff]
        %v221 = vld [vmem:[%s191 + $0xe8] sm:$0x3]
        %v222 = vld [vmem:[%s191 + $0xf0] sm:$0xff]
        %v223 = vld [vmem:[%s191 + $0xf8] sm:$0xff]
        %v224 = vld [vmem:[%s191 + $0x100] sm:$0x3]
        %v225 = vld [vmem:[%s191 + $0x108] sm:$0xff]
        %v226 = vld [vmem:[%s191 + $0x110] sm:$0xff]
        %v227 = vld [vmem:[%s191 + $0x118] sm:$0x3]
        %v228 = vld [vmem:[%s191 + $0x120] sm:$0xff]
        %v229 = vld [vmem:[%s191 + $0x128] sm:$0xff]
        %v230 = vld [vmem:[%s191 + $0x130] sm:$0x3]
        %v231 = vld [vmem:[%s191 + $0x138] sm:$0xff]
        %v232 = vld [vmem:[%s191 + $0x140] sm:$0xff]
        %v233 = vld [vmem:[%s191 + $0x148] sm:$0x3]
        %v234 = vld [vmem:[%s191 + $0x150] sm:$0xff]
        %v235 = vld [vmem:[%s191 + $0x158] sm:$0xff]
        %v236 = vld [vmem:[%s191 + $0x160] sm:$0x3]
        %v237 = vld [vmem:[%s191 + $0x168] sm:$0xff]
        %v238 = vld [vmem:[%s191 + $0x170] sm:$0xff]
        %v239 = vld [vmem:[%s191 + $0x178] sm:$0x3]
        %v240 = vld [vmem:[%s191 + $0x180] sm:$0xff]
        %v241 = vld [vmem:[%s191 + $0x188] sm:$0xff]
        %v242 = vld [vmem:[%s191 + $0x190] sm:$0x3]
        %v243 = vld [vmem:[%s191 + $0x198] sm:$0xff]
        %v244 = vld [vmem:[%s191 + $0x1a0] sm:$0xff]
        %v245 = vld [vmem:[%s191 + $0x1a8] sm:$0x3]
        %v246 = vld [vmem:[%s1] sm:$0xf]
        %vm295 = vcmask 1046528
        %v296 = vrot.slane %v192, 1
        %v297 = vrot.slane %v193, 1
        %v298 = vsel %vm295, %v296, %v297
        %v299 = vrot.slane %v194, 1
        %v300 = vsel %vm295, %v297, %v299
        %v301 = vrot.slane %v195, 1
        %v302 = vrot.slane %v196, 1
        %v303 = vsel %vm295, %v301, %v302
        %v304 = vrot.slane %v197, 1
        %v305 = vsel %vm295, %v302, %v304
        %v306 = vrot.slane %v198, 1
        %v307 = vrot.slane %v199, 1
        %v308 = vsel %vm295, %v306, %v307
        %v309 = vrot.slane %v200, 1
        %v310 = vsel %vm295, %v307, %v309
        %v311 = vrot.slane %v201, 1
        %v312 = vrot.slane %v202, 1
        %v313 = vsel %vm295, %v311, %v312
        %v314 = vrot.slane %v203, 1
        %v315 = vsel %vm295, %v312, %v314
        %v316 = vrot.slane %v204, 1
        %v317 = vrot.slane %v205, 1
        %v318 = vsel %vm295, %v316, %v317
        %v319 = vrot.slane %v206, 1
        %v320 = vsel %vm295, %v317, %v319
        %v321 = vrot.slane %v207, 1
        %v322 = vrot.slane %v208, 1
        %v323 = vsel %vm295, %v321, %v322
        %v324 = vrot.slane %v209, 1
        %v325 = vsel %vm295, %v322, %v324
        %v326 = vrot.slane %v210, 1
        %v327 = vrot.slane %v211, 1
        %v328 = vsel %vm295, %v326, %v327
        %v329 = vrot.slane %v212, 1
        %v330 = vsel %vm295, %v327, %v329
        %v331 = vrot.slane %v213, 1
        %v332 = vrot.slane %v214, 1
        %v333 = vsel %vm295, %v331, %v332
        %v334 = vrot.slane %v215, 1
        %v335 = vsel %vm295, %v332, %v334
        %v336 = vrot.slane %v216, 1
        %v337 = vrot.slane %v217, 1
        %v338 = vsel %vm295, %v336, %v337
        %v339 = vrot.slane %v218, 1
        %v340 = vsel %vm295, %v337, %v339
        %v341 = vrot.slane %v219, 1
        %v342 = vrot.slane %v220, 1
        %v343 = vsel %vm295, %v341, %v342
        %v344 = vrot.slane %v221, 1
        %v345 = vsel %vm295, %v342, %v344
        %v346 = vrot.slane %v222, 1
        %v347 = vrot.slane %v223, 1
        %v348 = vsel %vm295, %v346, %v347
        %v349 = vrot.slane %v224, 1
        %v350 = vsel %vm295, %v347, %v349
        %v351 = vrot.slane %v225, 1
        %v352 = vrot.slane %v226, 1
        %v353 = vsel %vm295, %v351, %v352
        %v354 = vrot.slane %v227, 1
        %v355 = vsel %vm295, %v352, %v354
        %v356 = vrot.slane %v228, 1
        %v357 = vrot.slane %v229, 1
        %v358 = vsel %vm295, %v356, %v357
        %v359 = vrot.slane %v230, 1
        %v360 = vsel %vm295, %v357, %v359
        %v361 = vrot.slane %v231, 1
        %v362 = vrot.slane %v232, 1
        %v363 = vsel %vm295, %v361, %v362
        %v364 = vrot.slane %v233, 1
        %v365 = vsel %vm295, %v362, %v364
        %v366 = vrot.slane %v234, 1
        %v367 = vrot.slane %v235, 1
        %v368 = vsel %vm295, %v366, %v367
        %v369 = vrot.slane %v236, 1
        %v370 = vsel %vm295, %v367, %v369
        %v371 = vrot.slane %v237, 1
        %v372 = vrot.slane %v238, 1
        %v373 = vsel %vm295, %v371, %v372
        %v374 = vrot.slane %v239, 1
        %v375 = vsel %vm295, %v372, %v374
        %s376 = scalar_lea.vmem %s1, 4
        %v377 = vld [vmem:[%s376] sm:$0xf]
        %vm378 = vcmask 31744
        %v379 = vsel %vm378, %v298, 0
        %v381 = vsel %vm378, %v300, 0
        %v383 = vsel %vm378, %v303, 0
        %v385 = vsel %vm378, %v305, 0
        %v387 = vsel %vm378, %v308, 0
        %v389 = vsel %vm378, %v310, 0
        %v391 = vsel %vm378, %v313, 0
        %v393 = vsel %vm378, %v315, 0
        %v395 = vsel %vm378, %v318, 0
        %v397 = vsel %vm378, %v320, 0
        %v399 = vsel %vm378, %v323, 0
        %v401 = vsel %vm378, %v325, 0
        %v403 = vsel %vm378, %v328, 0
        %v405 = vsel %vm378, %v330, 0
        %v407 = vsel %vm378, %v333, 0
        %v409 = vsel %vm378, %v335, 0
        %v411 = vsel %vm378, %v338, 0
        %v413 = vsel %vm378, %v340, 0
        %v415 = vsel %vm378, %v343, 0
        %v417 = vsel %vm378, %v345, 0
        %v419 = vsel %vm378, %v348, 0
        %v421 = vsel %vm378, %v350, 0
        %v423 = vsel %vm378, %v353, 0
        %v425 = vsel %vm378, %v355, 0
        %v427 = vsel %vm378, %v358, 0
        %v429 = vsel %vm378, %v360, 0
        %v431 = vsel %vm378, %v363, 0
        %v433 = vsel %vm378, %v365, 0
        %v435 = vsel %vm378, %v368, 0
        %v437 = vsel %vm378, %v370, 0
        %v439 = vsel %vm378, %v373, 0
        %v441 = vsel %vm378, %v375, 0
        %vm443 = vcmask 1043456
        %v445 = vsel %vm443, %v377, 0
        %447 = vmatprep.subr.mxu0 0.0
        %448 = vmatpush1.msra.mxu0 0.0
        %449 = vmatprep.subr.mxu0 0.0
        %450 = vmatpush1.msra.mxu0 0.0
        %451 = vmatprep.subr.mxu0 0.0
        %452 = vmatpush1.msra.mxu0 0.0
        %453 = vmatprep.subr.mxu0 0.0
        %454 = vmatpush1.msra.mxu0 0.0
        %455 = vmatprep.subr.mxu0 0.0
        %456 = vmatpush1.msra.mxu0 0.0
        %457 = vmatprep.subr.mxu0 0.0
        %458 = vmatpush1.msra.mxu0 0.0
        %459 = vmatprep.subr.mxu0 0.0
        %460 = vmatpush1.msra.mxu0 0.0
        %461 = vmatprep.subr.mxu0 0.0
        %462 = vmatpush1.msra.mxu0 0.0
        %463 = vmatprep.subr.mxu0 0.0
        %464 = vmatpush1.msra.mxu0 0.0
        %465 = vmatprep.subr.mxu0 0.0
        %466 = vmatpush1.msra.mxu0 0.0
        %467 = vmatprep.subr.mxu0 0.0
        %468 = vmatpush1.msra.mxu0 0.0
        %469 = vmatprep.subr.mxu0 0.0
        %470 = vmatpush1.msra.mxu0 0.0
        %471 = vmatprep.subr.mxu0 0.0
        %472 = vmatpush1.msra.mxu0 0.0
        %473 = vmatprep.subr.mxu0 0.0
        %474 = vmatpush1.msra.mxu0 0.0
        %475 = vmatprep.subr.mxu0 0.0
        %476 = vmatpush1.msra.mxu0 0.0
        %477 = vmatprep.subr.mxu0 0.0
        %478 = vmatpush1.msra.mxu0 %v445
        %479 = vmatprep.subr.mxu0 0.0
        %480 = vmatpush2.msra.mxu0 0.0
        %481 = vmatprep.subr.mxu0 0.0
        %482 = vmatpush2.msra.mxu0 0.0
        %483 = vmatprep.subr.mxu0 0.0
        %484 = vmatpush2.msra.mxu0 0.0
        %485 = vmatprep.subr.mxu0 0.0
        %486 = vmatpush2.msra.mxu0 0.0
        %487 = vmatprep.subr.mxu0 0.0
        %488 = vmatpush2.msra.mxu0 0.0
        %489 = vmatprep.subr.mxu0 0.0
        %490 = vmatpush2.msra.mxu0 0.0
        %491 = vmatprep.subr.mxu0 0.0
        %492 = vmatpush2.msra.mxu0 0.0
        %493 = vmatprep.subr.mxu0 0.0
        %494 = vmatpush2.msra.mxu0 0.0
        %495 = vmatprep.subr.mxu0 0.0
        %496 = vmatpush2.msra.mxu0 0.0
        %497 = vmatprep.subr.mxu0 0.0
        %498 = vmatpush2.msra.mxu0 0.0
        %499 = vmatprep.subr.mxu0 0.0
        %500 = vmatpush2.msra.mxu0 0.0
        %501 = vmatprep.subr.mxu0 0.0
        %502 = vmatpush2.msra.mxu0 0.0
        %503 = vmatprep.subr.mxu0 0.0
        %504 = vmatpush2.msra.mxu0 0.0
        %505 = vmatprep.subr.mxu0 0.0
        %506 = vmatpush2.msra.mxu0 0.0
        %507 = vmatprep.subr.mxu0 0.0
        %508 = vmatpush2.msra.mxu0 0.0
        %509 = vmatprep.subr.mxu0 0.0
        %510 = vmatpush2.msra.mxu0 0.0
        %511 = vmatprep.mubr.f32.mxu0 0.0
        %512 = vmatmul.mubr.f32.gmra.mxu0 %v379
        %v513 = vpop.f32.mrf.mxu0
        %v514 = vadd.f32 0.0, %v513
        %v515 = vpop.f32.mrf.mxu0
        %516 = vmatprep.mubr.f32.mxu0 0.0
        %517 = vmatmul.mubr.f32.gmra.mxu0 %v381
        %v518 = vpop.f32.mrf.mxu0
        %v519 = vadd.f32 0.0, %v518
        %v520 = vpop.f32.mrf.mxu0
        %521 = vmatprep.mubr.f32.mxu0 0.0
        %522 = vmatmul.mubr.f32.gmra.mxu0 %v383
        %v523 = vpop.f32.mrf.mxu0
        %v524 = vadd.f32 0.0, %v523
        %v525 = vpop.f32.mrf.mxu0
        %526 = vmatprep.mubr.f32.mxu0 0.0
        %527 = vmatmul.mubr.f32.gmra.mxu0 %v385
        %v528 = vpop.f32.mrf.mxu0
        %v529 = vadd.f32 0.0, %v528
        %v530 = vpop.f32.mrf.mxu0
        %531 = vmatprep.mubr.f32.mxu0 0.0
        %532 = vmatmul.mubr.f32.gmra.mxu0 %v387
        %v533 = vpop.f32.mrf.mxu0
        %v534 = vadd.f32 0.0, %v533
        %v535 = vpop.f32.mrf.mxu0
        %536 = vmatprep.mubr.f32.mxu0 0.0
        %537 = vmatmul.mubr.f32.gmra.mxu0 %v389
        %v538 = vpop.f32.mrf.mxu0
        %v539 = vadd.f32 0.0, %v538
        %v540 = vpop.f32.mrf.mxu0
        %541 = vmatprep.mubr.f32.mxu0 0.0
        %542 = vmatmul.mubr.f32.gmra.mxu0 %v391
        %v543 = vpop.f32.mrf.mxu0
        %v544 = vadd.f32 0.0, %v543
        %v545 = vpop.f32.mrf.mxu0
        %546 = vmatprep.mubr.f32.mxu0 0.0
        %547 = vmatmul.mubr.f32.gmra.mxu0 %v393
        %v548 = vpop.f32.mrf.mxu0
        %v549 = vadd.f32 0.0, %v548
        %v550 = vpop.f32.mrf.mxu0
        %551 = vmatprep.mubr.f32.mxu0 0.0
        %552 = vmatmul.mubr.f32.gmra.mxu0 %v395
        %v553 = vpop.f32.mrf.mxu0
        %v554 = vadd.f32 0.0, %v553
        %v555 = vpop.f32.mrf.mxu0
        %556 = vmatprep.mubr.f32.mxu0 0.0
        %557 = vmatmul.mubr.f32.gmra.mxu0 %v397
        %v558 = vpop.f32.mrf.mxu0
        %v559 = vadd.f32 0.0, %v558
        %v560 = vpop.f32.mrf.mxu0
        %561 = vmatprep.mubr.f32.mxu0 0.0
        %562 = vmatmul.mubr.f32.gmra.mxu0 %v399
        %v563 = vpop.f32.mrf.mxu0
        %v564 = vadd.f32 0.0, %v563
        %v565 = vpop.f32.mrf.mxu0
        %566 = vmatprep.mubr.f32.mxu0 0.0
        %567 = vmatmul.mubr.f32.gmra.mxu0 %v401
        %v568 = vpop.f32.mrf.mxu0
        %v569 = vadd.f32 0.0, %v568
        %v570 = vpop.f32.mrf.mxu0
        %571 = vmatprep.mubr.f32.mxu0 0.0
        %572 = vmatmul.mubr.f32.gmra.mxu0 %v403
        %v573 = vpop.f32.mrf.mxu0
        %v574 = vadd.f32 0.0, %v573
        %v575 = vpop.f32.mrf.mxu0
        %576 = vmatprep.mubr.f32.mxu0 0.0
        %577 = vmatmul.mubr.f32.gmra.mxu0 %v405
        %v578 = vpop.f32.mrf.mxu0
        %v579 = vadd.f32 0.0, %v578
        %v580 = vpop.f32.mrf.mxu0
        %581 = vmatprep.mubr.f32.mxu0 0.0
        %582 = vmatmul.mubr.f32.gmra.mxu0 %v407
        %v583 = vpop.f32.mrf.mxu0
        %v584 = vadd.f32 0.0, %v583
        %v585 = vpop.f32.mrf.mxu0
        %586 = vmatprep.mubr.f32.mxu0 0.0
        %587 = vmatmul.mubr.f32.gmra.mxu0 %v409
        %v588 = vpop.f32.mrf.mxu0
        %v589 = vadd.f32 0.0, %v588
        %v590 = vpop.f32.mrf.mxu0
        %591 = vmatprep.mubr.f32.mxu0 0.0
        %592 = vmatmul.mubr.f32.gmra.mxu0 %v411
        %v593 = vpop.f32.mrf.mxu0
        %v594 = vadd.f32 0.0, %v593
        %v595 = vpop.f32.mrf.mxu0
        %596 = vmatprep.mubr.f32.mxu0 0.0
        %597 = vmatmul.mubr.f32.gmra.mxu0 %v413
        %v598 = vpop.f32.mrf.mxu0
        %v599 = vadd.f32 0.0, %v598
        %v600 = vpop.f32.mrf.mxu0
        %601 = vmatprep.mubr.f32.mxu0 0.0
        %602 = vmatmul.mubr.f32.gmra.mxu0 %v415
        %v603 = vpop.f32.mrf.mxu0
        %v604 = vadd.f32 0.0, %v603
        %v605 = vpop.f32.mrf.mxu0
        %606 = vmatprep.mubr.f32.mxu0 0.0
        %607 = vmatmul.mubr.f32.gmra.mxu0 %v417
        %v608 = vpop.f32.mrf.mxu0
        %v609 = vadd.f32 0.0, %v608
        %v610 = vpop.f32.mrf.mxu0
        %611 = vmatprep.mubr.f32.mxu0 0.0
        %612 = vmatmul.mubr.f32.gmra.mxu0 %v419
        %v613 = vpop.f32.mrf.mxu0
        %v614 = vadd.f32 0.0, %v613
        %v615 = vpop.f32.mrf.mxu0
        %616 = vmatprep.mubr.f32.mxu0 0.0
        %617 = vmatmul.mubr.f32.gmra.mxu0 %v421
        %v618 = vpop.f32.mrf.mxu0
        %v619 = vadd.f32 0.0, %v618
        %v620 = vpop.f32.mrf.mxu0
        %621 = vmatprep.mubr.f32.mxu0 0.0
        %622 = vmatmul.mubr.f32.gmra.mxu0 %v423
        %v623 = vpop.f32.mrf.mxu0
        %v624 = vadd.f32 0.0, %v623
        %v625 = vpop.f32.mrf.mxu0
        %626 = vmatprep.mubr.f32.mxu0 0.0
        %627 = vmatmul.mubr.f32.gmra.mxu0 %v425
        %v628 = vpop.f32.mrf.mxu0
        %v629 = vadd.f32 0.0, %v628
        %v630 = vpop.f32.mrf.mxu0
        %631 = vmatprep.mubr.f32.mxu0 0.0
        %632 = vmatmul.mubr.f32.gmra.mxu0 %v427
        %v633 = vpop.f32.mrf.mxu0
        %v634 = vadd.f32 0.0, %v633
        %v635 = vpop.f32.mrf.mxu0
        %636 = vmatprep.mubr.f32.mxu0 0.0
        %637 = vmatmul.mubr.f32.gmra.mxu0 %v429
        %v638 = vpop.f32.mrf.mxu0
        %v639 = vadd.f32 0.0, %v638
        %v640 = vpop.f32.mrf.mxu0
        %641 = vmatprep.mubr.f32.mxu0 0.0
        %642 = vmatmul.mubr.f32.gmra.mxu0 %v431
        %v643 = vpop.f32.mrf.mxu0
        %v644 = vadd.f32 0.0, %v643
        %v645 = vpop.f32.mrf.mxu0
        %646 = vmatprep.mubr.f32.mxu0 0.0
        %647 = vmatmul.mubr.f32.gmra.mxu0 %v433
        %v648 = vpop.f32.mrf.mxu0
        %v649 = vadd.f32 0.0, %v648
        %v650 = vpop.f32.mrf.mxu0
        %651 = vmatprep.mubr.f32.mxu0 0.0
        %652 = vmatmul.mubr.f32.gmra.mxu0 %v435
        %v653 = vpop.f32.mrf.mxu0
        %v654 = vadd.f32 0.0, %v653
        %v655 = vpop.f32.mrf.mxu0
        %656 = vmatprep.mubr.f32.mxu0 0.0
        %657 = vmatmul.mubr.f32.gmra.mxu0 %v437
        %v658 = vpop.f32.mrf.mxu0
        %v659 = vadd.f32 0.0, %v658
        %v660 = vpop.f32.mrf.mxu0
        %661 = vmatprep.mubr.f32.mxu0 0.0
        %662 = vmatmul.mubr.f32.gmra.mxu0 %v439
        %v663 = vpop.f32.mrf.mxu0
        %v664 = vadd.f32 0.0, %v663
        %v665 = vpop.f32.mrf.mxu0
        %666 = vmatprep.mubr.f32.mxu0 0.0
        %667 = vmatmul.mubr.f32.gmra.mxu0 %v441
        %v668 = vpop.f32.mrf.mxu0
        %v669 = vadd.f32 0.0, %v668
        %v670 = vpop.f32.mrf.mxu0
        %671 = vdwg.mxu0
        %v672 = vsel %vm378, %v192, 0
        %v674 = vsel %vm378, %v193, 0
        %v676 = vsel %vm378, %v195, 0
        %v678 = vsel %vm378, %v196, 0
        %v680 = vsel %vm378, %v198, 0
        %v682 = vsel %vm378, %v199, 0
        %v684 = vsel %vm378, %v201, 0
        %v686 = vsel %vm378, %v202, 0
        %v688 = vsel %vm378, %v204, 0
        %v690 = vsel %vm378, %v205, 0
        %v692 = vsel %vm378, %v207, 0
        %v694 = vsel %vm378, %v208, 0
        %v696 = vsel %vm378, %v210, 0
        %v698 = vsel %vm378, %v211, 0
        %v700 = vsel %vm378, %v213, 0
        %v702 = vsel %vm378, %v214, 0
        %v704 = vsel %vm378, %v216, 0
        %v706 = vsel %vm378, %v217, 0
        %v708 = vsel %vm378, %v219, 0
        %v710 = vsel %vm378, %v220, 0
        %v712 = vsel %vm378, %v222, 0
        %v714 = vsel %vm378, %v223, 0
        %v716 = vsel %vm378, %v225, 0
        %v718 = vsel %vm378, %v226, 0
        %v720 = vsel %vm378, %v228, 0
        %v722 = vsel %vm378, %v229, 0
        %v724 = vsel %vm378, %v231, 0
        %v726 = vsel %vm378, %v232, 0
        %v728 = vsel %vm378, %v234, 0
        %v730 = vsel %vm378, %v235, 0
        %v732 = vsel %vm378, %v237, 0
        %v734 = vsel %vm378, %v238, 0
        %v737 = vsel %vm443, %v246, 0
        %739 = vmatprep.subr.mxu0 0.0
        %740 = vmatpush1.msra.mxu0 0.0
        %741 = vmatprep.subr.mxu0 0.0
        %742 = vmatpush1.msra.mxu0 0.0
        %743 = vmatprep.subr.mxu0 0.0
        %744 = vmatpush1.msra.mxu0 0.0
        %745 = vmatprep.subr.mxu0 0.0
        %746 = vmatpush1.msra.mxu0 0.0
        %747 = vmatprep.subr.mxu0 0.0
        %748 = vmatpush1.msra.mxu0 0.0
        %749 = vmatprep.subr.mxu0 0.0
        %750 = vmatpush1.msra.mxu0 0.0
        %751 = vmatprep.subr.mxu0 0.0
        %752 = vmatpush1.msra.mxu0 0.0
        %753 = vmatprep.subr.mxu0 0.0
        %754 = vmatpush1.msra.mxu0 0.0
        %755 = vmatprep.subr.mxu0 0.0
        %756 = vmatpush1.msra.mxu0 0.0
        %757 = vmatprep.subr.mxu0 0.0
        %758 = vmatpush1.msra.mxu0 0.0
        %759 = vmatprep.subr.mxu0 0.0
        %760 = vmatpush1.msra.mxu0 0.0
        %761 = vmatprep.subr.mxu0 0.0
        %762 = vmatpush1.msra.mxu0 0.0
        %763 = vmatprep.subr.mxu0 0.0
        %764 = vmatpush1.msra.mxu0 0.0
        %765 = vmatprep.subr.mxu0 0.0
        %766 = vmatpush1.msra.mxu0 0.0
        %767 = vmatprep.subr.mxu0 0.0
        %768 = vmatpush1.msra.mxu0 0.0
        %769 = vmatprep.subr.mxu0 0.0
        %770 = vmatpush1.msra.mxu0 %v737
        %771 = vmatprep.subr.mxu0 0.0
        %772 = vmatpush2.msra.mxu0 0.0
        %773 = vmatprep.subr.mxu0 0.0
        %774 = vmatpush2.msra.mxu0 0.0
        %775 = vmatprep.subr.mxu0 0.0
        %776 = vmatpush2.msra.mxu0 0.0
        %777 = vmatprep.subr.mxu0 0.0
        %778 = vmatpush2.msra.mxu0 0.0
        %779 = vmatprep.subr.mxu0 0.0
        %780 = vmatpush2.msra.mxu0 0.0
        %781 = vmatprep.subr.mxu0 0.0
        %782 = vmatpush2.msra.mxu0 0.0
        %783 = vmatprep.subr.mxu0 0.0
        %784 = vmatpush2.msra.mxu0 0.0
        %785 = vmatprep.subr.mxu0 0.0
        %786 = vmatpush2.msra.mxu0 0.0
        %787 = vmatprep.subr.mxu0 0.0
        %788 = vmatpush2.msra.mxu0 0.0
        %789 = vmatprep.subr.mxu0 0.0
        %790 = vmatpush2.msra.mxu0 0.0
        %791 = vmatprep.subr.mxu0 0.0
        %792 = vmatpush2.msra.mxu0 0.0
        %793 = vmatprep.subr.mxu0 0.0
        %794 = vmatpush2.msra.mxu0 0.0
        %795 = vmatprep.subr.mxu0 0.0
        %796 = vmatpush2.msra.mxu0 0.0
        %797 = vmatprep.subr.mxu0 0.0
        %798 = vmatpush2.msra.mxu0 0.0
        %799 = vmatprep.subr.mxu0 0.0
        %800 = vmatpush2.msra.mxu0 0.0
        %801 = vmatprep.subr.mxu0 0.0
        %802 = vmatpush2.msra.mxu0 0.0
        %803 = vmatprep.mubr.f32.mxu0 0.0
        %804 = vmatmul.mubr.f32.gmra.mxu0 %v672
        %v805 = vpop.f32.mrf.mxu0
        %v806 = vadd.f32 %v514, %v805
        %v807 = vpop.f32.mrf.mxu0
        %808 = vmatprep.mubr.f32.mxu0 0.0
        %809 = vmatmul.mubr.f32.gmra.mxu0 %v674
        %v810 = vpop.f32.mrf.mxu0
        %v811 = vadd.f32 %v519, %v810
        %v812 = vpop.f32.mrf.mxu0
        %813 = vmatprep.mubr.f32.mxu0 0.0
        %814 = vmatmul.mubr.f32.gmra.mxu0 %v676
        %v815 = vpop.f32.mrf.mxu0
        %v816 = vadd.f32 %v524, %v815
        %v817 = vpop.f32.mrf.mxu0
        %818 = vmatprep.mubr.f32.mxu0 0.0
        %819 = vmatmul.mubr.f32.gmra.mxu0 %v678
        %v820 = vpop.f32.mrf.mxu0
        %v821 = vadd.f32 %v529, %v820
        %v822 = vpop.f32.mrf.mxu0
        %823 = vmatprep.mubr.f32.mxu0 0.0
        %824 = vmatmul.mubr.f32.gmra.mxu0 %v680
        %v825 = vpop.f32.mrf.mxu0
        %v826 = vadd.f32 %v534, %v825
        %v827 = vpop.f32.mrf.mxu0
        %828 = vmatprep.mubr.f32.mxu0 0.0
        %829 = vmatmul.mubr.f32.gmra.mxu0 %v682
        %v830 = vpop.f32.mrf.mxu0
        %v831 = vadd.f32 %v539, %v830
        %v832 = vpop.f32.mrf.mxu0
        %833 = vmatprep.mubr.f32.mxu0 0.0
        %834 = vmatmul.mubr.f32.gmra.mxu0 %v684
        %v835 = vpop.f32.mrf.mxu0
        %v836 = vadd.f32 %v544, %v835
        %v837 = vpop.f32.mrf.mxu0
        %838 = vmatprep.mubr.f32.mxu0 0.0
        %839 = vmatmul.mubr.f32.gmra.mxu0 %v686
        %v840 = vpop.f32.mrf.mxu0
        %v841 = vadd.f32 %v549, %v840
        %v842 = vpop.f32.mrf.mxu0
        %843 = vmatprep.mubr.f32.mxu0 0.0
        %844 = vmatmul.mubr.f32.gmra.mxu0 %v688
        %v845 = vpop.f32.mrf.mxu0
        %v846 = vadd.f32 %v554, %v845
        %v847 = vpop.f32.mrf.mxu0
        %848 = vmatprep.mubr.f32.mxu0 0.0
        %849 = vmatmul.mubr.f32.gmra.mxu0 %v690
        %v850 = vpop.f32.mrf.mxu0
        %v851 = vadd.f32 %v559, %v850
        %v852 = vpop.f32.mrf.mxu0
        %853 = vmatprep.mubr.f32.mxu0 0.0
        %854 = vmatmul.mubr.f32.gmra.mxu0 %v692
        %v855 = vpop.f32.mrf.mxu0
        %v856 = vadd.f32 %v564, %v855
        %v857 = vpop.f32.mrf.mxu0
        %858 = vmatprep.mubr.f32.mxu0 0.0
        %859 = vmatmul.mubr.f32.gmra.mxu0 %v694
        %v860 = vpop.f32.mrf.mxu0
        %v861 = vadd.f32 %v569, %v860
        %v862 = vpop.f32.mrf.mxu0
        %863 = vmatprep.mubr.f32.mxu0 0.0
        %864 = vmatmul.mubr.f32.gmra.mxu0 %v696
        %v865 = vpop.f32.mrf.mxu0
        %v866 = vadd.f32 %v574, %v865
        %v867 = vpop.f32.mrf.mxu0
        %868 = vmatprep.mubr.f32.mxu0 0.0
        %869 = vmatmul.mubr.f32.gmra.mxu0 %v698
        %v870 = vpop.f32.mrf.mxu0
        %v871 = vadd.f32 %v579, %v870
        %v872 = vpop.f32.mrf.mxu0
        %873 = vmatprep.mubr.f32.mxu0 0.0
        %874 = vmatmul.mubr.f32.gmra.mxu0 %v700
        %v875 = vpop.f32.mrf.mxu0
        %v876 = vadd.f32 %v584, %v875
        %v877 = vpop.f32.mrf.mxu0
        %878 = vmatprep.mubr.f32.mxu0 0.0
        %879 = vmatmul.mubr.f32.gmra.mxu0 %v702
        %v880 = vpop.f32.mrf.mxu0
        %v881 = vadd.f32 %v589, %v880
        %v882 = vpop.f32.mrf.mxu0
        %883 = vmatprep.mubr.f32.mxu0 0.0
        %884 = vmatmul.mubr.f32.gmra.mxu0 %v704
        %v885 = vpop.f32.mrf.mxu0
        %v886 = vadd.f32 %v594, %v885
        %v887 = vpop.f32.mrf.mxu0
        %888 = vmatprep.mubr.f32.mxu0 0.0
        %889 = vmatmul.mubr.f32.gmra.mxu0 %v706
        %v890 = vpop.f32.mrf.mxu0
        %v891 = vadd.f32 %v599, %v890
        %v892 = vpop.f32.mrf.mxu0
        %893 = vmatprep.mubr.f32.mxu0 0.0
        %894 = vmatmul.mubr.f32.gmra.mxu0 %v708
        %v895 = vpop.f32.mrf.mxu0
        %v896 = vadd.f32 %v604, %v895
        %v897 = vpop.f32.mrf.mxu0
        %898 = vmatprep.mubr.f32.mxu0 0.0
        %899 = vmatmul.mubr.f32.gmra.mxu0 %v710
        %v900 = vpop.f32.mrf.mxu0
        %v901 = vadd.f32 %v609, %v900
        %v902 = vpop.f32.mrf.mxu0
        %903 = vmatprep.mubr.f32.mxu0 0.0
        %904 = vmatmul.mubr.f32.gmra.mxu0 %v712
        %v905 = vpop.f32.mrf.mxu0
        %v906 = vadd.f32 %v614, %v905
        %v907 = vpop.f32.mrf.mxu0
        %908 = vmatprep.mubr.f32.mxu0 0.0
        %909 = vmatmul.mubr.f32.gmra.mxu0 %v714
        %v910 = vpop.f32.mrf.mxu0
        %v911 = vadd.f32 %v619, %v910
        %v912 = vpop.f32.mrf.mxu0
        %913 = vmatprep.mubr.f32.mxu0 0.0
        %914 = vmatmul.mubr.f32.gmra.mxu0 %v716
        %v915 = vpop.f32.mrf.mxu0
        %v916 = vadd.f32 %v624, %v915
        %v917 = vpop.f32.mrf.mxu0
        %918 = vmatprep.mubr.f32.mxu0 0.0
        %919 = vmatmul.mubr.f32.gmra.mxu0 %v718
        %v920 = vpop.f32.mrf.mxu0
        %v921 = vadd.f32 %v629, %v920
        %v922 = vpop.f32.mrf.mxu0
        %923 = vmatprep.mubr.f32.mxu0 0.0
        %924 = vmatmul.mubr.f32.gmra.mxu0 %v720
        %v925 = vpop.f32.mrf.mxu0
        %v926 = vadd.f32 %v634, %v925
        %v927 = vpop.f32.mrf.mxu0
        %928 = vmatprep.mubr.f32.mxu0 0.0
        %929 = vmatmul.mubr.f32.gmra.mxu0 %v722
        %v930 = vpop.f32.mrf.mxu0
        %v931 = vadd.f32 %v639, %v930
        %v932 = vpop.f32.mrf.mxu0
        %933 = vmatprep.mubr.f32.mxu0 0.0
        %934 = vmatmul.mubr.f32.gmra.mxu0 %v724
        %v935 = vpop.f32.mrf.mxu0
        %v936 = vadd.f32 %v644, %v935
        %v937 = vpop.f32.mrf.mxu0
        %938 = vmatprep.mubr.f32.mxu0 0.0
        %939 = vmatmul.mubr.f32.gmra.mxu0 %v726
        %v940 = vpop.f32.mrf.mxu0
        %v941 = vadd.f32 %v649, %v940
        %v942 = vpop.f32.mrf.mxu0
        %943 = vmatprep.mubr.f32.mxu0 0.0
        %944 = vmatmul.mubr.f32.gmra.mxu0 %v728
        %v945 = vpop.f32.mrf.mxu0
        %v946 = vadd.f32 %v654, %v945
        %v947 = vpop.f32.mrf.mxu0
        %948 = vmatprep.mubr.f32.mxu0 0.0
        %949 = vmatmul.mubr.f32.gmra.mxu0 %v730
        %v950 = vpop.f32.mrf.mxu0
        %v951 = vadd.f32 %v659, %v950
        %v952 = vpop.f32.mrf.mxu0
        %953 = vmatprep.mubr.f32.mxu0 0.0
        %954 = vmatmul.mubr.f32.gmra.mxu0 %v732
        %v955 = vpop.f32.mrf.mxu0
        %v956 = vadd.f32 %v664, %v955
        %v957 = vpop.f32.mrf.mxu0
        %958 = vmatprep.mubr.f32.mxu0 0.0
        %959 = vmatmul.mubr.f32.gmra.mxu0 %v734
        %v960 = vpop.f32.mrf.mxu0
        %v961 = vadd.f32 %v669, %v960
        %v962 = vpop.f32.mrf.mxu0
        %963 = vdwg.mxu0
        %vm964 = vcmask 1045504
        %v965 = vrot.slane %v192, 2
        %v966 = vrot.slane %v193, 2
        %v967 = vsel %vm964, %v965, %v966
        %v968 = vrot.slane %v194, 2
        %v969 = vsel %vm964, %v966, %v968
        %v970 = vrot.slane %v195, 2
        %v971 = vrot.slane %v196, 2
        %v972 = vsel %vm964, %v970, %v971
        %v973 = vrot.slane %v197, 2
        %v974 = vsel %vm964, %v971, %v973
        %v975 = vrot.slane %v198, 2
        %v976 = vrot.slane %v199, 2
        %v977 = vsel %vm964, %v975, %v976
        %v978 = vrot.slane %v200, 2
        %v979 = vsel %vm964, %v976, %v978
        %v980 = vrot.slane %v201, 2
        %v981 = vrot.slane %v202, 2
        %v982 = vsel %vm964, %v980, %v981
        %v983 = vrot.slane %v203, 2
        %v984 = vsel %vm964, %v981, %v983
        %v985 = vrot.slane %v204, 2
        %v986 = vrot.slane %v205, 2
        %v987 = vsel %vm964, %v985, %v986
        %v988 = vrot.slane %v206, 2
        %v989 = vsel %vm964, %v986, %v988
        %v990 = vrot.slane %v207, 2
        %v991 = vrot.slane %v208, 2
        %v992 = vsel %vm964, %v990, %v991
        %v993 = vrot.slane %v209, 2
        %v994 = vsel %vm964, %v991, %v993
        %v995 = vrot.slane %v210, 2
        %v996 = vrot.slane %v211, 2
        %v997 = vsel %vm964, %v995, %v996
        %v998 = vrot.slane %v212, 2
        %v999 = vsel %vm964, %v996, %v998
        %v1000 = vrot.slane %v213, 2
        %v1001 = vrot.slane %v214, 2
        %v1002 = vsel %vm964, %v1000, %v1001
        %v1003 = vrot.slane %v215, 2
        %v1004 = vsel %vm964, %v1001, %v1003
        %v1005 = vrot.slane %v216, 2
        %v1006 = vrot.slane %v217, 2
        %v1007 = vsel %vm964, %v1005, %v1006
        %v1008 = vrot.slane %v218, 2
        %v1009 = vsel %vm964, %v1006, %v1008
        %v1010 = vrot.slane %v219, 2
        %v1011 = vrot.slane %v220, 2
        %v1012 = vsel %vm964, %v1010, %v1011
        %v1013 = vrot.slane %v221, 2
        %v1014 = vsel %vm964, %v1011, %v1013
        %v1015 = vrot.slane %v222, 2
        %v1016 = vrot.slane %v223, 2
        %v1017 = vsel %vm964, %v1015, %v1016
        %v1018 = vrot.slane %v224, 2
        %v1019 = vsel %vm964, %v1016, %v1018
        %v1020 = vrot.slane %v225, 2
        %v1021 = vrot.slane %v226, 2
        %v1022 = vsel %vm964, %v1020, %v1021
        %v1023 = vrot.slane %v227, 2
        %v1024 = vsel %vm964, %v1021, %v1023
        %v1025 = vrot.slane %v228, 2
        %v1026 = vrot.slane %v229, 2
        %v1027 = vsel %vm964, %v1025, %v1026
        %v1028 = vrot.slane %v230, 2
        %v1029 = vsel %vm964, %v1026, %v1028
        %v1030 = vrot.slane %v231, 2
        %v1031 = vrot.slane %v232, 2
        %v1032 = vsel %vm964, %v1030, %v1031
        %v1033 = vrot.slane %v233, 2
        %v1034 = vsel %vm964, %v1031, %v1033
        %v1035 = vrot.slane %v234, 2
        %v1036 = vrot.slane %v235, 2
        %v1037 = vsel %vm964, %v1035, %v1036
        %v1038 = vrot.slane %v236, 2
        %v1039 = vsel %vm964, %v1036, %v1038
        %v1040 = vrot.slane %v237, 2
        %v1041 = vrot.slane %v238, 2
        %v1042 = vsel %vm964, %v1040, %v1041
        %v1043 = vrot.slane %v239, 2
        %v1044 = vsel %vm964, %v1041, %v1043
        %s1045 = scalar_lea.vmem %s1, 8
        %v1046 = vld [vmem:[%s1045] sm:$0xf]
        %v1047 = vsel %vm378, %v967, 0
        %v1049 = vsel %vm378, %v969, 0
        %v1051 = vsel %vm378, %v972, 0
        %v1053 = vsel %vm378, %v974, 0
        %v1055 = vsel %vm378, %v977, 0
        %v1057 = vsel %vm378, %v979, 0
        %v1059 = vsel %vm378, %v982, 0
        %v1061 = vsel %vm378, %v984, 0
        %v1063 = vsel %vm378, %v987, 0
        %v1065 = vsel %vm378, %v989, 0
        %v1067 = vsel %vm378, %v992, 0
        %v1069 = vsel %vm378, %v994, 0
        %v1071 = vsel %vm378, %v997, 0
        %v1073 = vsel %vm378, %v999, 0
        %v1075 = vsel %vm378, %v1002, 0
        %v1077 = vsel %vm378, %v1004, 0
        %v1079 = vsel %vm378, %v1007, 0
        %v1081 = vsel %vm378, %v1009, 0
        %v1083 = vsel %vm378, %v1012, 0
        %v1085 = vsel %vm378, %v1014, 0
        %v1087 = vsel %vm378, %v1017, 0
        %v1089 = vsel %vm378, %v1019, 0
        %v1091 = vsel %vm378, %v1022, 0
        %v1093 = vsel %vm378, %v1024, 0
        %v1095 = vsel %vm378, %v1027, 0
        %v1097 = vsel %vm378, %v1029, 0
        %v1099 = vsel %vm378, %v1032, 0
        %v1101 = vsel %vm378, %v1034, 0
        %v1103 = vsel %vm378, %v1037, 0
        %v1105 = vsel %vm378, %v1039, 0
        %v1107 = vsel %vm378, %v1042, 0
        %v1109 = vsel %vm378, %v1044, 0
        %v1112 = vsel %vm443, %v1046, 0
        %1114 = vmatprep.subr.mxu0 0.0
        %1115 = vmatpush1.msra.mxu0 0.0
        %1116 = vmatprep.subr.mxu0 0.0
        %1117 = vmatpush1.msra.mxu0 0.0
        %1118 = vmatprep.subr.mxu0 0.0
        %1119 = vmatpush1.msra.mxu0 0.0
        %1120 = vmatprep.subr.mxu0 0.0
        %1121 = vmatpush1.msra.mxu0 0.0
        %1122 = vmatprep.subr.mxu0 0.0
        %1123 = vmatpush1.msra.mxu0 0.0
        %1124 = vmatprep.subr.mxu0 0.0
        %1125 = vmatpush1.msra.mxu0 0.0
        %1126 = vmatprep.subr.mxu0 0.0
        %1127 = vmatpush1.msra.mxu0 0.0
        %1128 = vmatprep.subr.mxu0 0.0
        %1129 = vmatpush1.msra.mxu0 0.0
        %1130 = vmatprep.subr.mxu0 0.0
        %1131 = vmatpush1.msra.mxu0 0.0
        %1132 = vmatprep.subr.mxu0 0.0
        %1133 = vmatpush1.msra.mxu0 0.0
        %1134 = vmatprep.subr.mxu0 0.0
        %1135 = vmatpush1.msra.mxu0 0.0
        %1136 = vmatprep.subr.mxu0 0.0
        %1137 = vmatpush1.msra.mxu0 0.0
        %1138 = vmatprep.subr.mxu0 0.0
        %1139 = vmatpush1.msra.mxu0 0.0
        %1140 = vmatprep.subr.mxu0 0.0
        %1141 = vmatpush1.msra.mxu0 0.0
        %1142 = vmatprep.subr.mxu0 0.0
        %1143 = vmatpush1.msra.mxu0 0.0
        %1144 = vmatprep.subr.mxu0 0.0
        %1145 = vmatpush1.msra.mxu0 %v1112
        %1146 = vmatprep.subr.mxu0 0.0
        %1147 = vmatpush2.msra.mxu0 0.0
        %1148 = vmatprep.subr.mxu0 0.0
        %1149 = vmatpush2.msra.mxu0 0.0
        %1150 = vmatprep.subr.mxu0 0.0
        %1151 = vmatpush2.msra.mxu0 0.0
        %1152 = vmatprep.subr.mxu0 0.0
        %1153 = vmatpush2.msra.mxu0 0.0
        %1154 = vmatprep.subr.mxu0 0.0
        %1155 = vmatpush2.msra.mxu0 0.0
        %1156 = vmatprep.subr.mxu0 0.0
        %1157 = vmatpush2.msra.mxu0 0.0
        %1158 = vmatprep.subr.mxu0 0.0
        %1159 = vmatpush2.msra.mxu0 0.0
        %1160 = vmatprep.subr.mxu0 0.0
        %1161 = vmatpush2.msra.mxu0 0.0
        %1162 = vmatprep.subr.mxu0 0.0
        %1163 = vmatpush2.msra.mxu0 0.0
        %1164 = vmatprep.subr.mxu0 0.0
        %1165 = vmatpush2.msra.mxu0 0.0
        %1166 = vmatprep.subr.mxu0 0.0
        %1167 = vmatpush2.msra.mxu0 0.0
        %1168 = vmatprep.subr.mxu0 0.0
        %1169 = vmatpush2.msra.mxu0 0.0
        %1170 = vmatprep.subr.mxu0 0.0
        %1171 = vmatpush2.msra.mxu0 0.0
        %1172 = vmatprep.subr.mxu0 0.0
        %1173 = vmatpush2.msra.mxu0 0.0
        %1174 = vmatprep.subr.mxu0 0.0
        %1175 = vmatpush2.msra.mxu0 0.0
        %1176 = vmatprep.subr.mxu0 0.0
        %1177 = vmatpush2.msra.mxu0 0.0
        %1178 = vmatprep.mubr.f32.mxu0 0.0
        %1179 = vmatmul.mubr.f32.gmra.mxu0 %v1047
        %v1180 = vpop.f32.mrf.mxu0
        %v1181 = vadd.f32 0.0, %v1180
        %v1182 = vpop.f32.mrf.mxu0
        %1183 = vmatprep.mubr.f32.mxu0 0.0
        %1184 = vmatmul.mubr.f32.gmra.mxu0 %v1049
        %v1185 = vpop.f32.mrf.mxu0
        %v1186 = vadd.f32 0.0, %v1185
        %v1187 = vpop.f32.mrf.mxu0
        %1188 = vmatprep.mubr.f32.mxu0 0.0
        %1189 = vmatmul.mubr.f32.gmra.mxu0 %v1051
        %v1190 = vpop.f32.mrf.mxu0
        %v1191 = vadd.f32 0.0, %v1190
        %v1192 = vpop.f32.mrf.mxu0
        %1193 = vmatprep.mubr.f32.mxu0 0.0
        %1194 = vmatmul.mubr.f32.gmra.mxu0 %v1053
        %v1195 = vpop.f32.mrf.mxu0
        %v1196 = vadd.f32 0.0, %v1195
        %v1197 = vpop.f32.mrf.mxu0
        %1198 = vmatprep.mubr.f32.mxu0 0.0
        %1199 = vmatmul.mubr.f32.gmra.mxu0 %v1055
        %v1200 = vpop.f32.mrf.mxu0
        %v1201 = vadd.f32 0.0, %v1200
        %v1202 = vpop.f32.mrf.mxu0
        %1203 = vmatprep.mubr.f32.mxu0 0.0
        %1204 = vmatmul.mubr.f32.gmra.mxu0 %v1057
        %v1205 = vpop.f32.mrf.mxu0
        %v1206 = vadd.f32 0.0, %v1205
        %v1207 = vpop.f32.mrf.mxu0
        %1208 = vmatprep.mubr.f32.mxu0 0.0
        %1209 = vmatmul.mubr.f32.gmra.mxu0 %v1059
        %v1210 = vpop.f32.mrf.mxu0
        %v1211 = vadd.f32 0.0, %v1210
        %v1212 = vpop.f32.mrf.mxu0
        %1213 = vmatprep.mubr.f32.mxu0 0.0
        %1214 = vmatmul.mubr.f32.gmra.mxu0 %v1061
        %v1215 = vpop.f32.mrf.mxu0
        %v1216 = vadd.f32 0.0, %v1215
        %v1217 = vpop.f32.mrf.mxu0
        %1218 = vmatprep.mubr.f32.mxu0 0.0
        %1219 = vmatmul.mubr.f32.gmra.mxu0 %v1063
        %v1220 = vpop.f32.mrf.mxu0
        %v1221 = vadd.f32 0.0, %v1220
        %v1222 = vpop.f32.mrf.mxu0
        %1223 = vmatprep.mubr.f32.mxu0 0.0
        %1224 = vmatmul.mubr.f32.gmra.mxu0 %v1065
        %v1225 = vpop.f32.mrf.mxu0
        %v1226 = vadd.f32 0.0, %v1225
        %v1227 = vpop.f32.mrf.mxu0
        %1228 = vmatprep.mubr.f32.mxu0 0.0
        %1229 = vmatmul.mubr.f32.gmra.mxu0 %v1067
        %v1230 = vpop.f32.mrf.mxu0
        %v1231 = vadd.f32 0.0, %v1230
        %v1232 = vpop.f32.mrf.mxu0
        %1233 = vmatprep.mubr.f32.mxu0 0.0
        %1234 = vmatmul.mubr.f32.gmra.mxu0 %v1069
        %v1235 = vpop.f32.mrf.mxu0
        %v1236 = vadd.f32 0.0, %v1235
        %v1237 = vpop.f32.mrf.mxu0
        %1238 = vmatprep.mubr.f32.mxu0 0.0
        %1239 = vmatmul.mubr.f32.gmra.mxu0 %v1071
        %v1240 = vpop.f32.mrf.mxu0
        %v1241 = vadd.f32 0.0, %v1240
        %v1242 = vpop.f32.mrf.mxu0
        %1243 = vmatprep.mubr.f32.mxu0 0.0
        %1244 = vmatmul.mubr.f32.gmra.mxu0 %v1073
        %v1245 = vpop.f32.mrf.mxu0
        %v1246 = vadd.f32 0.0, %v1245
        %v1247 = vpop.f32.mrf.mxu0
        %1248 = vmatprep.mubr.f32.mxu0 0.0
        %1249 = vmatmul.mubr.f32.gmra.mxu0 %v1075
        %v1250 = vpop.f32.mrf.mxu0
        %v1251 = vadd.f32 0.0, %v1250
        %v1252 = vpop.f32.mrf.mxu0
        %1253 = vmatprep.mubr.f32.mxu0 0.0
        %1254 = vmatmul.mubr.f32.gmra.mxu0 %v1077
        %v1255 = vpop.f32.mrf.mxu0
        %v1256 = vadd.f32 0.0, %v1255
        %v1257 = vpop.f32.mrf.mxu0
        %1258 = vmatprep.mubr.f32.mxu0 0.0
        %1259 = vmatmul.mubr.f32.gmra.mxu0 %v1079
        %v1260 = vpop.f32.mrf.mxu0
        %v1261 = vadd.f32 0.0, %v1260
        %v1262 = vpop.f32.mrf.mxu0
        %1263 = vmatprep.mubr.f32.mxu0 0.0
        %1264 = vmatmul.mubr.f32.gmra.mxu0 %v1081
        %v1265 = vpop.f32.mrf.mxu0
        %v1266 = vadd.f32 0.0, %v1265
        %v1267 = vpop.f32.mrf.mxu0
        %1268 = vmatprep.mubr.f32.mxu0 0.0
        %1269 = vmatmul.mubr.f32.gmra.mxu0 %v1083
        %v1270 = vpop.f32.mrf.mxu0
        %v1271 = vadd.f32 0.0, %v1270
        %v1272 = vpop.f32.mrf.mxu0
        %1273 = vmatprep.mubr.f32.mxu0 0.0
        %1274 = vmatmul.mubr.f32.gmra.mxu0 %v1085
        %v1275 = vpop.f32.mrf.mxu0
        %v1276 = vadd.f32 0.0, %v1275
        %v1277 = vpop.f32.mrf.mxu0
        %1278 = vmatprep.mubr.f32.mxu0 0.0
        %1279 = vmatmul.mubr.f32.gmra.mxu0 %v1087
        %v1280 = vpop.f32.mrf.mxu0
        %v1281 = vadd.f32 0.0, %v1280
        %v1282 = vpop.f32.mrf.mxu0
        %1283 = vmatprep.mubr.f32.mxu0 0.0
        %1284 = vmatmul.mubr.f32.gmra.mxu0 %v1089
        %v1285 = vpop.f32.mrf.mxu0
        %v1286 = vadd.f32 0.0, %v1285
        %v1287 = vpop.f32.mrf.mxu0
        %1288 = vmatprep.mubr.f32.mxu0 0.0
        %1289 = vmatmul.mubr.f32.gmra.mxu0 %v1091
        %v1290 = vpop.f32.mrf.mxu0
        %v1291 = vadd.f32 0.0, %v1290
        %v1292 = vpop.f32.mrf.mxu0
        %1293 = vmatprep.mubr.f32.mxu0 0.0
        %1294 = vmatmul.mubr.f32.gmra.mxu0 %v1093
        %v1295 = vpop.f32.mrf.mxu0
        %v1296 = vadd.f32 0.0, %v1295
        %v1297 = vpop.f32.mrf.mxu0
        %1298 = vmatprep.mubr.f32.mxu0 0.0
        %1299 = vmatmul.mubr.f32.gmra.mxu0 %v1095
        %v1300 = vpop.f32.mrf.mxu0
        %v1301 = vadd.f32 0.0, %v1300
        %v1302 = vpop.f32.mrf.mxu0
        %1303 = vmatprep.mubr.f32.mxu0 0.0
        %1304 = vmatmul.mubr.f32.gmra.mxu0 %v1097
        %v1305 = vpop.f32.mrf.mxu0
        %v1306 = vadd.f32 0.0, %v1305
        %v1307 = vpop.f32.mrf.mxu0
        %1308 = vmatprep.mubr.f32.mxu0 0.0
        %1309 = vmatmul.mubr.f32.gmra.mxu0 %v1099
        %v1310 = vpop.f32.mrf.mxu0
        %v1311 = vadd.f32 0.0, %v1310
        %v1312 = vpop.f32.mrf.mxu0
        %1313 = vmatprep.mubr.f32.mxu0 0.0
        %1314 = vmatmul.mubr.f32.gmra.mxu0 %v1101
        %v1315 = vpop.f32.mrf.mxu0
        %v1316 = vadd.f32 0.0, %v1315
        %v1317 = vpop.f32.mrf.mxu0
        %1318 = vmatprep.mubr.f32.mxu0 0.0
        %1319 = vmatmul.mubr.f32.gmra.mxu0 %v1103
        %v1320 = vpop.f32.mrf.mxu0
        %v1321 = vadd.f32 0.0, %v1320
        %v1322 = vpop.f32.mrf.mxu0
        %1323 = vmatprep.mubr.f32.mxu0 0.0
        %1324 = vmatmul.mubr.f32.gmra.mxu0 %v1105
        %v1325 = vpop.f32.mrf.mxu0
        %v1326 = vadd.f32 0.0, %v1325
        %v1327 = vpop.f32.mrf.mxu0
        %1328 = vmatprep.mubr.f32.mxu0 0.0
        %1329 = vmatmul.mubr.f32.gmra.mxu0 %v1107
        %v1330 = vpop.f32.mrf.mxu0
        %v1331 = vadd.f32 0.0, %v1330
        %v1332 = vpop.f32.mrf.mxu0
        %1333 = vmatprep.mubr.f32.mxu0 0.0
        %1334 = vmatmul.mubr.f32.gmra.mxu0 %v1109
        %v1335 = vpop.f32.mrf.mxu0
        %v1336 = vadd.f32 0.0, %v1335
        %v1337 = vpop.f32.mrf.mxu0
        %1338 = vdwg.mxu0
        %v1339 = vadd.f32 %v806, %v1181
        %v1340 = vadd.f32 %v811, %v1186
        %v1341 = vadd.f32 %v816, %v1191
        %v1342 = vadd.f32 %v821, %v1196
        %v1343 = vadd.f32 %v826, %v1201
        %v1344 = vadd.f32 %v831, %v1206
        %v1345 = vadd.f32 %v836, %v1211
        %v1346 = vadd.f32 %v841, %v1216
        %v1347 = vadd.f32 %v846, %v1221
        %v1348 = vadd.f32 %v851, %v1226
        %v1349 = vadd.f32 %v856, %v1231
        %v1350 = vadd.f32 %v861, %v1236
        %v1351 = vadd.f32 %v866, %v1241
        %v1352 = vadd.f32 %v871, %v1246
        %v1353 = vadd.f32 %v876, %v1251
        %v1354 = vadd.f32 %v881, %v1256
        %v1355 = vadd.f32 %v886, %v1261
        %v1356 = vadd.f32 %v891, %v1266
        %v1357 = vadd.f32 %v896, %v1271
        %v1358 = vadd.f32 %v901, %v1276
        %v1359 = vadd.f32 %v906, %v1281
        %v1360 = vadd.f32 %v911, %v1286
        %v1361 = vadd.f32 %v916, %v1291
        %v1362 = vadd.f32 %v921, %v1296
        %v1363 = vadd.f32 %v926, %v1301
        %v1364 = vadd.f32 %v931, %v1306
        %v1365 = vadd.f32 %v936, %v1311
        %v1366 = vadd.f32 %v941, %v1316
        %v1367 = vadd.f32 %v946, %v1321
        %v1368 = vadd.f32 %v951, %v1326
        %v1369 = vadd.f32 %v956, %v1331
        %v1370 = vadd.f32 %v961, %v1336
        %s1371 = scalar_lea.vmem %s1, 12
        %v1372 = vld [vmem:[%s1371] sm:$0xf]
        %v1374 = vsel %vm378, %v240, 0
        %v1377 = vsel %vm378, %v241, 0
        %v1380 = vsel %vm443, %v1372, 0
        %1382 = vmatprep.subr.mxu0 0.0
        %1383 = vmatpush1.msra.mxu0 0.0
        %1384 = vmatprep.subr.mxu0 0.0
        %1385 = vmatpush1.msra.mxu0 0.0
        %1386 = vmatprep.subr.mxu0 0.0
        %1387 = vmatpush1.msra.mxu0 0.0
        %1388 = vmatprep.subr.mxu0 0.0
        %1389 = vmatpush1.msra.mxu0 0.0
        %1390 = vmatprep.subr.mxu0 0.0
        %1391 = vmatpush1.msra.mxu0 0.0
        %1392 = vmatprep.subr.mxu0 0.0
        %1393 = vmatpush1.msra.mxu0 0.0
        %1394 = vmatprep.subr.mxu0 0.0
        %1395 = vmatpush1.msra.mxu0 0.0
        %1396 = vmatprep.subr.mxu0 0.0
        %1397 = vmatpush1.msra.mxu0 0.0
        %1398 = vmatprep.subr.mxu0 0.0
        %1399 = vmatpush1.msra.mxu0 0.0
        %1400 = vmatprep.subr.mxu0 0.0
        %1401 = vmatpush1.msra.mxu0 0.0
        %1402 = vmatprep.subr.mxu0 0.0
        %1403 = vmatpush1.msra.mxu0 0.0
        %1404 = vmatprep.subr.mxu0 0.0
        %1405 = vmatpush1.msra.mxu0 0.0
        %1406 = vmatprep.subr.mxu0 0.0
        %1407 = vmatpush1.msra.mxu0 0.0
        %1408 = vmatprep.subr.mxu0 0.0
        %1409 = vmatpush1.msra.mxu0 0.0
        %1410 = vmatprep.subr.mxu0 0.0
        %1411 = vmatpush1.msra.mxu0 0.0
        %1412 = vmatprep.subr.mxu0 0.0
        %1413 = vmatpush1.msra.mxu0 %v1380
        %1414 = vmatprep.subr.mxu0 0.0
        %1415 = vmatpush2.msra.mxu0 0.0
        %1416 = vmatprep.subr.mxu0 0.0
        %1417 = vmatpush2.msra.mxu0 0.0
        %1418 = vmatprep.subr.mxu0 0.0
        %1419 = vmatpush2.msra.mxu0 0.0
        %1420 = vmatprep.subr.mxu0 0.0
        %1421 = vmatpush2.msra.mxu0 0.0
        %1422 = vmatprep.subr.mxu0 0.0
        %1423 = vmatpush2.msra.mxu0 0.0
        %1424 = vmatprep.subr.mxu0 0.0
        %1425 = vmatpush2.msra.mxu0 0.0
        %1426 = vmatprep.subr.mxu0 0.0
        %1427 = vmatpush2.msra.mxu0 0.0
        %1428 = vmatprep.subr.mxu0 0.0
        %1429 = vmatpush2.msra.mxu0 0.0
        %1430 = vmatprep.subr.mxu0 0.0
        %1431 = vmatpush2.msra.mxu0 0.0
        %1432 = vmatprep.subr.mxu0 0.0
        %1433 = vmatpush2.msra.mxu0 0.0
        %1434 = vmatprep.subr.mxu0 0.0
        %1435 = vmatpush2.msra.mxu0 0.0
        %1436 = vmatprep.subr.mxu0 0.0
        %1437 = vmatpush2.msra.mxu0 0.0
        %1438 = vmatprep.subr.mxu0 0.0
        %1439 = vmatpush2.msra.mxu0 0.0
        %1440 = vmatprep.subr.mxu0 0.0
        %1441 = vmatpush2.msra.mxu0 0.0
        %1442 = vmatprep.subr.mxu0 0.0
        %1443 = vmatpush2.msra.mxu0 0.0
        %1444 = vmatprep.subr.mxu0 0.0
        %1445 = vmatpush2.msra.mxu0 0.0
        %1446 = vmatprep.mubr.f32.mxu0 0.0
        %1447 = vmatmul.mubr.f32.gmra.mxu0 %v676
        %v1448 = vpop.f32.mrf.mxu0
        %v1449 = vadd.f32 0.0, %v1448
        %v1450 = vpop.f32.mrf.mxu0
        %1451 = vmatprep.mubr.f32.mxu0 0.0
        %1452 = vmatmul.mubr.f32.gmra.mxu0 %v678
        %v1453 = vpop.f32.mrf.mxu0
        %v1454 = vadd.f32 0.0, %v1453
        %v1455 = vpop.f32.mrf.mxu0
        %1456 = vmatprep.mubr.f32.mxu0 0.0
        %1457 = vmatmul.mubr.f32.gmra.mxu0 %v680
        %v1458 = vpop.f32.mrf.mxu0
        %v1459 = vadd.f32 0.0, %v1458
        %v1460 = vpop.f32.mrf.mxu0
        %1461 = vmatprep.mubr.f32.mxu0 0.0
        %1462 = vmatmul.mubr.f32.gmra.mxu0 %v682
        %v1463 = vpop.f32.mrf.mxu0
        %v1464 = vadd.f32 0.0, %v1463
        %v1465 = vpop.f32.mrf.mxu0
        %1466 = vmatprep.mubr.f32.mxu0 0.0
        %1467 = vmatmul.mubr.f32.gmra.mxu0 %v684
        %v1468 = vpop.f32.mrf.mxu0
        %v1469 = vadd.f32 0.0, %v1468
        %v1470 = vpop.f32.mrf.mxu0
        %1471 = vmatprep.mubr.f32.mxu0 0.0
        %1472 = vmatmul.mubr.f32.gmra.mxu0 %v686
        %v1473 = vpop.f32.mrf.mxu0
        %v1474 = vadd.f32 0.0, %v1473
        %v1475 = vpop.f32.mrf.mxu0
        %1476 = vmatprep.mubr.f32.mxu0 0.0
        %1477 = vmatmul.mubr.f32.gmra.mxu0 %v688
        %v1478 = vpop.f32.mrf.mxu0
        %v1479 = vadd.f32 0.0, %v1478
        %v1480 = vpop.f32.mrf.mxu0
        %1481 = vmatprep.mubr.f32.mxu0 0.0
        %1482 = vmatmul.mubr.f32.gmra.mxu0 %v690
        %v1483 = vpop.f32.mrf.mxu0
        %v1484 = vadd.f32 0.0, %v1483
        %v1485 = vpop.f32.mrf.mxu0
        %1486 = vmatprep.mubr.f32.mxu0 0.0
        %1487 = vmatmul.mubr.f32.gmra.mxu0 %v692
        %v1488 = vpop.f32.mrf.mxu0
        %v1489 = vadd.f32 0.0, %v1488
        %v1490 = vpop.f32.mrf.mxu0
        %1491 = vmatprep.mubr.f32.mxu0 0.0
        %1492 = vmatmul.mubr.f32.gmra.mxu0 %v694
        %v1493 = vpop.f32.mrf.mxu0
        %v1494 = vadd.f32 0.0, %v1493
        %v1495 = vpop.f32.mrf.mxu0
        %1496 = vmatprep.mubr.f32.mxu0 0.0
        %1497 = vmatmul.mubr.f32.gmra.mxu0 %v696
        %v1498 = vpop.f32.mrf.mxu0
        %v1499 = vadd.f32 0.0, %v1498
        %v1500 = vpop.f32.mrf.mxu0
        %1501 = vmatprep.mubr.f32.mxu0 0.0
        %1502 = vmatmul.mubr.f32.gmra.mxu0 %v698
        %v1503 = vpop.f32.mrf.mxu0
        %v1504 = vadd.f32 0.0, %v1503
        %v1505 = vpop.f32.mrf.mxu0
        %1506 = vmatprep.mubr.f32.mxu0 0.0
        %1507 = vmatmul.mubr.f32.gmra.mxu0 %v700
        %v1508 = vpop.f32.mrf.mxu0
        %v1509 = vadd.f32 0.0, %v1508
        %v1510 = vpop.f32.mrf.mxu0
        %1511 = vmatprep.mubr.f32.mxu0 0.0
        %1512 = vmatmul.mubr.f32.gmra.mxu0 %v702
        %v1513 = vpop.f32.mrf.mxu0
        %v1514 = vadd.f32 0.0, %v1513
        %v1515 = vpop.f32.mrf.mxu0
        %1516 = vmatprep.mubr.f32.mxu0 0.0
        %1517 = vmatmul.mubr.f32.gmra.mxu0 %v704
        %v1518 = vpop.f32.mrf.mxu0
        %v1519 = vadd.f32 0.0, %v1518
        %v1520 = vpop.f32.mrf.mxu0
        %1521 = vmatprep.mubr.f32.mxu0 0.0
        %1522 = vmatmul.mubr.f32.gmra.mxu0 %v706
        %v1523 = vpop.f32.mrf.mxu0
        %v1524 = vadd.f32 0.0, %v1523
        %v1525 = vpop.f32.mrf.mxu0
        %1526 = vmatprep.mubr.f32.mxu0 0.0
        %1527 = vmatmul.mubr.f32.gmra.mxu0 %v708
        %v1528 = vpop.f32.mrf.mxu0
        %v1529 = vadd.f32 0.0, %v1528
        %v1530 = vpop.f32.mrf.mxu0
        %1531 = vmatprep.mubr.f32.mxu0 0.0
        %1532 = vmatmul.mubr.f32.gmra.mxu0 %v710
        %v1533 = vpop.f32.mrf.mxu0
        %v1534 = vadd.f32 0.0, %v1533
        %v1535 = vpop.f32.mrf.mxu0
        %1536 = vmatprep.mubr.f32.mxu0 0.0
        %1537 = vmatmul.mubr.f32.gmra.mxu0 %v712
        %v1538 = vpop.f32.mrf.mxu0
        %v1539 = vadd.f32 0.0, %v1538
        %v1540 = vpop.f32.mrf.mxu0
        %1541 = vmatprep.mubr.f32.mxu0 0.0
        %1542 = vmatmul.mubr.f32.gmra.mxu0 %v714
        %v1543 = vpop.f32.mrf.mxu0
        %v1544 = vadd.f32 0.0, %v1543
        %v1545 = vpop.f32.mrf.mxu0
        %1546 = vmatprep.mubr.f32.mxu0 0.0
        %1547 = vmatmul.mubr.f32.gmra.mxu0 %v716
        %v1548 = vpop.f32.mrf.mxu0
        %v1549 = vadd.f32 0.0, %v1548
        %v1550 = vpop.f32.mrf.mxu0
        %1551 = vmatprep.mubr.f32.mxu0 0.0
        %1552 = vmatmul.mubr.f32.gmra.mxu0 %v718
        %v1553 = vpop.f32.mrf.mxu0
        %v1554 = vadd.f32 0.0, %v1553
        %v1555 = vpop.f32.mrf.mxu0
        %1556 = vmatprep.mubr.f32.mxu0 0.0
        %1557 = vmatmul.mubr.f32.gmra.mxu0 %v720
        %v1558 = vpop.f32.mrf.mxu0
        %v1559 = vadd.f32 0.0, %v1558
        %v1560 = vpop.f32.mrf.mxu0
        %1561 = vmatprep.mubr.f32.mxu0 0.0
        %1562 = vmatmul.mubr.f32.gmra.mxu0 %v722
        %v1563 = vpop.f32.mrf.mxu0
        %v1564 = vadd.f32 0.0, %v1563
        %v1565 = vpop.f32.mrf.mxu0
        %1566 = vmatprep.mubr.f32.mxu0 0.0
        %1567 = vmatmul.mubr.f32.gmra.mxu0 %v724
        %v1568 = vpop.f32.mrf.mxu0
        %v1569 = vadd.f32 0.0, %v1568
        %v1570 = vpop.f32.mrf.mxu0
        %1571 = vmatprep.mubr.f32.mxu0 0.0
        %1572 = vmatmul.mubr.f32.gmra.mxu0 %v726
        %v1573 = vpop.f32.mrf.mxu0
        %v1574 = vadd.f32 0.0, %v1573
        %v1575 = vpop.f32.mrf.mxu0
        %1576 = vmatprep.mubr.f32.mxu0 0.0
        %1577 = vmatmul.mubr.f32.gmra.mxu0 %v728
        %v1578 = vpop.f32.mrf.mxu0
        %v1579 = vadd.f32 0.0, %v1578
        %v1580 = vpop.f32.mrf.mxu0
        %1581 = vmatprep.mubr.f32.mxu0 0.0
        %1582 = vmatmul.mubr.f32.gmra.mxu0 %v730
        %v1583 = vpop.f32.mrf.mxu0
        %v1584 = vadd.f32 0.0, %v1583
        %v1585 = vpop.f32.mrf.mxu0
        %1586 = vmatprep.mubr.f32.mxu0 0.0
        %1587 = vmatmul.mubr.f32.gmra.mxu0 %v732
        %v1588 = vpop.f32.mrf.mxu0
        %v1589 = vadd.f32 0.0, %v1588
        %v1590 = vpop.f32.mrf.mxu0
        %1591 = vmatprep.mubr.f32.mxu0 0.0
        %1592 = vmatmul.mubr.f32.gmra.mxu0 %v734
        %v1593 = vpop.f32.mrf.mxu0
        %v1594 = vadd.f32 0.0, %v1593
        %v1595 = vpop.f32.mrf.mxu0
        %1596 = vmatprep.mubr.f32.mxu0 0.0
        %1597 = vmatmul.mubr.f32.gmra.mxu0 %v1374
        %v1598 = vpop.f32.mrf.mxu0
        %v1599 = vadd.f32 0.0, %v1598
        %v1600 = vpop.f32.mrf.mxu0
        %1601 = vmatprep.mubr.f32.mxu0 0.0
        %1602 = vmatmul.mubr.f32.gmra.mxu0 %v1377
        %v1603 = vpop.f32.mrf.mxu0
        %v1604 = vadd.f32 0.0, %v1603
        %v1605 = vpop.f32.mrf.mxu0
        %1606 = vdwg.mxu0
        %v1607 = vadd.f32 %v1339, %v1449
        %v1608 = vadd.f32 %v1340, %v1454
        %v1609 = vadd.f32 %v1341, %v1459
        %v1610 = vadd.f32 %v1342, %v1464
        %v1611 = vadd.f32 %v1343, %v1469
        %v1612 = vadd.f32 %v1344, %v1474
        %v1613 = vadd.f32 %v1345, %v1479
        %v1614 = vadd.f32 %v1346, %v1484
        %v1615 = vadd.f32 %v1347, %v1489
        %v1616 = vadd.f32 %v1348, %v1494
        %v1617 = vadd.f32 %v1349, %v1499
        %v1618 = vadd.f32 %v1350, %v1504
        %v1619 = vadd.f32 %v1351, %v1509
        %v1620 = vadd.f32 %v1352, %v1514
        %v1621 = vadd.f32 %v1353, %v1519
        %v1622 = vadd.f32 %v1354, %v1524
        %v1623 = vadd.f32 %v1355, %v1529
        %v1624 = vadd.f32 %v1356, %v1534
        %v1625 = vadd.f32 %v1357, %v1539
        %v1626 = vadd.f32 %v1358, %v1544
        %v1627 = vadd.f32 %v1359, %v1549
        %v1628 = vadd.f32 %v1360, %v1554
        %v1629 = vadd.f32 %v1361, %v1559
        %v1630 = vadd.f32 %v1362, %v1564
        %v1631 = vadd.f32 %v1363, %v1569
        %v1632 = vadd.f32 %v1364, %v1574
        %v1633 = vadd.f32 %v1365, %v1579
        %v1634 = vadd.f32 %v1366, %v1584
        %v1635 = vadd.f32 %v1367, %v1589
        %v1636 = vadd.f32 %v1368, %v1594
        %v1637 = vadd.f32 %v1369, %v1599
        %v1638 = vadd.f32 %v1370, %v1604
        %v1640 = vrot.slane %v240, 1
        %v1641 = vrot.slane %v241, 1
        %v1642 = vsel %vm295, %v1640, %v1641
        %v1643 = vrot.slane %v242, 1
        %v1644 = vsel %vm295, %v1641, %v1643
        %s1645 = scalar_lea.vmem %s1, 16
        %v1646 = vld [vmem:[%s1645] sm:$0xf]
        %v1647 = vsel %vm378, %v1642, 0
        %v1649 = vsel %vm378, %v1644, 0
        %v1652 = vsel %vm443, %v1646, 0
        %1654 = vmatprep.subr.mxu0 0.0
        %1655 = vmatpush1.msra.mxu0 0.0
        %1656 = vmatprep.subr.mxu0 0.0
        %1657 = vmatpush1.msra.mxu0 0.0
        %1658 = vmatprep.subr.mxu0 0.0
        %1659 = vmatpush1.msra.mxu0 0.0
        %1660 = vmatprep.subr.mxu0 0.0
        %1661 = vmatpush1.msra.mxu0 0.0
        %1662 = vmatprep.subr.mxu0 0.0
        %1663 = vmatpush1.msra.mxu0 0.0
        %1664 = vmatprep.subr.mxu0 0.0
        %1665 = vmatpush1.msra.mxu0 0.0
        %1666 = vmatprep.subr.mxu0 0.0
        %1667 = vmatpush1.msra.mxu0 0.0
        %1668 = vmatprep.subr.mxu0 0.0
        %1669 = vmatpush1.msra.mxu0 0.0
        %1670 = vmatprep.subr.mxu0 0.0
        %1671 = vmatpush1.msra.mxu0 0.0
        %1672 = vmatprep.subr.mxu0 0.0
        %1673 = vmatpush1.msra.mxu0 0.0
        %1674 = vmatprep.subr.mxu0 0.0
        %1675 = vmatpush1.msra.mxu0 0.0
        %1676 = vmatprep.subr.mxu0 0.0
        %1677 = vmatpush1.msra.mxu0 0.0
        %1678 = vmatprep.subr.mxu0 0.0
        %1679 = vmatpush1.msra.mxu0 0.0
        %1680 = vmatprep.subr.mxu0 0.0
        %1681 = vmatpush1.msra.mxu0 0.0
        %1682 = vmatprep.subr.mxu0 0.0
        %1683 = vmatpush1.msra.mxu0 0.0
        %1684 = vmatprep.subr.mxu0 0.0
        %1685 = vmatpush1.msra.mxu0 %v1652
        %1686 = vmatprep.subr.mxu0 0.0
        %1687 = vmatpush2.msra.mxu0 0.0
        %1688 = vmatprep.subr.mxu0 0.0
        %1689 = vmatpush2.msra.mxu0 0.0
        %1690 = vmatprep.subr.mxu0 0.0
        %1691 = vmatpush2.msra.mxu0 0.0
        %1692 = vmatprep.subr.mxu0 0.0
        %1693 = vmatpush2.msra.mxu0 0.0
        %1694 = vmatprep.subr.mxu0 0.0
        %1695 = vmatpush2.msra.mxu0 0.0
        %1696 = vmatprep.subr.mxu0 0.0
        %1697 = vmatpush2.msra.mxu0 0.0
        %1698 = vmatprep.subr.mxu0 0.0
        %1699 = vmatpush2.msra.mxu0 0.0
        %1700 = vmatprep.subr.mxu0 0.0
        %1701 = vmatpush2.msra.mxu0 0.0
        %1702 = vmatprep.subr.mxu0 0.0
        %1703 = vmatpush2.msra.mxu0 0.0
        %1704 = vmatprep.subr.mxu0 0.0
        %1705 = vmatpush2.msra.mxu0 0.0
        %1706 = vmatprep.subr.mxu0 0.0
        %1707 = vmatpush2.msra.mxu0 0.0
        %1708 = vmatprep.subr.mxu0 0.0
        %1709 = vmatpush2.msra.mxu0 0.0
        %1710 = vmatprep.subr.mxu0 0.0
        %1711 = vmatpush2.msra.mxu0 0.0
        %1712 = vmatprep.subr.mxu0 0.0
        %1713 = vmatpush2.msra.mxu0 0.0
        %1714 = vmatprep.subr.mxu0 0.0
        %1715 = vmatpush2.msra.mxu0 0.0
        %1716 = vmatprep.subr.mxu0 0.0
        %1717 = vmatpush2.msra.mxu0 0.0
        %1718 = vmatprep.mubr.f32.mxu0 0.0
        %1719 = vmatmul.mubr.f32.gmra.mxu0 %v383
        %v1720 = vpop.f32.mrf.mxu0
        %v1721 = vadd.f32 0.0, %v1720
        %v1722 = vpop.f32.mrf.mxu0
        %1723 = vmatprep.mubr.f32.mxu0 0.0
        %1724 = vmatmul.mubr.f32.gmra.mxu0 %v385
        %v1725 = vpop.f32.mrf.mxu0
        %v1726 = vadd.f32 0.0, %v1725
        %v1727 = vpop.f32.mrf.mxu0
        %1728 = vmatprep.mubr.f32.mxu0 0.0
        %1729 = vmatmul.mubr.f32.gmra.mxu0 %v387
        %v1730 = vpop.f32.mrf.mxu0
        %v1731 = vadd.f32 0.0, %v1730
        %v1732 = vpop.f32.mrf.mxu0
        %1733 = vmatprep.mubr.f32.mxu0 0.0
        %1734 = vmatmul.mubr.f32.gmra.mxu0 %v389
        %v1735 = vpop.f32.mrf.mxu0
        %v1736 = vadd.f32 0.0, %v1735
        %v1737 = vpop.f32.mrf.mxu0
        %1738 = vmatprep.mubr.f32.mxu0 0.0
        %1739 = vmatmul.mubr.f32.gmra.mxu0 %v391
        %v1740 = vpop.f32.mrf.mxu0
        %v1741 = vadd.f32 0.0, %v1740
        %v1742 = vpop.f32.mrf.mxu0
        %1743 = vmatprep.mubr.f32.mxu0 0.0
        %1744 = vmatmul.mubr.f32.gmra.mxu0 %v393
        %v1745 = vpop.f32.mrf.mxu0
        %v1746 = vadd.f32 0.0, %v1745
        %v1747 = vpop.f32.mrf.mxu0
        %1748 = vmatprep.mubr.f32.mxu0 0.0
        %1749 = vmatmul.mubr.f32.gmra.mxu0 %v395
        %v1750 = vpop.f32.mrf.mxu0
        %v1751 = vadd.f32 0.0, %v1750
        %v1752 = vpop.f32.mrf.mxu0
        %1753 = vmatprep.mubr.f32.mxu0 0.0
        %1754 = vmatmul.mubr.f32.gmra.mxu0 %v397
        %v1755 = vpop.f32.mrf.mxu0
        %v1756 = vadd.f32 0.0, %v1755
        %v1757 = vpop.f32.mrf.mxu0
        %1758 = vmatprep.mubr.f32.mxu0 0.0
        %1759 = vmatmul.mubr.f32.gmra.mxu0 %v399
        %v1760 = vpop.f32.mrf.mxu0
        %v1761 = vadd.f32 0.0, %v1760
        %v1762 = vpop.f32.mrf.mxu0
        %1763 = vmatprep.mubr.f32.mxu0 0.0
        %1764 = vmatmul.mubr.f32.gmra.mxu0 %v401
        %v1765 = vpop.f32.mrf.mxu0
        %v1766 = vadd.f32 0.0, %v1765
        %v1767 = vpop.f32.mrf.mxu0
        %1768 = vmatprep.mubr.f32.mxu0 0.0
        %1769 = vmatmul.mubr.f32.gmra.mxu0 %v403
        %v1770 = vpop.f32.mrf.mxu0
        %v1771 = vadd.f32 0.0, %v1770
        %v1772 = vpop.f32.mrf.mxu0
        %1773 = vmatprep.mubr.f32.mxu0 0.0
        %1774 = vmatmul.mubr.f32.gmra.mxu0 %v405
        %v1775 = vpop.f32.mrf.mxu0
        %v1776 = vadd.f32 0.0, %v1775
        %v1777 = vpop.f32.mrf.mxu0
        %1778 = vmatprep.mubr.f32.mxu0 0.0
        %1779 = vmatmul.mubr.f32.gmra.mxu0 %v407
        %v1780 = vpop.f32.mrf.mxu0
        %v1781 = vadd.f32 0.0, %v1780
        %v1782 = vpop.f32.mrf.mxu0
        %1783 = vmatprep.mubr.f32.mxu0 0.0
        %1784 = vmatmul.mubr.f32.gmra.mxu0 %v409
        %v1785 = vpop.f32.mrf.mxu0
        %v1786 = vadd.f32 0.0, %v1785
        %v1787 = vpop.f32.mrf.mxu0
        %1788 = vmatprep.mubr.f32.mxu0 0.0
        %1789 = vmatmul.mubr.f32.gmra.mxu0 %v411
        %v1790 = vpop.f32.mrf.mxu0
        %v1791 = vadd.f32 0.0, %v1790
        %v1792 = vpop.f32.mrf.mxu0
        %1793 = vmatprep.mubr.f32.mxu0 0.0
        %1794 = vmatmul.mubr.f32.gmra.mxu0 %v413
        %v1795 = vpop.f32.mrf.mxu0
        %v1796 = vadd.f32 0.0, %v1795
        %v1797 = vpop.f32.mrf.mxu0
        %1798 = vmatprep.mubr.f32.mxu0 0.0
        %1799 = vmatmul.mubr.f32.gmra.mxu0 %v415
        %v1800 = vpop.f32.mrf.mxu0
        %v1801 = vadd.f32 0.0, %v1800
        %v1802 = vpop.f32.mrf.mxu0
        %1803 = vmatprep.mubr.f32.mxu0 0.0
        %1804 = vmatmul.mubr.f32.gmra.mxu0 %v417
        %v1805 = vpop.f32.mrf.mxu0
        %v1806 = vadd.f32 0.0, %v1805
        %v1807 = vpop.f32.mrf.mxu0
        %1808 = vmatprep.mubr.f32.mxu0 0.0
        %1809 = vmatmul.mubr.f32.gmra.mxu0 %v419
        %v1810 = vpop.f32.mrf.mxu0
        %v1811 = vadd.f32 0.0, %v1810
        %v1812 = vpop.f32.mrf.mxu0
        %1813 = vmatprep.mubr.f32.mxu0 0.0
        %1814 = vmatmul.mubr.f32.gmra.mxu0 %v421
        %v1815 = vpop.f32.mrf.mxu0
        %v1816 = vadd.f32 0.0, %v1815
        %v1817 = vpop.f32.mrf.mxu0
        %1818 = vmatprep.mubr.f32.mxu0 0.0
        %1819 = vmatmul.mubr.f32.gmra.mxu0 %v423
        %v1820 = vpop.f32.mrf.mxu0
        %v1821 = vadd.f32 0.0, %v1820
        %v1822 = vpop.f32.mrf.mxu0
        %1823 = vmatprep.mubr.f32.mxu0 0.0
        %1824 = vmatmul.mubr.f32.gmra.mxu0 %v425
        %v1825 = vpop.f32.mrf.mxu0
        %v1826 = vadd.f32 0.0, %v1825
        %v1827 = vpop.f32.mrf.mxu0
        %1828 = vmatprep.mubr.f32.mxu0 0.0
        %1829 = vmatmul.mubr.f32.gmra.mxu0 %v427
        %v1830 = vpop.f32.mrf.mxu0
        %v1831 = vadd.f32 0.0, %v1830
        %v1832 = vpop.f32.mrf.mxu0
        %1833 = vmatprep.mubr.f32.mxu0 0.0
        %1834 = vmatmul.mubr.f32.gmra.mxu0 %v429
        %v1835 = vpop.f32.mrf.mxu0
        %v1836 = vadd.f32 0.0, %v1835
        %v1837 = vpop.f32.mrf.mxu0
        %1838 = vmatprep.mubr.f32.mxu0 0.0
        %1839 = vmatmul.mubr.f32.gmra.mxu0 %v431
        %v1840 = vpop.f32.mrf.mxu0
        %v1841 = vadd.f32 0.0, %v1840
        %v1842 = vpop.f32.mrf.mxu0
        %1843 = vmatprep.mubr.f32.mxu0 0.0
        %1844 = vmatmul.mubr.f32.gmra.mxu0 %v433
        %v1845 = vpop.f32.mrf.mxu0
        %v1846 = vadd.f32 0.0, %v1845
        %v1847 = vpop.f32.mrf.mxu0
        %1848 = vmatprep.mubr.f32.mxu0 0.0
        %1849 = vmatmul.mubr.f32.gmra.mxu0 %v435
        %v1850 = vpop.f32.mrf.mxu0
        %v1851 = vadd.f32 0.0, %v1850
        %v1852 = vpop.f32.mrf.mxu0
        %1853 = vmatprep.mubr.f32.mxu0 0.0
        %1854 = vmatmul.mubr.f32.gmra.mxu0 %v437
        %v1855 = vpop.f32.mrf.mxu0
        %v1856 = vadd.f32 0.0, %v1855
        %v1857 = vpop.f32.mrf.mxu0
        %1858 = vmatprep.mubr.f32.mxu0 0.0
        %1859 = vmatmul.mubr.f32.gmra.mxu0 %v439
        %v1860 = vpop.f32.mrf.mxu0
        %v1861 = vadd.f32 0.0, %v1860
        %v1862 = vpop.f32.mrf.mxu0
        %1863 = vmatprep.mubr.f32.mxu0 0.0
        %1864 = vmatmul.mubr.f32.gmra.mxu0 %v441
        %v1865 = vpop.f32.mrf.mxu0
        %v1866 = vadd.f32 0.0, %v1865
        %v1867 = vpop.f32.mrf.mxu0
        %1868 = vmatprep.mubr.f32.mxu0 0.0
        %1869 = vmatmul.mubr.f32.gmra.mxu0 %v1647
        %v1870 = vpop.f32.mrf.mxu0
        %v1871 = vadd.f32 0.0, %v1870
        %v1872 = vpop.f32.mrf.mxu0
        %1873 = vmatprep.mubr.f32.mxu0 0.0
        %1874 = vmatmul.mubr.f32.gmra.mxu0 %v1649
        %v1875 = vpop.f32.mrf.mxu0
        %v1876 = vadd.f32 0.0, %v1875
        %v1877 = vpop.f32.mrf.mxu0
        %1878 = vdwg.mxu0
        %v1879 = vadd.f32 %v1607, %v1721
        %v1880 = vadd.f32 %v1608, %v1726
        %v1881 = vadd.f32 %v1609, %v1731
        %v1882 = vadd.f32 %v1610, %v1736
        %v1883 = vadd.f32 %v1611, %v1741
        %v1884 = vadd.f32 %v1612, %v1746
        %v1885 = vadd.f32 %v1613, %v1751
        %v1886 = vadd.f32 %v1614, %v1756
        %v1887 = vadd.f32 %v1615, %v1761
        %v1888 = vadd.f32 %v1616, %v1766
        %v1889 = vadd.f32 %v1617, %v1771
        %v1890 = vadd.f32 %v1618, %v1776
        %v1891 = vadd.f32 %v1619, %v1781
        %v1892 = vadd.f32 %v1620, %v1786
        %v1893 = vadd.f32 %v1621, %v1791
        %v1894 = vadd.f32 %v1622, %v1796
        %v1895 = vadd.f32 %v1623, %v1801
        %v1896 = vadd.f32 %v1624, %v1806
        %v1897 = vadd.f32 %v1625, %v1811
        %v1898 = vadd.f32 %v1626, %v1816
        %v1899 = vadd.f32 %v1627, %v1821
        %v1900 = vadd.f32 %v1628, %v1826
        %v1901 = vadd.f32 %v1629, %v1831
        %v1902 = vadd.f32 %v1630, %v1836
        %v1903 = vadd.f32 %v1631, %v1841
        %v1904 = vadd.f32 %v1632, %v1846
        %v1905 = vadd.f32 %v1633, %v1851
        %v1906 = vadd.f32 %v1634, %v1856
        %v1907 = vadd.f32 %v1635, %v1861
        %v1908 = vadd.f32 %v1636, %v1866
        %v1909 = vadd.f32 %v1637, %v1871
        %v1910 = vadd.f32 %v1638, %v1876
        %v1911 = vrot.slane %v240, 2
        %v1912 = vrot.slane %v241, 2
        %v1913 = vsel %vm964, %v1911, %v1912
        %v1914 = vrot.slane %v242, 2
        %v1915 = vsel %vm964, %v1912, %v1914
        %s1916 = scalar_lea.vmem %s1, 20
        %v1917 = vld [vmem:[%s1916] sm:$0xf]
        %v1918 = vsel %vm378, %v1913, 0
        %v1920 = vsel %vm378, %v1915, 0
        %v1923 = vsel %vm443, %v1917, 0
        %1925 = vmatprep.subr.mxu0 0.0
        %1926 = vmatpush1.msra.mxu0 0.0
        %1927 = vmatprep.subr.mxu0 0.0
        %1928 = vmatpush1.msra.mxu0 0.0
        %1929 = vmatprep.subr.mxu0 0.0
        %1930 = vmatpush1.msra.mxu0 0.0
        %1931 = vmatprep.subr.mxu0 0.0
        %1932 = vmatpush1.msra.mxu0 0.0
        %1933 = vmatprep.subr.mxu0 0.0
        %1934 = vmatpush1.msra.mxu0 0.0
        %1935 = vmatprep.subr.mxu0 0.0
        %1936 = vmatpush1.msra.mxu0 0.0
        %1937 = vmatprep.subr.mxu0 0.0
        %1938 = vmatpush1.msra.mxu0 0.0
        %1939 = vmatprep.subr.mxu0 0.0
        %1940 = vmatpush1.msra.mxu0 0.0
        %1941 = vmatprep.subr.mxu0 0.0
        %1942 = vmatpush1.msra.mxu0 0.0
        %1943 = vmatprep.subr.mxu0 0.0
        %1944 = vmatpush1.msra.mxu0 0.0
        %1945 = vmatprep.subr.mxu0 0.0
        %1946 = vmatpush1.msra.mxu0 0.0
        %1947 = vmatprep.subr.mxu0 0.0
        %1948 = vmatpush1.msra.mxu0 0.0
        %1949 = vmatprep.subr.mxu0 0.0
        %1950 = vmatpush1.msra.mxu0 0.0
        %1951 = vmatprep.subr.mxu0 0.0
        %1952 = vmatpush1.msra.mxu0 0.0
        %1953 = vmatprep.subr.mxu0 0.0
        %1954 = vmatpush1.msra.mxu0 0.0
        %1955 = vmatprep.subr.mxu0 0.0
        %1956 = vmatpush1.msra.mxu0 %v1923
        %1957 = vmatprep.subr.mxu0 0.0
        %1958 = vmatpush2.msra.mxu0 0.0
        %1959 = vmatprep.subr.mxu0 0.0
        %1960 = vmatpush2.msra.mxu0 0.0
        %1961 = vmatprep.subr.mxu0 0.0
        %1962 = vmatpush2.msra.mxu0 0.0
        %1963 = vmatprep.subr.mxu0 0.0
        %1964 = vmatpush2.msra.mxu0 0.0
        %1965 = vmatprep.subr.mxu0 0.0
        %1966 = vmatpush2.msra.mxu0 0.0
        %1967 = vmatprep.subr.mxu0 0.0
        %1968 = vmatpush2.msra.mxu0 0.0
        %1969 = vmatprep.subr.mxu0 0.0
        %1970 = vmatpush2.msra.mxu0 0.0
        %1971 = vmatprep.subr.mxu0 0.0
        %1972 = vmatpush2.msra.mxu0 0.0
        %1973 = vmatprep.subr.mxu0 0.0
        %1974 = vmatpush2.msra.mxu0 0.0
        %1975 = vmatprep.subr.mxu0 0.0
        %1976 = vmatpush2.msra.mxu0 0.0
        %1977 = vmatprep.subr.mxu0 0.0
        %1978 = vmatpush2.msra.mxu0 0.0
        %1979 = vmatprep.subr.mxu0 0.0
        %1980 = vmatpush2.msra.mxu0 0.0
        %1981 = vmatprep.subr.mxu0 0.0
        %1982 = vmatpush2.msra.mxu0 0.0
        %1983 = vmatprep.subr.mxu0 0.0
        %1984 = vmatpush2.msra.mxu0 0.0
        %1985 = vmatprep.subr.mxu0 0.0
        %1986 = vmatpush2.msra.mxu0 0.0
        %1987 = vmatprep.subr.mxu0 0.0
        %1988 = vmatpush2.msra.mxu0 0.0
        %1989 = vmatprep.mubr.f32.mxu0 0.0
        %1990 = vmatmul.mubr.f32.gmra.mxu0 %v1051
        %v1991 = vpop.f32.mrf.mxu0
        %v1992 = vadd.f32 0.0, %v1991
        %v1993 = vpop.f32.mrf.mxu0
        %1994 = vmatprep.mubr.f32.mxu0 0.0
        %1995 = vmatmul.mubr.f32.gmra.mxu0 %v1053
        %v1996 = vpop.f32.mrf.mxu0
        %v1997 = vadd.f32 0.0, %v1996
        %v1998 = vpop.f32.mrf.mxu0
        %1999 = vmatprep.mubr.f32.mxu0 0.0
        %2000 = vmatmul.mubr.f32.gmra.mxu0 %v1055
        %v2001 = vpop.f32.mrf.mxu0
        %v2002 = vadd.f32 0.0, %v2001
        %v2003 = vpop.f32.mrf.mxu0
        %2004 = vmatprep.mubr.f32.mxu0 0.0
        %2005 = vmatmul.mubr.f32.gmra.mxu0 %v1057
        %v2006 = vpop.f32.mrf.mxu0
        %v2007 = vadd.f32 0.0, %v2006
        %v2008 = vpop.f32.mrf.mxu0
        %2009 = vmatprep.mubr.f32.mxu0 0.0
        %2010 = vmatmul.mubr.f32.gmra.mxu0 %v1059
        %v2011 = vpop.f32.mrf.mxu0
        %v2012 = vadd.f32 0.0, %v2011
        %v2013 = vpop.f32.mrf.mxu0
        %2014 = vmatprep.mubr.f32.mxu0 0.0
        %2015 = vmatmul.mubr.f32.gmra.mxu0 %v1061
        %v2016 = vpop.f32.mrf.mxu0
        %v2017 = vadd.f32 0.0, %v2016
        %v2018 = vpop.f32.mrf.mxu0
        %2019 = vmatprep.mubr.f32.mxu0 0.0
        %2020 = vmatmul.mubr.f32.gmra.mxu0 %v1063
        %v2021 = vpop.f32.mrf.mxu0
        %v2022 = vadd.f32 0.0, %v2021
        %v2023 = vpop.f32.mrf.mxu0
        %2024 = vmatprep.mubr.f32.mxu0 0.0
        %2025 = vmatmul.mubr.f32.gmra.mxu0 %v1065
        %v2026 = vpop.f32.mrf.mxu0
        %v2027 = vadd.f32 0.0, %v2026
        %v2028 = vpop.f32.mrf.mxu0
        %2029 = vmatprep.mubr.f32.mxu0 0.0
        %2030 = vmatmul.mubr.f32.gmra.mxu0 %v1067
        %v2031 = vpop.f32.mrf.mxu0
        %v2032 = vadd.f32 0.0, %v2031
        %v2033 = vpop.f32.mrf.mxu0
        %2034 = vmatprep.mubr.f32.mxu0 0.0
        %2035 = vmatmul.mubr.f32.gmra.mxu0 %v1069
        %v2036 = vpop.f32.mrf.mxu0
        %v2037 = vadd.f32 0.0, %v2036
        %v2038 = vpop.f32.mrf.mxu0
        %2039 = vmatprep.mubr.f32.mxu0 0.0
        %2040 = vmatmul.mubr.f32.gmra.mxu0 %v1071
        %v2041 = vpop.f32.mrf.mxu0
        %v2042 = vadd.f32 0.0, %v2041
        %v2043 = vpop.f32.mrf.mxu0
        %2044 = vmatprep.mubr.f32.mxu0 0.0
        %2045 = vmatmul.mubr.f32.gmra.mxu0 %v1073
        %v2046 = vpop.f32.mrf.mxu0
        %v2047 = vadd.f32 0.0, %v2046
        %v2048 = vpop.f32.mrf.mxu0
        %2049 = vmatprep.mubr.f32.mxu0 0.0
        %2050 = vmatmul.mubr.f32.gmra.mxu0 %v1075
        %v2051 = vpop.f32.mrf.mxu0
        %v2052 = vadd.f32 0.0, %v2051
        %v2053 = vpop.f32.mrf.mxu0
        %2054 = vmatprep.mubr.f32.mxu0 0.0
        %2055 = vmatmul.mubr.f32.gmra.mxu0 %v1077
        %v2056 = vpop.f32.mrf.mxu0
        %v2057 = vadd.f32 0.0, %v2056
        %v2058 = vpop.f32.mrf.mxu0
        %2059 = vmatprep.mubr.f32.mxu0 0.0
        %2060 = vmatmul.mubr.f32.gmra.mxu0 %v1079
        %v2061 = vpop.f32.mrf.mxu0
        %v2062 = vadd.f32 0.0, %v2061
        %v2063 = vpop.f32.mrf.mxu0
        %2064 = vmatprep.mubr.f32.mxu0 0.0
        %2065 = vmatmul.mubr.f32.gmra.mxu0 %v1081
        %v2066 = vpop.f32.mrf.mxu0
        %v2067 = vadd.f32 0.0, %v2066
        %v2068 = vpop.f32.mrf.mxu0
        %2069 = vmatprep.mubr.f32.mxu0 0.0
        %2070 = vmatmul.mubr.f32.gmra.mxu0 %v1083
        %v2071 = vpop.f32.mrf.mxu0
        %v2072 = vadd.f32 0.0, %v2071
        %v2073 = vpop.f32.mrf.mxu0
        %2074 = vmatprep.mubr.f32.mxu0 0.0
        %2075 = vmatmul.mubr.f32.gmra.mxu0 %v1085
        %v2076 = vpop.f32.mrf.mxu0
        %v2077 = vadd.f32 0.0, %v2076
        %v2078 = vpop.f32.mrf.mxu0
        %2079 = vmatprep.mubr.f32.mxu0 0.0
        %2080 = vmatmul.mubr.f32.gmra.mxu0 %v1087
        %v2081 = vpop.f32.mrf.mxu0
        %v2082 = vadd.f32 0.0, %v2081
        %v2083 = vpop.f32.mrf.mxu0
        %2084 = vmatprep.mubr.f32.mxu0 0.0
        %2085 = vmatmul.mubr.f32.gmra.mxu0 %v1089
        %v2086 = vpop.f32.mrf.mxu0
        %v2087 = vadd.f32 0.0, %v2086
        %v2088 = vpop.f32.mrf.mxu0
        %2089 = vmatprep.mubr.f32.mxu0 0.0
        %2090 = vmatmul.mubr.f32.gmra.mxu0 %v1091
        %v2091 = vpop.f32.mrf.mxu0
        %v2092 = vadd.f32 0.0, %v2091
        %v2093 = vpop.f32.mrf.mxu0
        %2094 = vmatprep.mubr.f32.mxu0 0.0
        %2095 = vmatmul.mubr.f32.gmra.mxu0 %v1093
        %v2096 = vpop.f32.mrf.mxu0
        %v2097 = vadd.f32 0.0, %v2096
        %v2098 = vpop.f32.mrf.mxu0
        %2099 = vmatprep.mubr.f32.mxu0 0.0
        %2100 = vmatmul.mubr.f32.gmra.mxu0 %v1095
        %v2101 = vpop.f32.mrf.mxu0
        %v2102 = vadd.f32 0.0, %v2101
        %v2103 = vpop.f32.mrf.mxu0
        %2104 = vmatprep.mubr.f32.mxu0 0.0
        %2105 = vmatmul.mubr.f32.gmra.mxu0 %v1097
        %v2106 = vpop.f32.mrf.mxu0
        %v2107 = vadd.f32 0.0, %v2106
        %v2108 = vpop.f32.mrf.mxu0
        %2109 = vmatprep.mubr.f32.mxu0 0.0
        %2110 = vmatmul.mubr.f32.gmra.mxu0 %v1099
        %v2111 = vpop.f32.mrf.mxu0
        %v2112 = vadd.f32 0.0, %v2111
        %v2113 = vpop.f32.mrf.mxu0
        %2114 = vmatprep.mubr.f32.mxu0 0.0
        %2115 = vmatmul.mubr.f32.gmra.mxu0 %v1101
        %v2116 = vpop.f32.mrf.mxu0
        %v2117 = vadd.f32 0.0, %v2116
        %v2118 = vpop.f32.mrf.mxu0
        %2119 = vmatprep.mubr.f32.mxu0 0.0
        %2120 = vmatmul.mubr.f32.gmra.mxu0 %v1103
        %v2121 = vpop.f32.mrf.mxu0
        %v2122 = vadd.f32 0.0, %v2121
        %v2123 = vpop.f32.mrf.mxu0
        %2124 = vmatprep.mubr.f32.mxu0 0.0
        %2125 = vmatmul.mubr.f32.gmra.mxu0 %v1105
        %v2126 = vpop.f32.mrf.mxu0
        %v2127 = vadd.f32 0.0, %v2126
        %v2128 = vpop.f32.mrf.mxu0
        %2129 = vmatprep.mubr.f32.mxu0 0.0
        %2130 = vmatmul.mubr.f32.gmra.mxu0 %v1107
        %v2131 = vpop.f32.mrf.mxu0
        %v2132 = vadd.f32 0.0, %v2131
        %v2133 = vpop.f32.mrf.mxu0
        %2134 = vmatprep.mubr.f32.mxu0 0.0
        %2135 = vmatmul.mubr.f32.gmra.mxu0 %v1109
        %v2136 = vpop.f32.mrf.mxu0
        %v2137 = vadd.f32 0.0, %v2136
        %v2138 = vpop.f32.mrf.mxu0
        %2139 = vmatprep.mubr.f32.mxu0 0.0
        %2140 = vmatmul.mubr.f32.gmra.mxu0 %v1918
        %v2141 = vpop.f32.mrf.mxu0
        %v2142 = vadd.f32 0.0, %v2141
        %v2143 = vpop.f32.mrf.mxu0
        %2144 = vmatprep.mubr.f32.mxu0 0.0
        %2145 = vmatmul.mubr.f32.gmra.mxu0 %v1920
        %v2146 = vpop.f32.mrf.mxu0
        %v2147 = vadd.f32 0.0, %v2146
        %v2148 = vpop.f32.mrf.mxu0
        %2149 = vdwg.mxu0
        %v2150 = vadd.f32 %v1879, %v1992
        %v2151 = vadd.f32 %v1880, %v1997
        %v2152 = vadd.f32 %v1881, %v2002
        %v2153 = vadd.f32 %v1882, %v2007
        %v2154 = vadd.f32 %v1883, %v2012
        %v2155 = vadd.f32 %v1884, %v2017
        %v2156 = vadd.f32 %v1885, %v2022
        %v2157 = vadd.f32 %v1886, %v2027
        %v2158 = vadd.f32 %v1887, %v2032
        %v2159 = vadd.f32 %v1888, %v2037
        %v2160 = vadd.f32 %v1889, %v2042
        %v2161 = vadd.f32 %v1890, %v2047
        %v2162 = vadd.f32 %v1891, %v2052
        %v2163 = vadd.f32 %v1892, %v2057
        %v2164 = vadd.f32 %v1893, %v2062
        %v2165 = vadd.f32 %v1894, %v2067
        %v2166 = vadd.f32 %v1895, %v2072
        %v2167 = vadd.f32 %v1896, %v2077
        %v2168 = vadd.f32 %v1897, %v2082
        %v2169 = vadd.f32 %v1898, %v2087
        %v2170 = vadd.f32 %v1899, %v2092
        %v2171 = vadd.f32 %v1900, %v2097
        %v2172 = vadd.f32 %v1901, %v2102
        %v2173 = vadd.f32 %v1902, %v2107
        %v2174 = vadd.f32 %v1903, %v2112
        %v2175 = vadd.f32 %v1904, %v2117
        %v2176 = vadd.f32 %v1905, %v2122
        %v2177 = vadd.f32 %v1906, %v2127
        %v2178 = vadd.f32 %v1907, %v2132
        %v2179 = vadd.f32 %v1908, %v2137
        %v2180 = vadd.f32 %v1909, %v2142
        %v2181 = vadd.f32 %v1910, %v2147
        %s2182 = scalar_lea.vmem %s1, 24
        %v2183 = vld [vmem:[%s2182] sm:$0xf]
        %v2185 = vsel %vm378, %v243, 0
        %v2188 = vsel %vm378, %v244, 0
        %v2191 = vsel %vm443, %v2183, 0
        %2193 = vmatprep.subr.mxu0 0.0
        %2194 = vmatpush1.msra.mxu0 0.0
        %2195 = vmatprep.subr.mxu0 0.0
        %2196 = vmatpush1.msra.mxu0 0.0
        %2197 = vmatprep.subr.mxu0 0.0
        %2198 = vmatpush1.msra.mxu0 0.0
        %2199 = vmatprep.subr.mxu0 0.0
        %2200 = vmatpush1.msra.mxu0 0.0
        %2201 = vmatprep.subr.mxu0 0.0
        %2202 = vmatpush1.msra.mxu0 0.0
        %2203 = vmatprep.subr.mxu0 0.0
        %2204 = vmatpush1.msra.mxu0 0.0
        %2205 = vmatprep.subr.mxu0 0.0
        %2206 = vmatpush1.msra.mxu0 0.0
        %2207 = vmatprep.subr.mxu0 0.0
        %2208 = vmatpush1.msra.mxu0 0.0
        %2209 = vmatprep.subr.mxu0 0.0
        %2210 = vmatpush1.msra.mxu0 0.0
        %2211 = vmatprep.subr.mxu0 0.0
        %2212 = vmatpush1.msra.mxu0 0.0
        %2213 = vmatprep.subr.mxu0 0.0
        %2214 = vmatpush1.msra.mxu0 0.0
        %2215 = vmatprep.subr.mxu0 0.0
        %2216 = vmatpush1.msra.mxu0 0.0
        %2217 = vmatprep.subr.mxu0 0.0
        %2218 = vmatpush1.msra.mxu0 0.0
        %2219 = vmatprep.subr.mxu0 0.0
        %2220 = vmatpush1.msra.mxu0 0.0
        %2221 = vmatprep.subr.mxu0 0.0
        %2222 = vmatpush1.msra.mxu0 0.0
        %2223 = vmatprep.subr.mxu0 0.0
        %2224 = vmatpush1.msra.mxu0 %v2191
        %2225 = vmatprep.subr.mxu0 0.0
        %2226 = vmatpush2.msra.mxu0 0.0
        %2227 = vmatprep.subr.mxu0 0.0
        %2228 = vmatpush2.msra.mxu0 0.0
        %2229 = vmatprep.subr.mxu0 0.0
        %2230 = vmatpush2.msra.mxu0 0.0
        %2231 = vmatprep.subr.mxu0 0.0
        %2232 = vmatpush2.msra.mxu0 0.0
        %2233 = vmatprep.subr.mxu0 0.0
        %2234 = vmatpush2.msra.mxu0 0.0
        %2235 = vmatprep.subr.mxu0 0.0
        %2236 = vmatpush2.msra.mxu0 0.0
        %2237 = vmatprep.subr.mxu0 0.0
        %2238 = vmatpush2.msra.mxu0 0.0
        %2239 = vmatprep.subr.mxu0 0.0
        %2240 = vmatpush2.msra.mxu0 0.0
        %2241 = vmatprep.subr.mxu0 0.0
        %2242 = vmatpush2.msra.mxu0 0.0
        %2243 = vmatprep.subr.mxu0 0.0
        %2244 = vmatpush2.msra.mxu0 0.0
        %2245 = vmatprep.subr.mxu0 0.0
        %2246 = vmatpush2.msra.mxu0 0.0
        %2247 = vmatprep.subr.mxu0 0.0
        %2248 = vmatpush2.msra.mxu0 0.0
        %2249 = vmatprep.subr.mxu0 0.0
        %2250 = vmatpush2.msra.mxu0 0.0
        %2251 = vmatprep.subr.mxu0 0.0
        %2252 = vmatpush2.msra.mxu0 0.0
        %2253 = vmatprep.subr.mxu0 0.0
        %2254 = vmatpush2.msra.mxu0 0.0
        %2255 = vmatprep.subr.mxu0 0.0
        %2256 = vmatpush2.msra.mxu0 0.0
        %2257 = vmatprep.mubr.f32.mxu0 0.0
        %2258 = vmatmul.mubr.f32.gmra.mxu0 %v680
        %v2259 = vpop.f32.mrf.mxu0
        %v2260 = vadd.f32 0.0, %v2259
        %v2261 = vpop.f32.mrf.mxu0
        %2262 = vmatprep.mubr.f32.mxu0 0.0
        %2263 = vmatmul.mubr.f32.gmra.mxu0 %v682
        %v2264 = vpop.f32.mrf.mxu0
        %v2265 = vadd.f32 0.0, %v2264
        %v2266 = vpop.f32.mrf.mxu0
        %2267 = vmatprep.mubr.f32.mxu0 0.0
        %2268 = vmatmul.mubr.f32.gmra.mxu0 %v684
        %v2269 = vpop.f32.mrf.mxu0
        %v2270 = vadd.f32 0.0, %v2269
        %v2271 = vpop.f32.mrf.mxu0
        %2272 = vmatprep.mubr.f32.mxu0 0.0
        %2273 = vmatmul.mubr.f32.gmra.mxu0 %v686
        %v2274 = vpop.f32.mrf.mxu0
        %v2275 = vadd.f32 0.0, %v2274
        %v2276 = vpop.f32.mrf.mxu0
        %2277 = vmatprep.mubr.f32.mxu0 0.0
        %2278 = vmatmul.mubr.f32.gmra.mxu0 %v688
        %v2279 = vpop.f32.mrf.mxu0
        %v2280 = vadd.f32 0.0, %v2279
        %v2281 = vpop.f32.mrf.mxu0
        %2282 = vmatprep.mubr.f32.mxu0 0.0
        %2283 = vmatmul.mubr.f32.gmra.mxu0 %v690
        %v2284 = vpop.f32.mrf.mxu0
        %v2285 = vadd.f32 0.0, %v2284
        %v2286 = vpop.f32.mrf.mxu0
        %2287 = vmatprep.mubr.f32.mxu0 0.0
        %2288 = vmatmul.mubr.f32.gmra.mxu0 %v692
        %v2289 = vpop.f32.mrf.mxu0
        %v2290 = vadd.f32 0.0, %v2289
        %v2291 = vpop.f32.mrf.mxu0
        %2292 = vmatprep.mubr.f32.mxu0 0.0
        %2293 = vmatmul.mubr.f32.gmra.mxu0 %v694
        %v2294 = vpop.f32.mrf.mxu0
        %v2295 = vadd.f32 0.0, %v2294
        %v2296 = vpop.f32.mrf.mxu0
        %2297 = vmatprep.mubr.f32.mxu0 0.0
        %2298 = vmatmul.mubr.f32.gmra.mxu0 %v696
        %v2299 = vpop.f32.mrf.mxu0
        %v2300 = vadd.f32 0.0, %v2299
        %v2301 = vpop.f32.mrf.mxu0
        %2302 = vmatprep.mubr.f32.mxu0 0.0
        %2303 = vmatmul.mubr.f32.gmra.mxu0 %v698
        %v2304 = vpop.f32.mrf.mxu0
        %v2305 = vadd.f32 0.0, %v2304
        %v2306 = vpop.f32.mrf.mxu0
        %2307 = vmatprep.mubr.f32.mxu0 0.0
        %2308 = vmatmul.mubr.f32.gmra.mxu0 %v700
        %v2309 = vpop.f32.mrf.mxu0
        %v2310 = vadd.f32 0.0, %v2309
        %v2311 = vpop.f32.mrf.mxu0
        %2312 = vmatprep.mubr.f32.mxu0 0.0
        %2313 = vmatmul.mubr.f32.gmra.mxu0 %v702
        %v2314 = vpop.f32.mrf.mxu0
        %v2315 = vadd.f32 0.0, %v2314
        %v2316 = vpop.f32.mrf.mxu0
        %2317 = vmatprep.mubr.f32.mxu0 0.0
        %2318 = vmatmul.mubr.f32.gmra.mxu0 %v704
        %v2319 = vpop.f32.mrf.mxu0
        %v2320 = vadd.f32 0.0, %v2319
        %v2321 = vpop.f32.mrf.mxu0
        %2322 = vmatprep.mubr.f32.mxu0 0.0
        %2323 = vmatmul.mubr.f32.gmra.mxu0 %v706
        %v2324 = vpop.f32.mrf.mxu0
        %v2325 = vadd.f32 0.0, %v2324
        %v2326 = vpop.f32.mrf.mxu0
        %2327 = vmatprep.mubr.f32.mxu0 0.0
        %2328 = vmatmul.mubr.f32.gmra.mxu0 %v708
        %v2329 = vpop.f32.mrf.mxu0
        %v2330 = vadd.f32 0.0, %v2329
        %v2331 = vpop.f32.mrf.mxu0
        %2332 = vmatprep.mubr.f32.mxu0 0.0
        %2333 = vmatmul.mubr.f32.gmra.mxu0 %v710
        %v2334 = vpop.f32.mrf.mxu0
        %v2335 = vadd.f32 0.0, %v2334
        %v2336 = vpop.f32.mrf.mxu0
        %2337 = vmatprep.mubr.f32.mxu0 0.0
        %2338 = vmatmul.mubr.f32.gmra.mxu0 %v712
        %v2339 = vpop.f32.mrf.mxu0
        %v2340 = vadd.f32 0.0, %v2339
        %v2341 = vpop.f32.mrf.mxu0
        %2342 = vmatprep.mubr.f32.mxu0 0.0
        %2343 = vmatmul.mubr.f32.gmra.mxu0 %v714
        %v2344 = vpop.f32.mrf.mxu0
        %v2345 = vadd.f32 0.0, %v2344
        %v2346 = vpop.f32.mrf.mxu0
        %2347 = vmatprep.mubr.f32.mxu0 0.0
        %2348 = vmatmul.mubr.f32.gmra.mxu0 %v716
        %v2349 = vpop.f32.mrf.mxu0
        %v2350 = vadd.f32 0.0, %v2349
        %v2351 = vpop.f32.mrf.mxu0
        %2352 = vmatprep.mubr.f32.mxu0 0.0
        %2353 = vmatmul.mubr.f32.gmra.mxu0 %v718
        %v2354 = vpop.f32.mrf.mxu0
        %v2355 = vadd.f32 0.0, %v2354
        %v2356 = vpop.f32.mrf.mxu0
        %2357 = vmatprep.mubr.f32.mxu0 0.0
        %2358 = vmatmul.mubr.f32.gmra.mxu0 %v720
        %v2359 = vpop.f32.mrf.mxu0
        %v2360 = vadd.f32 0.0, %v2359
        %v2361 = vpop.f32.mrf.mxu0
        %2362 = vmatprep.mubr.f32.mxu0 0.0
        %2363 = vmatmul.mubr.f32.gmra.mxu0 %v722
        %v2364 = vpop.f32.mrf.mxu0
        %v2365 = vadd.f32 0.0, %v2364
        %v2366 = vpop.f32.mrf.mxu0
        %2367 = vmatprep.mubr.f32.mxu0 0.0
        %2368 = vmatmul.mubr.f32.gmra.mxu0 %v724
        %v2369 = vpop.f32.mrf.mxu0
        %v2370 = vadd.f32 0.0, %v2369
        %v2371 = vpop.f32.mrf.mxu0
        %2372 = vmatprep.mubr.f32.mxu0 0.0
        %2373 = vmatmul.mubr.f32.gmra.mxu0 %v726
        %v2374 = vpop.f32.mrf.mxu0
        %v2375 = vadd.f32 0.0, %v2374
        %v2376 = vpop.f32.mrf.mxu0
        %2377 = vmatprep.mubr.f32.mxu0 0.0
        %2378 = vmatmul.mubr.f32.gmra.mxu0 %v728
        %v2379 = vpop.f32.mrf.mxu0
        %v2380 = vadd.f32 0.0, %v2379
        %v2381 = vpop.f32.mrf.mxu0
        %2382 = vmatprep.mubr.f32.mxu0 0.0
        %2383 = vmatmul.mubr.f32.gmra.mxu0 %v730
        %v2384 = vpop.f32.mrf.mxu0
        %v2385 = vadd.f32 0.0, %v2384
        %v2386 = vpop.f32.mrf.mxu0
        %2387 = vmatprep.mubr.f32.mxu0 0.0
        %2388 = vmatmul.mubr.f32.gmra.mxu0 %v732
        %v2389 = vpop.f32.mrf.mxu0
        %v2390 = vadd.f32 0.0, %v2389
        %v2391 = vpop.f32.mrf.mxu0
        %2392 = vmatprep.mubr.f32.mxu0 0.0
        %2393 = vmatmul.mubr.f32.gmra.mxu0 %v734
        %v2394 = vpop.f32.mrf.mxu0
        %v2395 = vadd.f32 0.0, %v2394
        %v2396 = vpop.f32.mrf.mxu0
        %2397 = vmatprep.mubr.f32.mxu0 0.0
        %2398 = vmatmul.mubr.f32.gmra.mxu0 %v1374
        %v2399 = vpop.f32.mrf.mxu0
        %v2400 = vadd.f32 0.0, %v2399
        %v2401 = vpop.f32.mrf.mxu0
        %2402 = vmatprep.mubr.f32.mxu0 0.0
        %2403 = vmatmul.mubr.f32.gmra.mxu0 %v1377
        %v2404 = vpop.f32.mrf.mxu0
        %v2405 = vadd.f32 0.0, %v2404
        %v2406 = vpop.f32.mrf.mxu0
        %2407 = vmatprep.mubr.f32.mxu0 0.0
        %2408 = vmatmul.mubr.f32.gmra.mxu0 %v2185
        %v2409 = vpop.f32.mrf.mxu0
        %v2410 = vadd.f32 0.0, %v2409
        %v2411 = vpop.f32.mrf.mxu0
        %2412 = vmatprep.mubr.f32.mxu0 0.0
        %2413 = vmatmul.mubr.f32.gmra.mxu0 %v2188
        %v2414 = vpop.f32.mrf.mxu0
        %v2415 = vadd.f32 0.0, %v2414
        %v2416 = vpop.f32.mrf.mxu0
        %2417 = vdwg.mxu0
        %v2418 = vadd.f32 %v2150, %v2260
        %v2419 = vadd.f32 %v2151, %v2265
        %v2420 = vadd.f32 %v2152, %v2270
        %v2421 = vadd.f32 %v2153, %v2275
        %v2422 = vadd.f32 %v2154, %v2280
        %v2423 = vadd.f32 %v2155, %v2285
        %v2424 = vadd.f32 %v2156, %v2290
        %v2425 = vadd.f32 %v2157, %v2295
        %v2426 = vadd.f32 %v2158, %v2300
        %v2427 = vadd.f32 %v2159, %v2305
        %v2428 = vadd.f32 %v2160, %v2310
        %v2429 = vadd.f32 %v2161, %v2315
        %v2430 = vadd.f32 %v2162, %v2320
        %v2431 = vadd.f32 %v2163, %v2325
        %v2432 = vadd.f32 %v2164, %v2330
        %v2433 = vadd.f32 %v2165, %v2335
        %v2434 = vadd.f32 %v2166, %v2340
        %v2435 = vadd.f32 %v2167, %v2345
        %v2436 = vadd.f32 %v2168, %v2350
        %v2437 = vadd.f32 %v2169, %v2355
        %v2438 = vadd.f32 %v2170, %v2360
        %v2439 = vadd.f32 %v2171, %v2365
        %v2440 = vadd.f32 %v2172, %v2370
        %v2441 = vadd.f32 %v2173, %v2375
        %v2442 = vadd.f32 %v2174, %v2380
        %v2443 = vadd.f32 %v2175, %v2385
        %v2444 = vadd.f32 %v2176, %v2390
        %v2445 = vadd.f32 %v2177, %v2395
        %v2446 = vadd.f32 %v2178, %v2400
        %v2447 = vadd.f32 %v2179, %v2405
        %v2448 = vadd.f32 %v2180, %v2410
        %v2449 = vadd.f32 %v2181, %v2415
        %v2451 = vrot.slane %v243, 1
        %v2452 = vrot.slane %v244, 1
        %v2453 = vsel %vm295, %v2451, %v2452
        %v2454 = vrot.slane %v245, 1
        %v2455 = vsel %vm295, %v2452, %v2454
        %s2456 = scalar_lea.vmem %s1, 28
        %v2457 = vld [vmem:[%s2456] sm:$0xf]
        %v2458 = vsel %vm378, %v2453, 0
        %v2460 = vsel %vm378, %v2455, 0
        %v2463 = vsel %vm443, %v2457, 0
        %2465 = vmatprep.subr.mxu0 0.0
        %2466 = vmatpush1.msra.mxu0 0.0
        %2467 = vmatprep.subr.mxu0 0.0
        %2468 = vmatpush1.msra.mxu0 0.0
        %2469 = vmatprep.subr.mxu0 0.0
        %2470 = vmatpush1.msra.mxu0 0.0
        %2471 = vmatprep.subr.mxu0 0.0
        %2472 = vmatpush1.msra.mxu0 0.0
        %2473 = vmatprep.subr.mxu0 0.0
        %2474 = vmatpush1.msra.mxu0 0.0
        %2475 = vmatprep.subr.mxu0 0.0
        %2476 = vmatpush1.msra.mxu0 0.0
        %2477 = vmatprep.subr.mxu0 0.0
        %2478 = vmatpush1.msra.mxu0 0.0
        %2479 = vmatprep.subr.mxu0 0.0
        %2480 = vmatpush1.msra.mxu0 0.0
        %2481 = vmatprep.subr.mxu0 0.0
        %2482 = vmatpush1.msra.mxu0 0.0
        %2483 = vmatprep.subr.mxu0 0.0
        %2484 = vmatpush1.msra.mxu0 0.0
        %2485 = vmatprep.subr.mxu0 0.0
        %2486 = vmatpush1.msra.mxu0 0.0
        %2487 = vmatprep.subr.mxu0 0.0
        %2488 = vmatpush1.msra.mxu0 0.0
        %2489 = vmatprep.subr.mxu0 0.0
        %2490 = vmatpush1.msra.mxu0 0.0
        %2491 = vmatprep.subr.mxu0 0.0
        %2492 = vmatpush1.msra.mxu0 0.0
        %2493 = vmatprep.subr.mxu0 0.0
        %2494 = vmatpush1.msra.mxu0 0.0
        %2495 = vmatprep.subr.mxu0 0.0
        %2496 = vmatpush1.msra.mxu0 %v2463
        %2497 = vmatprep.subr.mxu0 0.0
        %2498 = vmatpush2.msra.mxu0 0.0
        %2499 = vmatprep.subr.mxu0 0.0
        %2500 = vmatpush2.msra.mxu0 0.0
        %2501 = vmatprep.subr.mxu0 0.0
        %2502 = vmatpush2.msra.mxu0 0.0
        %2503 = vmatprep.subr.mxu0 0.0
        %2504 = vmatpush2.msra.mxu0 0.0
        %2505 = vmatprep.subr.mxu0 0.0
        %2506 = vmatpush2.msra.mxu0 0.0
        %2507 = vmatprep.subr.mxu0 0.0
        %2508 = vmatpush2.msra.mxu0 0.0
        %2509 = vmatprep.subr.mxu0 0.0
        %2510 = vmatpush2.msra.mxu0 0.0
        %2511 = vmatprep.subr.mxu0 0.0
        %2512 = vmatpush2.msra.mxu0 0.0
        %2513 = vmatprep.subr.mxu0 0.0
        %2514 = vmatpush2.msra.mxu0 0.0
        %2515 = vmatprep.subr.mxu0 0.0
        %2516 = vmatpush2.msra.mxu0 0.0
        %2517 = vmatprep.subr.mxu0 0.0
        %2518 = vmatpush2.msra.mxu0 0.0
        %2519 = vmatprep.subr.mxu0 0.0
        %2520 = vmatpush2.msra.mxu0 0.0
        %2521 = vmatprep.subr.mxu0 0.0
        %2522 = vmatpush2.msra.mxu0 0.0
        %2523 = vmatprep.subr.mxu0 0.0
        %2524 = vmatpush2.msra.mxu0 0.0
        %2525 = vmatprep.subr.mxu0 0.0
        %2526 = vmatpush2.msra.mxu0 0.0
        %2527 = vmatprep.subr.mxu0 0.0
        %2528 = vmatpush2.msra.mxu0 0.0
        %2529 = vmatprep.mubr.f32.mxu0 0.0
        %2530 = vmatmul.mubr.f32.gmra.mxu0 %v387
        %v2531 = vpop.f32.mrf.mxu0
        %v2532 = vadd.f32 0.0, %v2531
        %v2533 = vpop.f32.mrf.mxu0
        %2534 = vmatprep.mubr.f32.mxu0 0.0
        %2535 = vmatmul.mubr.f32.gmra.mxu0 %v389
        %v2536 = vpop.f32.mrf.mxu0
        %v2537 = vadd.f32 0.0, %v2536
        %v2538 = vpop.f32.mrf.mxu0
        %2539 = vmatprep.mubr.f32.mxu0 0.0
        %2540 = vmatmul.mubr.f32.gmra.mxu0 %v391
        %v2541 = vpop.f32.mrf.mxu0
        %v2542 = vadd.f32 0.0, %v2541
        %v2543 = vpop.f32.mrf.mxu0
        %2544 = vmatprep.mubr.f32.mxu0 0.0
        %2545 = vmatmul.mubr.f32.gmra.mxu0 %v393
        %v2546 = vpop.f32.mrf.mxu0
        %v2547 = vadd.f32 0.0, %v2546
        %v2548 = vpop.f32.mrf.mxu0
        %2549 = vmatprep.mubr.f32.mxu0 0.0
        %2550 = vmatmul.mubr.f32.gmra.mxu0 %v395
        %v2551 = vpop.f32.mrf.mxu0
        %v2552 = vadd.f32 0.0, %v2551
        %v2553 = vpop.f32.mrf.mxu0
        %2554 = vmatprep.mubr.f32.mxu0 0.0
        %2555 = vmatmul.mubr.f32.gmra.mxu0 %v397
        %v2556 = vpop.f32.mrf.mxu0
        %v2557 = vadd.f32 0.0, %v2556
        %v2558 = vpop.f32.mrf.mxu0
        %2559 = vmatprep.mubr.f32.mxu0 0.0
        %2560 = vmatmul.mubr.f32.gmra.mxu0 %v399
        %v2561 = vpop.f32.mrf.mxu0
        %v2562 = vadd.f32 0.0, %v2561
        %v2563 = vpop.f32.mrf.mxu0
        %2564 = vmatprep.mubr.f32.mxu0 0.0
        %2565 = vmatmul.mubr.f32.gmra.mxu0 %v401
        %v2566 = vpop.f32.mrf.mxu0
        %v2567 = vadd.f32 0.0, %v2566
        %v2568 = vpop.f32.mrf.mxu0
        %2569 = vmatprep.mubr.f32.mxu0 0.0
        %2570 = vmatmul.mubr.f32.gmra.mxu0 %v403
        %v2571 = vpop.f32.mrf.mxu0
        %v2572 = vadd.f32 0.0, %v2571
        %v2573 = vpop.f32.mrf.mxu0
        %2574 = vmatprep.mubr.f32.mxu0 0.0
        %2575 = vmatmul.mubr.f32.gmra.mxu0 %v405
        %v2576 = vpop.f32.mrf.mxu0
        %v2577 = vadd.f32 0.0, %v2576
        %v2578 = vpop.f32.mrf.mxu0
        %2579 = vmatprep.mubr.f32.mxu0 0.0
        %2580 = vmatmul.mubr.f32.gmra.mxu0 %v407
        %v2581 = vpop.f32.mrf.mxu0
        %v2582 = vadd.f32 0.0, %v2581
        %v2583 = vpop.f32.mrf.mxu0
        %2584 = vmatprep.mubr.f32.mxu0 0.0
        %2585 = vmatmul.mubr.f32.gmra.mxu0 %v409
        %v2586 = vpop.f32.mrf.mxu0
        %v2587 = vadd.f32 0.0, %v2586
        %v2588 = vpop.f32.mrf.mxu0
        %2589 = vmatprep.mubr.f32.mxu0 0.0
        %2590 = vmatmul.mubr.f32.gmra.mxu0 %v411
        %v2591 = vpop.f32.mrf.mxu0
        %v2592 = vadd.f32 0.0, %v2591
        %v2593 = vpop.f32.mrf.mxu0
        %2594 = vmatprep.mubr.f32.mxu0 0.0
        %2595 = vmatmul.mubr.f32.gmra.mxu0 %v413
        %v2596 = vpop.f32.mrf.mxu0
        %v2597 = vadd.f32 0.0, %v2596
        %v2598 = vpop.f32.mrf.mxu0
        %2599 = vmatprep.mubr.f32.mxu0 0.0
        %2600 = vmatmul.mubr.f32.gmra.mxu0 %v415
        %v2601 = vpop.f32.mrf.mxu0
        %v2602 = vadd.f32 0.0, %v2601
        %v2603 = vpop.f32.mrf.mxu0
        %2604 = vmatprep.mubr.f32.mxu0 0.0
        %2605 = vmatmul.mubr.f32.gmra.mxu0 %v417
        %v2606 = vpop.f32.mrf.mxu0
        %v2607 = vadd.f32 0.0, %v2606
        %v2608 = vpop.f32.mrf.mxu0
        %2609 = vmatprep.mubr.f32.mxu0 0.0
        %2610 = vmatmul.mubr.f32.gmra.mxu0 %v419
        %v2611 = vpop.f32.mrf.mxu0
        %v2612 = vadd.f32 0.0, %v2611
        %v2613 = vpop.f32.mrf.mxu0
        %2614 = vmatprep.mubr.f32.mxu0 0.0
        %2615 = vmatmul.mubr.f32.gmra.mxu0 %v421
        %v2616 = vpop.f32.mrf.mxu0
        %v2617 = vadd.f32 0.0, %v2616
        %v2618 = vpop.f32.mrf.mxu0
        %2619 = vmatprep.mubr.f32.mxu0 0.0
        %2620 = vmatmul.mubr.f32.gmra.mxu0 %v423
        %v2621 = vpop.f32.mrf.mxu0
        %v2622 = vadd.f32 0.0, %v2621
        %v2623 = vpop.f32.mrf.mxu0
        %2624 = vmatprep.mubr.f32.mxu0 0.0
        %2625 = vmatmul.mubr.f32.gmra.mxu0 %v425
        %v2626 = vpop.f32.mrf.mxu0
        %v2627 = vadd.f32 0.0, %v2626
        %v2628 = vpop.f32.mrf.mxu0
        %2629 = vmatprep.mubr.f32.mxu0 0.0
        %2630 = vmatmul.mubr.f32.gmra.mxu0 %v427
        %v2631 = vpop.f32.mrf.mxu0
        %v2632 = vadd.f32 0.0, %v2631
        %v2633 = vpop.f32.mrf.mxu0
        %2634 = vmatprep.mubr.f32.mxu0 0.0
        %2635 = vmatmul.mubr.f32.gmra.mxu0 %v429
        %v2636 = vpop.f32.mrf.mxu0
        %v2637 = vadd.f32 0.0, %v2636
        %v2638 = vpop.f32.mrf.mxu0
        %2639 = vmatprep.mubr.f32.mxu0 0.0
        %2640 = vmatmul.mubr.f32.gmra.mxu0 %v431
        %v2641 = vpop.f32.mrf.mxu0
        %v2642 = vadd.f32 0.0, %v2641
        %v2643 = vpop.f32.mrf.mxu0
        %2644 = vmatprep.mubr.f32.mxu0 0.0
        %2645 = vmatmul.mubr.f32.gmra.mxu0 %v433
        %v2646 = vpop.f32.mrf.mxu0
        %v2647 = vadd.f32 0.0, %v2646
        %v2648 = vpop.f32.mrf.mxu0
        %2649 = vmatprep.mubr.f32.mxu0 0.0
        %2650 = vmatmul.mubr.f32.gmra.mxu0 %v435
        %v2651 = vpop.f32.mrf.mxu0
        %v2652 = vadd.f32 0.0, %v2651
        %v2653 = vpop.f32.mrf.mxu0
        %2654 = vmatprep.mubr.f32.mxu0 0.0
        %2655 = vmatmul.mubr.f32.gmra.mxu0 %v437
        %v2656 = vpop.f32.mrf.mxu0
        %v2657 = vadd.f32 0.0, %v2656
        %v2658 = vpop.f32.mrf.mxu0
        %2659 = vmatprep.mubr.f32.mxu0 0.0
        %2660 = vmatmul.mubr.f32.gmra.mxu0 %v439
        %v2661 = vpop.f32.mrf.mxu0
        %v2662 = vadd.f32 0.0, %v2661
        %v2663 = vpop.f32.mrf.mxu0
        %2664 = vmatprep.mubr.f32.mxu0 0.0
        %2665 = vmatmul.mubr.f32.gmra.mxu0 %v441
        %v2666 = vpop.f32.mrf.mxu0
        %v2667 = vadd.f32 0.0, %v2666
        %v2668 = vpop.f32.mrf.mxu0
        %2669 = vmatprep.mubr.f32.mxu0 0.0
        %2670 = vmatmul.mubr.f32.gmra.mxu0 %v1647
        %v2671 = vpop.f32.mrf.mxu0
        %v2672 = vadd.f32 0.0, %v2671
        %v2673 = vpop.f32.mrf.mxu0
        %2674 = vmatprep.mubr.f32.mxu0 0.0
        %2675 = vmatmul.mubr.f32.gmra.mxu0 %v1649
        %v2676 = vpop.f32.mrf.mxu0
        %v2677 = vadd.f32 0.0, %v2676
        %v2678 = vpop.f32.mrf.mxu0
        %2679 = vmatprep.mubr.f32.mxu0 0.0
        %2680 = vmatmul.mubr.f32.gmra.mxu0 %v2458
        %v2681 = vpop.f32.mrf.mxu0
        %v2682 = vadd.f32 0.0, %v2681
        %v2683 = vpop.f32.mrf.mxu0
        %2684 = vmatprep.mubr.f32.mxu0 0.0
        %2685 = vmatmul.mubr.f32.gmra.mxu0 %v2460
        %v2686 = vpop.f32.mrf.mxu0
        %v2687 = vadd.f32 0.0, %v2686
        %v2688 = vpop.f32.mrf.mxu0
        %2689 = vdwg.mxu0
        %v2690 = vadd.f32 %v2418, %v2532
        %v2691 = vadd.f32 %v2419, %v2537
        %v2692 = vadd.f32 %v2420, %v2542
        %v2693 = vadd.f32 %v2421, %v2547
        %v2694 = vadd.f32 %v2422, %v2552
        %v2695 = vadd.f32 %v2423, %v2557
        %v2696 = vadd.f32 %v2424, %v2562
        %v2697 = vadd.f32 %v2425, %v2567
        %v2698 = vadd.f32 %v2426, %v2572
        %v2699 = vadd.f32 %v2427, %v2577
        %v2700 = vadd.f32 %v2428, %v2582
        %v2701 = vadd.f32 %v2429, %v2587
        %v2702 = vadd.f32 %v2430, %v2592
        %v2703 = vadd.f32 %v2431, %v2597
        %v2704 = vadd.f32 %v2432, %v2602
        %v2705 = vadd.f32 %v2433, %v2607
        %v2706 = vadd.f32 %v2434, %v2612
        %v2707 = vadd.f32 %v2435, %v2617
        %v2708 = vadd.f32 %v2436, %v2622
        %v2709 = vadd.f32 %v2437, %v2627
        %v2710 = vadd.f32 %v2438, %v2632
        %v2711 = vadd.f32 %v2439, %v2637
        %v2712 = vadd.f32 %v2440, %v2642
        %v2713 = vadd.f32 %v2441, %v2647
        %v2714 = vadd.f32 %v2442, %v2652
        %v2715 = vadd.f32 %v2443, %v2657
        %v2716 = vadd.f32 %v2444, %v2662
        %v2717 = vadd.f32 %v2445, %v2667
        %v2718 = vadd.f32 %v2446, %v2672
        %v2719 = vadd.f32 %v2447, %v2677
        %v2720 = vadd.f32 %v2448, %v2682
        %v2721 = vadd.f32 %v2449, %v2687
        %v2722 = vrot.slane %v243, 2
        %v2723 = vrot.slane %v244, 2
        %v2724 = vsel %vm964, %v2722, %v2723
        %v2725 = vrot.slane %v245, 2
        %v2726 = vsel %vm964, %v2723, %v2725
        %s2727 = scalar_lea.vmem %s1, 32
        %v2728 = vld [vmem:[%s2727] sm:$0xf]
        %v2729 = vsel %vm378, %v2724, 0
        %v2731 = vsel %vm378, %v2726, 0
        %v2734 = vsel %vm443, %v2728, 0
        %2736 = vmatprep.subr.mxu0 0.0
        %2737 = vmatpush1.msra.mxu0 0.0
        %2738 = vmatprep.subr.mxu0 0.0
        %2739 = vmatpush1.msra.mxu0 0.0
        %2740 = vmatprep.subr.mxu0 0.0
        %2741 = vmatpush1.msra.mxu0 0.0
        %2742 = vmatprep.subr.mxu0 0.0
        %2743 = vmatpush1.msra.mxu0 0.0
        %2744 = vmatprep.subr.mxu0 0.0
        %2745 = vmatpush1.msra.mxu0 0.0
        %2746 = vmatprep.subr.mxu0 0.0
        %2747 = vmatpush1.msra.mxu0 0.0
        %2748 = vmatprep.subr.mxu0 0.0
        %2749 = vmatpush1.msra.mxu0 0.0
        %2750 = vmatprep.subr.mxu0 0.0
        %2751 = vmatpush1.msra.mxu0 0.0
        %2752 = vmatprep.subr.mxu0 0.0
        %2753 = vmatpush1.msra.mxu0 0.0
        %2754 = vmatprep.subr.mxu0 0.0
        %2755 = vmatpush1.msra.mxu0 0.0
        %2756 = vmatprep.subr.mxu0 0.0
        %2757 = vmatpush1.msra.mxu0 0.0
        %2758 = vmatprep.subr.mxu0 0.0
        %2759 = vmatpush1.msra.mxu0 0.0
        %2760 = vmatprep.subr.mxu0 0.0
        %2761 = vmatpush1.msra.mxu0 0.0
        %2762 = vmatprep.subr.mxu0 0.0
        %2763 = vmatpush1.msra.mxu0 0.0
        %2764 = vmatprep.subr.mxu0 0.0
        %2765 = vmatpush1.msra.mxu0 0.0
        %2766 = vmatprep.subr.mxu0 0.0
        %2767 = vmatpush1.msra.mxu0 %v2734
        %2768 = vmatprep.subr.mxu0 0.0
        %2769 = vmatpush2.msra.mxu0 0.0
        %2770 = vmatprep.subr.mxu0 0.0
        %2771 = vmatpush2.msra.mxu0 0.0
        %2772 = vmatprep.subr.mxu0 0.0
        %2773 = vmatpush2.msra.mxu0 0.0
        %2774 = vmatprep.subr.mxu0 0.0
        %2775 = vmatpush2.msra.mxu0 0.0
        %2776 = vmatprep.subr.mxu0 0.0
        %2777 = vmatpush2.msra.mxu0 0.0
        %2778 = vmatprep.subr.mxu0 0.0
        %2779 = vmatpush2.msra.mxu0 0.0
        %2780 = vmatprep.subr.mxu0 0.0
        %2781 = vmatpush2.msra.mxu0 0.0
        %2782 = vmatprep.subr.mxu0 0.0
        %2783 = vmatpush2.msra.mxu0 0.0
        %2784 = vmatprep.subr.mxu0 0.0
        %2785 = vmatpush2.msra.mxu0 0.0
        %2786 = vmatprep.subr.mxu0 0.0
        %2787 = vmatpush2.msra.mxu0 0.0
        %2788 = vmatprep.subr.mxu0 0.0
        %2789 = vmatpush2.msra.mxu0 0.0
        %2790 = vmatprep.subr.mxu0 0.0
        %2791 = vmatpush2.msra.mxu0 0.0
        %2792 = vmatprep.subr.mxu0 0.0
        %2793 = vmatpush2.msra.mxu0 0.0
        %2794 = vmatprep.subr.mxu0 0.0
        %2795 = vmatpush2.msra.mxu0 0.0
        %2796 = vmatprep.subr.mxu0 0.0
        %2797 = vmatpush2.msra.mxu0 0.0
        %2798 = vmatprep.subr.mxu0 0.0
        %2799 = vmatpush2.msra.mxu0 0.0
        %2800 = vmatprep.mubr.f32.mxu0 0.0
        %2801 = vmatmul.mubr.f32.gmra.mxu0 %v1055
        %v2802 = vpop.f32.mrf.mxu0
        %v2803 = vadd.f32 0.0, %v2802
        %v2804 = vpop.f32.mrf.mxu0
        %2805 = vmatprep.mubr.f32.mxu0 0.0
        %2806 = vmatmul.mubr.f32.gmra.mxu0 %v1057
        %v2807 = vpop.f32.mrf.mxu0
        %v2808 = vadd.f32 0.0, %v2807
        %v2809 = vpop.f32.mrf.mxu0
        %2810 = vmatprep.mubr.f32.mxu0 0.0
        %2811 = vmatmul.mubr.f32.gmra.mxu0 %v1059
        %v2812 = vpop.f32.mrf.mxu0
        %v2813 = vadd.f32 0.0, %v2812
        %v2814 = vpop.f32.mrf.mxu0
        %2815 = vmatprep.mubr.f32.mxu0 0.0
        %2816 = vmatmul.mubr.f32.gmra.mxu0 %v1061
        %v2817 = vpop.f32.mrf.mxu0
        %v2818 = vadd.f32 0.0, %v2817
        %v2819 = vpop.f32.mrf.mxu0
        %2820 = vmatprep.mubr.f32.mxu0 0.0
        %2821 = vmatmul.mubr.f32.gmra.mxu0 %v1063
        %v2822 = vpop.f32.mrf.mxu0
        %v2823 = vadd.f32 0.0, %v2822
        %v2824 = vpop.f32.mrf.mxu0
        %2825 = vmatprep.mubr.f32.mxu0 0.0
        %2826 = vmatmul.mubr.f32.gmra.mxu0 %v1065
        %v2827 = vpop.f32.mrf.mxu0
        %v2828 = vadd.f32 0.0, %v2827
        %v2829 = vpop.f32.mrf.mxu0
        %2830 = vmatprep.mubr.f32.mxu0 0.0
        %2831 = vmatmul.mubr.f32.gmra.mxu0 %v1067
        %v2832 = vpop.f32.mrf.mxu0
        %v2833 = vadd.f32 0.0, %v2832
        %v2834 = vpop.f32.mrf.mxu0
        %2835 = vmatprep.mubr.f32.mxu0 0.0
        %2836 = vmatmul.mubr.f32.gmra.mxu0 %v1069
        %v2837 = vpop.f32.mrf.mxu0
        %v2838 = vadd.f32 0.0, %v2837
        %v2839 = vpop.f32.mrf.mxu0
        %2840 = vmatprep.mubr.f32.mxu0 0.0
        %2841 = vmatmul.mubr.f32.gmra.mxu0 %v1071
        %v2842 = vpop.f32.mrf.mxu0
        %v2843 = vadd.f32 0.0, %v2842
        %v2844 = vpop.f32.mrf.mxu0
        %2845 = vmatprep.mubr.f32.mxu0 0.0
        %2846 = vmatmul.mubr.f32.gmra.mxu0 %v1073
        %v2847 = vpop.f32.mrf.mxu0
        %v2848 = vadd.f32 0.0, %v2847
        %v2849 = vpop.f32.mrf.mxu0
        %2850 = vmatprep.mubr.f32.mxu0 0.0
        %2851 = vmatmul.mubr.f32.gmra.mxu0 %v1075
        %v2852 = vpop.f32.mrf.mxu0
        %v2853 = vadd.f32 0.0, %v2852
        %v2854 = vpop.f32.mrf.mxu0
        %2855 = vmatprep.mubr.f32.mxu0 0.0
        %2856 = vmatmul.mubr.f32.gmra.mxu0 %v1077
        %v2857 = vpop.f32.mrf.mxu0
        %v2858 = vadd.f32 0.0, %v2857
        %v2859 = vpop.f32.mrf.mxu0
        %2860 = vmatprep.mubr.f32.mxu0 0.0
        %2861 = vmatmul.mubr.f32.gmra.mxu0 %v1079
        %v2862 = vpop.f32.mrf.mxu0
        %v2863 = vadd.f32 0.0, %v2862
        %v2864 = vpop.f32.mrf.mxu0
        %2865 = vmatprep.mubr.f32.mxu0 0.0
        %2866 = vmatmul.mubr.f32.gmra.mxu0 %v1081
        %v2867 = vpop.f32.mrf.mxu0
        %v2868 = vadd.f32 0.0, %v2867
        %v2869 = vpop.f32.mrf.mxu0
        %2870 = vmatprep.mubr.f32.mxu0 0.0
        %2871 = vmatmul.mubr.f32.gmra.mxu0 %v1083
        %v2872 = vpop.f32.mrf.mxu0
        %v2873 = vadd.f32 0.0, %v2872
        %v2874 = vpop.f32.mrf.mxu0
        %2875 = vmatprep.mubr.f32.mxu0 0.0
        %2876 = vmatmul.mubr.f32.gmra.mxu0 %v1085
        %v2877 = vpop.f32.mrf.mxu0
        %v2878 = vadd.f32 0.0, %v2877
        %v2879 = vpop.f32.mrf.mxu0
        %2880 = vmatprep.mubr.f32.mxu0 0.0
        %2881 = vmatmul.mubr.f32.gmra.mxu0 %v1087
        %v2882 = vpop.f32.mrf.mxu0
        %v2883 = vadd.f32 0.0, %v2882
        %v2884 = vpop.f32.mrf.mxu0
        %2885 = vmatprep.mubr.f32.mxu0 0.0
        %2886 = vmatmul.mubr.f32.gmra.mxu0 %v1089
        %v2887 = vpop.f32.mrf.mxu0
        %v2888 = vadd.f32 0.0, %v2887
        %v2889 = vpop.f32.mrf.mxu0
        %2890 = vmatprep.mubr.f32.mxu0 0.0
        %2891 = vmatmul.mubr.f32.gmra.mxu0 %v1091
        %v2892 = vpop.f32.mrf.mxu0
        %v2893 = vadd.f32 0.0, %v2892
        %v2894 = vpop.f32.mrf.mxu0
        %2895 = vmatprep.mubr.f32.mxu0 0.0
        %2896 = vmatmul.mubr.f32.gmra.mxu0 %v1093
        %v2897 = vpop.f32.mrf.mxu0
        %v2898 = vadd.f32 0.0, %v2897
        %v2899 = vpop.f32.mrf.mxu0
        %2900 = vmatprep.mubr.f32.mxu0 0.0
        %2901 = vmatmul.mubr.f32.gmra.mxu0 %v1095
        %v2902 = vpop.f32.mrf.mxu0
        %v2903 = vadd.f32 0.0, %v2902
        %v2904 = vpop.f32.mrf.mxu0
        %2905 = vmatprep.mubr.f32.mxu0 0.0
        %2906 = vmatmul.mubr.f32.gmra.mxu0 %v1097
        %v2907 = vpop.f32.mrf.mxu0
        %v2908 = vadd.f32 0.0, %v2907
        %v2909 = vpop.f32.mrf.mxu0
        %2910 = vmatprep.mubr.f32.mxu0 0.0
        %2911 = vmatmul.mubr.f32.gmra.mxu0 %v1099
        %v2912 = vpop.f32.mrf.mxu0
        %v2913 = vadd.f32 0.0, %v2912
        %v2914 = vpop.f32.mrf.mxu0
        %2915 = vmatprep.mubr.f32.mxu0 0.0
        %2916 = vmatmul.mubr.f32.gmra.mxu0 %v1101
        %v2917 = vpop.f32.mrf.mxu0
        %v2918 = vadd.f32 0.0, %v2917
        %v2919 = vpop.f32.mrf.mxu0
        %2920 = vmatprep.mubr.f32.mxu0 0.0
        %2921 = vmatmul.mubr.f32.gmra.mxu0 %v1103
        %v2922 = vpop.f32.mrf.mxu0
        %v2923 = vadd.f32 0.0, %v2922
        %v2924 = vpop.f32.mrf.mxu0
        %2925 = vmatprep.mubr.f32.mxu0 0.0
        %2926 = vmatmul.mubr.f32.gmra.mxu0 %v1105
        %v2927 = vpop.f32.mrf.mxu0
        %v2928 = vadd.f32 0.0, %v2927
        %v2929 = vpop.f32.mrf.mxu0
        %2930 = vmatprep.mubr.f32.mxu0 0.0
        %2931 = vmatmul.mubr.f32.gmra.mxu0 %v1107
        %v2932 = vpop.f32.mrf.mxu0
        %v2933 = vadd.f32 0.0, %v2932
        %v2934 = vpop.f32.mrf.mxu0
        %2935 = vmatprep.mubr.f32.mxu0 0.0
        %2936 = vmatmul.mubr.f32.gmra.mxu0 %v1109
        %v2937 = vpop.f32.mrf.mxu0
        %v2938 = vadd.f32 0.0, %v2937
        %v2939 = vpop.f32.mrf.mxu0
        %2940 = vmatprep.mubr.f32.mxu0 0.0
        %2941 = vmatmul.mubr.f32.gmra.mxu0 %v1918
        %v2942 = vpop.f32.mrf.mxu0
        %v2943 = vadd.f32 0.0, %v2942
        %v2944 = vpop.f32.mrf.mxu0
        %2945 = vmatprep.mubr.f32.mxu0 0.0
        %2946 = vmatmul.mubr.f32.gmra.mxu0 %v1920
        %v2947 = vpop.f32.mrf.mxu0
        %v2948 = vadd.f32 0.0, %v2947
        %v2949 = vpop.f32.mrf.mxu0
        %2950 = vmatprep.mubr.f32.mxu0 0.0
        %2951 = vmatmul.mubr.f32.gmra.mxu0 %v2729
        %v2952 = vpop.f32.mrf.mxu0
        %v2953 = vadd.f32 0.0, %v2952
        %v2954 = vpop.f32.mrf.mxu0
        %2955 = vmatprep.mubr.f32.mxu0 0.0
        %2956 = vmatmul.mubr.f32.gmra.mxu0 %v2731
        %v2957 = vpop.f32.mrf.mxu0
        %v2958 = vadd.f32 0.0, %v2957
        %v2959 = vpop.f32.mrf.mxu0
        %2960 = vdwg.mxu0
        %v2961 = vadd.f32 %v2690, %v2803
        %v2962 = vadd.f32 %v2691, %v2808
        %v2963 = vadd.f32 %v2692, %v2813
        %v2964 = vadd.f32 %v2693, %v2818
        %v2965 = vadd.f32 %v2694, %v2823
        %v2966 = vadd.f32 %v2695, %v2828
        %v2967 = vadd.f32 %v2696, %v2833
        %v2968 = vadd.f32 %v2697, %v2838
        %v2969 = vadd.f32 %v2698, %v2843
        %v2970 = vadd.f32 %v2699, %v2848
        %v2971 = vadd.f32 %v2700, %v2853
        %v2972 = vadd.f32 %v2701, %v2858
        %v2973 = vadd.f32 %v2702, %v2863
        %v2974 = vadd.f32 %v2703, %v2868
        %v2975 = vadd.f32 %v2704, %v2873
        %v2976 = vadd.f32 %v2705, %v2878
        %v2977 = vadd.f32 %v2706, %v2883
        %v2978 = vadd.f32 %v2707, %v2888
        %v2979 = vadd.f32 %v2708, %v2893
        %v2980 = vadd.f32 %v2709, %v2898
        %v2981 = vadd.f32 %v2710, %v2903
        %v2982 = vadd.f32 %v2711, %v2908
        %v2983 = vadd.f32 %v2712, %v2913
        %v2984 = vadd.f32 %v2713, %v2918
        %v2985 = vadd.f32 %v2714, %v2923
        %v2986 = vadd.f32 %v2715, %v2928
        %v2987 = vadd.f32 %v2716, %v2933
        %v2988 = vadd.f32 %v2717, %v2938
        %v2989 = vadd.f32 %v2718, %v2943
        %v2990 = vadd.f32 %v2719, %v2948
        %v2991 = vadd.f32 %v2720, %v2953
        %v2992 = vadd.f32 %v2721, %v2958
        %2993 = vst [vmem:[%s182] sm:$0xff] %v2961
        %2994 = vst [vmem:[%s182 + $0x8] sm:$0xff] %v2962
        %2995 = vst [vmem:[%s182 + $0x10] sm:$0xff] %v2963
        %2996 = vst [vmem:[%s182 + $0x18] sm:$0xff] %v2964
        %2997 = vst [vmem:[%s182 + $0x20] sm:$0xff] %v2965
        %2998 = vst [vmem:[%s182 + $0x28] sm:$0xff] %v2966
        %2999 = vst [vmem:[%s182 + $0x30] sm:$0xff] %v2967
        %3000 = vst [vmem:[%s182 + $0x38] sm:$0xff] %v2968
        %3001 = vst [vmem:[%s182 + $0x40] sm:$0xff] %v2969
        %3002 = vst [vmem:[%s182 + $0x48] sm:$0xff] %v2970
        %3003 = vst [vmem:[%s182 + $0x50] sm:$0xff] %v2971
        %3004 = vst [vmem:[%s182 + $0x58] sm:$0xff] %v2972
        %3005 = vst [vmem:[%s182 + $0x60] sm:$0xff] %v2973
        %3006 = vst [vmem:[%s182 + $0x68] sm:$0xff] %v2974
        %3007 = vst [vmem:[%s182 + $0x70] sm:$0xff] %v2975
        %3008 = vst [vmem:[%s182 + $0x78] sm:$0xff] %v2976
        %3009 = vst [vmem:[%s182 + $0x80] sm:$0xff] %v2977
        %3010 = vst [vmem:[%s182 + $0x88] sm:$0xff] %v2978
        %3011 = vst [vmem:[%s182 + $0x90] sm:$0xff] %v2979
        %3012 = vst [vmem:[%s182 + $0x98] sm:$0xff] %v2980
        %3013 = vst [vmem:[%s182 + $0xa0] sm:$0xff] %v2981
        %3014 = vst [vmem:[%s182 + $0xa8] sm:$0xff] %v2982
        %3015 = vst [vmem:[%s182 + $0xb0] sm:$0xff] %v2983
        %3016 = vst [vmem:[%s182 + $0xb8] sm:$0xff] %v2984
        %3017 = vst [vmem:[%s182 + $0xc0] sm:$0xff] %v2985
        %3018 = vst [vmem:[%s182 + $0xc8] sm:$0xff] %v2986
        %3019 = vst [vmem:[%s182 + $0xd0] sm:$0xff] %v2987
        %3020 = vst [vmem:[%s182 + $0xd8] sm:$0xff] %v2988
        %3021 = vst [vmem:[%s182 + $0xe0] sm:$0xff] %v2989
        %3022 = vst [vmem:[%s182 + $0xe8] sm:$0xff] %v2990
        %3023 = vst [vmem:[%s182 + $0xf0] sm:$0xff] %v2991
        %3024 = vst [vmem:[%s182 + $0xf8] sm:$0xff] %v2992
        %v3025 = vadd.f32 %v2961, %v2962
        %v3026 = vadd.f32 %v3025, %v2963
        %v3027 = vadd.f32 %v3026, %v2964
        %v3028 = vadd.f32 %v3027, %v2965
        %v3029 = vadd.f32 %v3028, %v2966
        %v3030 = vadd.f32 %v3029, %v2967
        %v3031 = vadd.f32 %v3030, %v2968
        %v3032 = vadd.f32 %v3031, %v2969
        %v3033 = vadd.f32 %v3032, %v2970
        %v3034 = vadd.f32 %v3033, %v2971
        %v3035 = vadd.f32 %v3034, %v2972
        %v3036 = vadd.f32 %v3035, %v2973
        %v3037 = vadd.f32 %v3036, %v2974
        %v3038 = vadd.f32 %v3037, %v2975
        %v3039 = vadd.f32 %v3038, %v2976
        %v3040 = vadd.f32 %v3039, %v2977
        %v3041 = vadd.f32 %v3040, %v2978
        %v3042 = vadd.f32 %v3041, %v2979
        %v3043 = vadd.f32 %v3042, %v2980
        %v3044 = vadd.f32 %v3043, %v2981
        %v3045 = vadd.f32 %v3044, %v2982
        %v3046 = vadd.f32 %v3045, %v2983
        %v3047 = vadd.f32 %v3046, %v2984
        %v3048 = vadd.f32 %v3047, %v2985
        %v3049 = vadd.f32 %v3048, %v2986
        %v3050 = vadd.f32 %v3049, %v2987
        %v3051 = vadd.f32 %v3050, %v2988
        %v3052 = vadd.f32 %v3051, %v2989
        %v3053 = vadd.f32 %v3052, %v2990
        %v3054 = vadd.f32 %v3053, %v2991
        %v3055 = vadd.f32 %v3054, %v2992
        %v3056 = vrot.slane %v3055, 4
        %v3057 = vadd.f32 %v3055, %v3056
        %v3058 = vrot.slane %v3057, 2
        %v3059 = vadd.f32 %v3057, %v3058
        %v3060 = vrot.slane %v3059, 1
        %v3061 = vadd.f32 %v3059, %v3060
        %v3062 = vmul.f32 %v2961, %v2961
        %v3063 = vmul.f32 %v2962, %v2962
        %v3064 = vmul.f32 %v2963, %v2963
        %v3065 = vmul.f32 %v2964, %v2964
        %v3066 = vmul.f32 %v2965, %v2965
        %v3067 = vmul.f32 %v2966, %v2966
        %v3068 = vmul.f32 %v2967, %v2967
        %v3069 = vmul.f32 %v2968, %v2968
        %v3070 = vmul.f32 %v2969, %v2969
        %v3071 = vmul.f32 %v2970, %v2970
        %v3072 = vmul.f32 %v2971, %v2971
        %v3073 = vmul.f32 %v2972, %v2972
        %v3074 = vmul.f32 %v2973, %v2973
        %v3075 = vmul.f32 %v2974, %v2974
        %v3076 = vmul.f32 %v2975, %v2975
        %v3077 = vmul.f32 %v2976, %v2976
        %v3078 = vmul.f32 %v2977, %v2977
        %v3079 = vmul.f32 %v2978, %v2978
        %v3080 = vmul.f32 %v2979, %v2979
        %v3081 = vmul.f32 %v2980, %v2980
        %v3082 = vmul.f32 %v2981, %v2981
        %v3083 = vmul.f32 %v2982, %v2982
        %v3084 = vmul.f32 %v2983, %v2983
        %v3085 = vmul.f32 %v2984, %v2984
        %v3086 = vmul.f32 %v2985, %v2985
        %v3087 = vmul.f32 %v2986, %v2986
        %v3088 = vmul.f32 %v2987, %v2987
        %v3089 = vmul.f32 %v2988, %v2988
        %v3090 = vmul.f32 %v2989, %v2989
        %v3091 = vmul.f32 %v2990, %v2990
        %v3092 = vmul.f32 %v2991, %v2991
        %v3093 = vmul.f32 %v2992, %v2992
        %v3094 = vadd.f32 %v3062, %v3063
        %v3095 = vadd.f32 %v3094, %v3064
        %v3096 = vadd.f32 %v3095, %v3065
        %v3097 = vadd.f32 %v3096, %v3066
        %v3098 = vadd.f32 %v3097, %v3067
        %v3099 = vadd.f32 %v3098, %v3068
        %v3100 = vadd.f32 %v3099, %v3069
        %v3101 = vadd.f32 %v3100, %v3070
        %v3102 = vadd.f32 %v3101, %v3071
        %v3103 = vadd.f32 %v3102, %v3072
        %v3104 = vadd.f32 %v3103, %v3073
        %v3105 = vadd.f32 %v3104, %v3074
        %v3106 = vadd.f32 %v3105, %v3075
        %v3107 = vadd.f32 %v3106, %v3076
        %v3108 = vadd.f32 %v3107, %v3077
        %v3109 = vadd.f32 %v3108, %v3078
        %v3110 = vadd.f32 %v3109, %v3079
        %v3111 = vadd.f32 %v3110, %v3080
        %v3112 = vadd.f32 %v3111, %v3081
        %v3113 = vadd.f32 %v3112, %v3082
        %v3114 = vadd.f32 %v3113, %v3083
        %v3115 = vadd.f32 %v3114, %v3084
        %v3116 = vadd.f32 %v3115, %v3085
        %v3117 = vadd.f32 %v3116, %v3086
        %v3118 = vadd.f32 %v3117, %v3087
        %v3119 = vadd.f32 %v3118, %v3088
        %v3120 = vadd.f32 %v3119, %v3089
        %v3121 = vadd.f32 %v3120, %v3090
        %v3122 = vadd.f32 %v3121, %v3091
        %v3123 = vadd.f32 %v3122, %v3092
        %v3124 = vadd.f32 %v3123, %v3093
        %v3125 = vrot.slane %v3124, 4
        %v3126 = vadd.f32 %v3124, %v3125
        %v3127 = vrot.slane %v3126, 2
        %v3128 = vadd.f32 %v3126, %v3127
        %v3129 = vrot.slane %v3128, 1
        %v3130 = vadd.f32 %v3128, %v3129
        %p3131 = scmp.eq.s32.totalorder %s20, 0
        // Predicated region
        $region29: #{tpu_custom_call.1} parent=27 // pred_check
          %p3132 = pneg %p3131
        $region30: #{tpu_custom_call.1} parent=27 // pred_check_branch
          %3134 = sbr.rel (%p3132) target = $region32
        $region31: #{tpu_custom_call.1} parent=27 // pred_region
          %3135 = vst [vmem:[#allocation4] sm:$0x1] 0.0
          %3136 = vst [vmem:[#allocation6] sm:$0x1] 0.0
        $region32: #{tpu_custom_call.1} parent=27 // pred_fallthru
          _
        %v3137 = vld [vmem:[#allocation4] sm:$0x1]
        %v3138 = vadd.f32 %v3137, %v3061
        %3139 = vst [vmem:[#allocation4] sm:$0x1] %v3138
        %v3140 = vld [vmem:[#allocation6] sm:$0x1]
        %v3141 = vadd.f32 %v3140, %v3130
        %3142 = vst [vmem:[#allocation6] sm:$0x1] %v3141
        %s3143 = sand.u32 %s75, 1
        %s3144 = scalar_lea.sflag [#allocation3], %s3143
        %s3145 = sand.u32 %s75, 1
        %s3146 = smul.addr %s3145, 256
        %s3147 = scalar_lea.vmem [#allocation2], %s3146
        // Predicated region
        $region33: #{tpu_custom_call.1} parent=27 // pred_check
          %p3148 = pneg %p85
        $region34: #{tpu_custom_call.1} parent=27 // pred_check_branch
          %3150 = sbr.rel (%p3148) target = $region36
        $region35: #{tpu_custom_call.1} parent=27 // pred_region
          %s3152 = ssub.s32 4096, 4096
          %3153 = vsyncadd %s3144, %s3152
          %s3154 = smul.addr %s20, 32
          %s3155 = smul.addr %s3154, 128
          %s3156 = scalar_lea.hbm %s2, %s3155
          %s3157 = sshll.u32 %s3147, 4
          %s3158 = int_to_ptr.vmem [resolvable:$true] %s3157
          %3163 = dma.vmem_to_hbm [thread:$0]  %s3158, 4096, %s3156, %s3144, 128, 128, 8
        $region36: #{tpu_custom_call.1} parent=27 // pred_fallthru
          _
        // Predicated region
        $region37: #{tpu_custom_call.1} parent=27 // pred_check
          %p3164 = pneg %p106
        $region38: #{tpu_custom_call.1} parent=27 // pred_check_branch
          %3166 = sbr.rel (%p3164) target = $region40
        $region39: #{tpu_custom_call.1} parent=27 // pred_region
          %s3168 = ssub.s32 16, 16
          %3169 = vsyncadd [#allocation5], %s3168
          %s3171 = sshll.u32 [#allocation4], 4
          %s3172 = int_to_ptr.vmem [resolvable:$true] %s3171
          %3174 = dma.vmem_to_hbm [thread:$0]  %s3172, 16, %s3, [#allocation5]
        $region40: #{tpu_custom_call.1} parent=27 // pred_fallthru
          _
        // Predicated region
        $region41: #{tpu_custom_call.1} parent=27 // pred_check
          %p3175 = pneg %p127
        $region42: #{tpu_custom_call.1} parent=27 // pred_check_branch
          %3177 = sbr.rel (%p3175) target = $region44
        $region43: #{tpu_custom_call.1} parent=27 // pred_region
          %s3179 = ssub.s32 16, 16
          %3180 = vsyncadd [#allocation5], %s3179
          %s3182 = sshll.u32 [#allocation6], 4
          %s3183 = int_to_ptr.vmem [resolvable:$true] %s3182
          %3185 = dma.vmem_to_hbm [thread:$0]  %s3183, 16, %s4, [#allocation5]
        $region44: #{tpu_custom_call.1} parent=27 // pred_fallthru
          _
        // Predicated region
        $region45: #{tpu_custom_call.1} parent=27 // pred_check
          %p3186 = pneg %p106
        $region46: #{tpu_custom_call.1} parent=27 // pred_check_branch
          %3188 = sbr.rel (%p3186) target = $region48
        $region47: #{tpu_custom_call.1} parent=27 // pred_region
          %3189 = dma.done [#allocation5], 16
        $region48: #{tpu_custom_call.1} parent=27 // pred_fallthru
          _
        // Predicated region
        $region49: #{tpu_custom_call.1} parent=27 // pred_check
          %p3190 = pneg %p127
        $region50: #{tpu_custom_call.1} parent=27 // pred_check_branch
          %3192 = sbr.rel (%p3190) target = $region52
        $region51: #{tpu_custom_call.1} parent=27 // pred_region
          %3193 = dma.done [#allocation5], 16
        $region52: #{tpu_custom_call.1} parent=27 // pred_fallthru
          _
      $region28: #{tpu_custom_call.1} parent=5 // pred_fallthru
        _
      %p3194 = scmp.le.s32.totalorder 2, %s15
      // Predicated region
      $region53: #{tpu_custom_call.1} parent=5 // pred_check
        %p3195 = pneg %p3194
      $region54: #{tpu_custom_call.1} parent=5 // pred_check_branch
        %3197 = sbr.rel (%p3195) target = $region56
      $region55: #{tpu_custom_call.1} parent=5 // pred_region
        %s3198 = ssub.s32 %s15, 2
        // Predicated region
        $region57: #{tpu_custom_call.1} parent=55 // pred_check
          %p3199 = pneg %p91
        $region58: #{tpu_custom_call.1} parent=55 // pred_check_branch
          %3201 = sbr.rel (%p3199) target = $region60
        $region59: #{tpu_custom_call.1} parent=55 // pred_region
          %s3202 = sand.u32 %s76, 1
          %s3203 = scalar_lea.sflag [#allocation3], %s3202
          %s3204 = sand.u32 %s76, 1
          %s3205 = smul.addr %s3204, 256
          %s3206 = scalar_lea.vmem [#allocation2], %s3205
          %3207 = dma.done %s3203, 4096
        $region60: #{tpu_custom_call.1} parent=55 // pred_fallthru
          _
      $region56: #{tpu_custom_call.1} parent=5 // pred_fallthru
        _
    $region6: #{tpu_custom_call.1} parent=1 // loop_footer
      %s19 = sadd.s32 1, %s15
    $region7: #{tpu_custom_call.1} parent=1 // loop_footer_branch
      %14 = sbr.rel target = $region3
    $region8: #{tpu_custom_call.1} parent=1 // loop_exit
      _
    %3208 = vsyncpa [#allocation3], 1
    %s3209 = scalar_lea.sflag [#allocation3], 1
    %3210 = vsyncpa %s3209, 1
    %3211 = vsyncpa [#allocation5], 1

</llo_original>
